<compile_context>
chip_gen: v7x
topology: tpu7x:2x2x1
jax: 0.10.0
libtpu: 0.0.40
codegen_flags: <defaults>
</compile_context>

<pallas_src>
import functools

import jax
import jax.numpy as jnp
from jax.experimental import pallas as pl
from jax.experimental.pallas import tpu as pltpu


# ----------------------------------------------------------------------------
# constants (shapes follow the PyTorch module's interface)
# ----------------------------------------------------------------------------
STEM_K, STEM_S, STEM_P = 3, 2, 1
STEM_CIN, STEM_COUT = 3, 32
K_RAW = STEM_K * STEM_K * STEM_CIN       # 27
K_PAD = 32                               # sublane-aligned im2col width
FEAT_DIM = 1280
HEAD_DIMS = (5, 1, 6)                    # age, gender, race
N_HEADS = sum(HEAD_DIMS)                 # 12
HEADS_PAD = 128                          # lane-dense logits output


def _round_up(x, m):
    return ((x + m - 1) // m) * m


def _default_bf16_epilogue():
    # bf16 VPU/EUP exists on v6e/v7x; v5e would insert converts -> keep f32.
    try:
        kind = jax.devices()[0].device_kind.lower()
        if any(s in kind for s in ("v5e", "v5 lite", "v5lite")):
            return False
        return True
    except Exception:
        return True


# ----------------------------------------------------------------------------
# im2col (JAX glue; operates in the input dtype, call with bf16)
# ----------------------------------------------------------------------------
def _im2col(x_nhwc, k, stride, pad):
    """Extract kxk patches (stride, zero pad) -> [B, Ho*Wo, k*k*C]."""
    b, h, w, c = x_nhwc.shape
    xp = jnp.pad(x_nhwc, ((0, 0), (pad, pad), (pad, pad), (0, 0)))
    ho = (h + 2 * pad - k) // stride + 1
    wo = (w + 2 * pad - k) // stride + 1
    cols = []
    for dy in range(k):
        for dx in range(k):
            cols.append(
                xp[:, dy: dy + ho * stride: stride, dx: dx + wo * stride: stride, :]
            )
    cols = jnp.concatenate(cols, axis=-1)            # [B, Ho, Wo, k*k*C]
    return cols.reshape(b, ho * wo, k * k * c), ho, wo


# ----------------------------------------------------------------------------
# fused Pallas kernel: stem GEMM+SiLU -> expand GEMM+SiLU -> MXU pooled sum
# -> heads at the final tile
# ----------------------------------------------------------------------------
def _fused_kernel(cols_ref, ws_ref, bs_ref, we_ref, be_ref, wh_ref, bh_ref,
                  out_ref, acc_ref, *, hw, tm, bf16_epi):
    t = pl.program_id(1)

    @pl.when(t == 0)
    def _init():
        acc_ref[...] = jnp.zeros_like(acc_ref)

    cols = cols_ref[0]                                            # [tm, 32] bf16

    # stem conv (as GEMM) + bias + SiLU  (MXU bf16, f32 accumulate/epilogue)
    h = jnp.dot(cols, ws_ref[...], preferred_element_type=jnp.float32)
    h = h + bs_ref[...]
    h = h * jax.nn.sigmoid(h)                                     # [tm, 32] f32

    # 1x1 expand 32 -> 1280 + bias + SiLU
    f = jnp.dot(h.astype(jnp.bfloat16), we_ref[...],
                preferred_element_type=jnp.float32)               # [tm,1280] f32
    if bf16_epi:
        # bf16 epilogue: ~2x EUP/VPU throughput + half the VMEM ld/st bytes
        f = f.astype(jnp.bfloat16)
        f = f + be_ref[...].astype(jnp.bfloat16)
        f = f * jax.nn.sigmoid(f)                                 # [tm,1280] bf16
    else:
        f = f + be_ref[...]
        f = f * jax.nn.sigmoid(f)                                 # [tm,1280] f32

    # streamed global-average-pool on the MXU:
    #   acc += [1, tm] row-validity mask @ [tm, 1280] f   (f32 accumulate)
    # The mask zeroes the zero-padded rows of the last tile for the cost of a
    # [1, tm] iota+compare instead of a full [tm, 1280] select, and the
    # sublane-direction reduce moves to the (underfilled) MXU.
    row = t * tm + jax.lax.broadcasted_iota(jnp.int32, (1, tm), 1)
    valid = (row < hw).astype(jnp.bfloat16)                       # [1, tm]
    acc_ref[...] += jnp.dot(valid, f.astype(jnp.bfloat16),
                            preferred_element_type=jnp.float32)   # [1, 1280]

    @pl.when(t == pl.num_programs(1) - 1)
    def _finalize():
        feats = acc_ref[...] * (1.0 / hw)                         # [1, 1280]
        logits = jnp.dot(feats.astype(jnp.bfloat16), wh_ref[...],
                         preferred_element_type=jnp.float32) + bh_ref[...]
        out_ref[0] = logits                                       # [1, 128]


# ----------------------------------------------------------------------------
# parameters (deterministic synthetic init; shapes follow the PyTorch module)
# ----------------------------------------------------------------------------
def init_params(key):
    ks = jax.random.split(key, 6)
    scale = 0.02
    p = {}
    # conv stem 3x3/2, 3->32 (BN folded into bias)
    p["w_stem"] = scale * jax.random.normal(ks[0], (K_RAW, STEM_COUT), jnp.float32)
    p["b_stem"] = scale * jax.random.normal(ks[1], (1, STEM_COUT), jnp.float32)
    # 1x1 expand 32 -> 1280
    p["w_exp"] = scale * jax.random.normal(ks[2], (STEM_COUT, FEAT_DIM), jnp.float32)
    p["b_exp"] = scale * jax.random.normal(ks[3], (1, FEAT_DIM), jnp.float32)
    # heads: Linear(1280,5), Linear(1280,1), Linear(1280,6), concatenated
    p["w_heads"] = scale * jax.random.normal(ks[4], (FEAT_DIM, N_HEADS), jnp.float32)
    p["b_heads"] = scale * jax.random.normal(ks[5], (1, N_HEADS), jnp.float32)
    return p


# ----------------------------------------------------------------------------
# forward
# ----------------------------------------------------------------------------
def multitask_forward(x_nchw, params, *, tm=1024, bf16_epilogue=None):
    # tm=1024 is safe on every generation (v7x: 64 MiB VMEM); on v5e/v6e
    # (128 MiB VMEM) tm=2048 is also fine at 224x224 inputs.
    if bf16_epilogue is None:
        bf16_epilogue = _default_bf16_epilogue()

    b = x_nchw.shape[0]
    # One pass over the activation: NCHW->NHWC transpose fused with the bf16
    # downcast; patches are then built directly in bf16.
    x_nhwc = jnp.transpose(x_nchw, (0, 2, 3, 1)).astype(jnp.bfloat16)

    cols, ho, wo = _im2col(x_nhwc, STEM_K, STEM_S, STEM_P)     # [B, HW, 27] bf16
    hw = ho * wo
    tm_eff = min(tm, _round_up(hw, 16))                        # bf16 sublane pack
    hw_pad = _round_up(hw, tm_eff)
    # single pad op: rows -> hw_pad, K 27 -> 32
    cols = jnp.pad(cols, ((0, 0), (0, hw_pad - hw), (0, K_PAD - K_RAW)))

    # weights: pad to aligned shapes, cast matmul operands to bf16 (biases f32)
    w_stem = jnp.pad(params["w_stem"], ((0, K_PAD - K_RAW), (0, 0))).astype(jnp.bfloat16)
    b_stem = params["b_stem"]
    w_exp = params["w_exp"].astype(jnp.bfloat16)
    b_exp = params["b_exp"]
    w_heads = jnp.pad(params["w_heads"],
                      ((0, 0), (0, HEADS_PAD - N_HEADS))).astype(jnp.bfloat16)
    b_heads = jnp.pad(params["b_heads"], ((0, 0), (0, HEADS_PAD - N_HEADS)))

    n_tiles = hw_pad // tm_eff
    kernel = functools.partial(_fused_kernel, hw=hw, tm=tm_eff,
                               bf16_epi=bf16_epilogue)

    cost = pl.CostEstimate(
        flops=int(2 * b * hw_pad * (K_PAD * STEM_COUT + STEM_COUT * FEAT_DIM
                                    + FEAT_DIM)            # + MXU pooled sum
                  + 2 * b * FEAT_DIM * HEADS_PAD),
        transcendentals=int(b * hw_pad * (STEM_COUT + FEAT_DIM)),
        bytes_accessed=int(cols.size * 2
                           + (w_stem.size + w_exp.size + w_heads.size) * 2
                           + (b_stem.size + b_exp.size + b_heads.size) * 4
                           + b * HEADS_PAD * 4),
    )

    logits_pad = pl.pallas_call(
        kernel,
        grid=(b, n_tiles),
        in_specs=[
            pl.BlockSpec((1, tm_eff, K_PAD), lambda bi, ti: (bi, ti, 0)),
            # weights/biases: constant index_maps -> resident in VMEM
            pl.BlockSpec((K_PAD, STEM_COUT), lambda bi, ti: (0, 0)),
            pl.BlockSpec((1, STEM_COUT), lambda bi, ti: (0, 0)),
            pl.BlockSpec((STEM_COUT, FEAT_DIM), lambda bi, ti: (0, 0)),
            pl.BlockSpec((1, FEAT_DIM), lambda bi, ti: (0, 0)),
            pl.BlockSpec((FEAT_DIM, HEADS_PAD), lambda bi, ti: (0, 0)),
            pl.BlockSpec((1, HEADS_PAD), lambda bi, ti: (0, 0)),
        ],
        out_specs=pl.BlockSpec((1, 1, HEADS_PAD), lambda bi, ti: (bi, 0, 0)),
        out_shape=jax.ShapeDtypeStruct((b, 1, HEADS_PAD), jnp.float32),
        scratch_shapes=[pltpu.VMEM((1, FEAT_DIM), jnp.float32)],
        compiler_params=pltpu.CompilerParams(
            dimension_semantics=("parallel", "arbitrary"),
            vmem_limit_bytes=48 * 1024 * 1024,
        ),
        cost_estimate=cost,
    )(cols, w_stem, b_stem, w_exp, b_exp, w_heads, b_heads)

    logits = logits_pad.reshape(b, HEADS_PAD)[:, :N_HEADS]
    age = logits[:, 0:5]
    gender = logits[:, 5:6]
    race = logits[:, 6:12]
    return age, gender, race


# ----------------------------------------------------------------------------
# pure-JAX reference (same math, f32) for a correctness check
# ----------------------------------------------------------------------------
def _reference(x_nchw, params):
    x = jnp.transpose(x_nchw, (0, 2, 3, 1)).astype(jnp.float32)
    cols, _, _ = _im2col(x, STEM_K, STEM_S, STEM_P)            # [B, HW, 27]
    h = cols @ params["w_stem"] + params["b_stem"]
    h = h * jax.nn.sigmoid(h)
    f = h @ params["w_exp"] + params["b_exp"]
    f = f * jax.nn.sigmoid(f)
    feats = jnp.mean(f, axis=1)                                # [B, 1280]
    logits = feats @ params["w_heads"] + params["b_heads"]
    return logits[:, 0:5], logits[:, 5:6], logits[:, 6:12]


# ----------------------------------------------------------------------------
if __name__ == "__main__":
    key = jax.random.PRNGKey(0)
    k_x, k_p = jax.random.split(key)

    x = jax.random.normal(k_x, (2, 3, 32, 32), jnp.float32)    # NCHW, like PyTorch
    params = init_params(k_p)

    # tm=128 -> two row tiles per image at 32x32 input, exercising the
    # accumulate / finalize path; at real resolutions use the default tm=1024.
    fwd = jax.jit(functools.partial(multitask_forward, params=params, tm=128))
    age, gender, race = fwd(x)
    jax.block_until_ready((age, gender, race))

    assert age.shape == (2, 5) and age.dtype == jnp.float32
    assert gender.shape == (2, 1) and gender.dtype == jnp.float32
    assert race.shape == (2, 6) and race.dtype == jnp.float32
    assert all(bool(jnp.all(jnp.isfinite(o))) for o in (age, gender, race))

    ref_age, ref_gender, ref_race = _reference(x, params)
    for got, ref in ((age, ref_age), (gender, ref_gender), (race, ref_race)):
        assert bool(jnp.allclose(got, ref, atol=1e-2, rtol=5e-2)), "mismatch vs ref"

    print("KERNEL_OK")
</pallas_src>

<mosaic_0001>
module attributes {stable_mosaic.version = 11 : i64} {
  func.func @_fused_kernel(%arg0: i32, %arg1: i32, %arg2: memref<1x128x32xbf16, #tpu.memory_space<vmem>>, %arg3: memref<32x32xbf16, #tpu.memory_space<vmem>>, %arg4: memref<1x32xf32, #tpu.memory_space<vmem>>, %arg5: memref<32x1280xbf16, #tpu.memory_space<vmem>>, %arg6: memref<1x1280xf32, #tpu.memory_space<vmem>>, %arg7: memref<1280x128xbf16, #tpu.memory_space<vmem>>, %arg8: memref<1x128xf32, #tpu.memory_space<vmem>>, %arg9: memref<1x1x128xf32, #tpu.memory_space<vmem>>, %arg10: memref<1x1280xf32, #tpu.memory_space<vmem>>) attributes {dimension_semantics = [#tpu.dimension_semantics<parallel>, #tpu.dimension_semantics<arbitrary>], iteration_bounds = array<i64: 2, 2>, scalar_prefetch = 0 : i64, scratch_operands = 1 : i64, tpu.core_type = #tpu.core_type<tc>, window_params = [{transform_indices = @transform_0, window_bounds = array<i64: 1, 128, 32>}, {pipeline_mode = #tpu.pipeline_mode<synchronous>, transform_indices = @transform_1, window_bounds = array<i64: 32, 32>}, {pipeline_mode = #tpu.pipeline_mode<synchronous>, transform_indices = @transform_2, window_bounds = array<i64: 1, 32>}, {pipeline_mode = #tpu.pipeline_mode<synchronous>, transform_indices = @transform_3, window_bounds = array<i64: 32, 1280>}, {pipeline_mode = #tpu.pipeline_mode<synchronous>, transform_indices = @transform_4, window_bounds = array<i64: 1, 1280>}, {pipeline_mode = #tpu.pipeline_mode<synchronous>, transform_indices = @transform_5, window_bounds = array<i64: 1280, 128>}, {pipeline_mode = #tpu.pipeline_mode<synchronous>, transform_indices = @transform_6, window_bounds = array<i64: 1, 128>}, {transform_indices = @transform_7, window_bounds = array<i64: 1, 1, 128>}]} {
    %c0_i32 = arith.constant 0 : i32
    %0 = arith.cmpi eq, %arg1, %c0_i32 : i32
    %1 = arith.extui %0 : i1 to i32
    %c0_i32_0 = arith.constant 0 : i32
    %2 = arith.cmpi ne, %1, %c0_i32_0 : i32
    scf.if %2 {
      %cst_20 = arith.constant 0.000000e+00 : f32
      %46 = vector.broadcast %cst_20 : f32 to vector<1x1280xf32>
      %c0_21 = arith.constant 0 : index
      %c0_22 = arith.constant 0 : index
      %47 = vector.load %arg10[%c0_21, %c0_22] : memref<1x1280xf32, #tpu.memory_space<vmem>>, vector<1x1280xf32>
      tpu.vector_store %arg10[%c0_21, %c0_22], %46 {strides = array<i32>} : memref<1x1280xf32, #tpu.memory_space<vmem>>, vector<1x1280xf32>,
    } else {
    }
    %c0 = arith.constant 0 : index
    %c0_1 = arith.constant 0 : index
    %c0_2 = arith.constant 0 : index
    %3 = vector.load %arg2[%c0, %c0_1, %c0_2] : memref<1x128x32xbf16, #tpu.memory_space<vmem>>, vector<1x128x32xbf16>
    %4 = vector.shape_cast %3 : vector<1x128x32xbf16> to vector<128x32xbf16>
    %c0_3 = arith.constant 0 : index
    %c0_4 = arith.constant 0 : index
    %5 = vector.load %arg3[%c0_3, %c0_4] : memref<32x32xbf16, #tpu.memory_space<vmem>>, vector<32x32xbf16>
    %cst = arith.constant dense<0.000000e+00> : vector<128x32xf32>
    %6 = tpu.matmul %4, %5, %cst {dimension_numbers = #tpu.dot_dimension_numbers<[1], [0], [0], [1], [0, 0, 1, 1], [], []>} : vector<128x32xbf16>, vector<32x32xbf16>, vector<128x32xf32> -> vector<128x32xf32>
    %c0_5 = arith.constant 0 : index
    %c0_6 = arith.constant 0 : index
    %7 = vector.load %arg4[%c0_5, %c0_6] : memref<1x32xf32, #tpu.memory_space<vmem>>, vector<1x32xf32>
    %8 = vector.broadcast %7 : vector<1x32xf32> to vector<128x32xf32>
    %9 = arith.addf %6, %8 : vector<128x32xf32>
    %10 = arith.negf %9 : vector<128x32xf32>
    %11 = math.exp %10 : vector<128x32xf32>
    %cst_7 = arith.constant 1.000000e+00 : f32
    %12 = vector.broadcast %cst_7 : f32 to vector<128x32xf32>
    %13 = arith.addf %12, %11 : vector<128x32xf32>
    %14 = arith.divf %12, %13 : vector<128x32xf32>
    %15 = arith.mulf %9, %14 : vector<128x32xf32>
    %16 = arith.truncf %15 : vector<128x32xf32> to vector<128x32xbf16>
    %c0_8 = arith.constant 0 : index
    %c0_9 = arith.constant 0 : index
    %17 = vector.load %arg5[%c0_8, %c0_9] : memref<32x1280xbf16, #tpu.memory_space<vmem>>, vector<32x1280xbf16>
    %cst_10 = arith.constant dense<0.000000e+00> : vector<128x1280xf32>
    %18 = tpu.matmul %16, %17, %cst_10 {dimension_numbers = #tpu.dot_dimension_numbers<[1], [0], [0], [1], [0, 0, 1, 1], [], []>} : vector<128x32xbf16>, vector<32x1280xbf16>, vector<128x1280xf32> -> vector<128x1280xf32>
    %19 = arith.truncf %18 : vector<128x1280xf32> to vector<128x1280xbf16>
    %c0_11 = arith.constant 0 : index
    %c0_12 = arith.constant 0 : index
    %20 = vector.load %arg6[%c0_11, %c0_12] : memref<1x1280xf32, #tpu.memory_space<vmem>>, vector<1x1280xf32>
    %21 = arith.truncf %20 : vector<1x1280xf32> to vector<1x1280xbf16>
    %22 = vector.broadcast %21 : vector<1x1280xbf16> to vector<128x1280xbf16>
    %23 = arith.addf %19, %22 : vector<128x1280xbf16>
    %24 = arith.negf %23 : vector<128x1280xbf16>
    %25 = math.exp %24 : vector<128x1280xbf16>
    %cst_13 = arith.constant 1.000000e+00 : bf16
    %26 = vector.broadcast %cst_13 : bf16 to vector<128x1280xbf16>
    %27 = arith.addf %26, %25 : vector<128x1280xbf16>
    %28 = arith.divf %26, %27 : vector<128x1280xbf16>
    %29 = arith.mulf %23, %28 : vector<128x1280xbf16>
    %c128_i32 = arith.constant 128 : i32
    %30 = arith.muli %arg1, %c128_i32 : i32
    %31 = tpu.iota {dimensions = array<i32: 1>} : vector<1x128xi32>
    %32 = vector.broadcast %30 : i32 to vector<1x128xi32>
    %33 = arith.addi %32, %31 : vector<1x128xi32>
    %c256_i32 = arith.constant 256 : i32
    %34 = vector.broadcast %c256_i32 : i32 to vector<1x128xi32>
    %35 = arith.cmpi slt, %33, %34 : vector<1x128xi32>
    %36 = arith.extui %35 : vector<1x128xi1> to vector<1x128xi32>
    %37 = arith.sitofp %36 : vector<1x128xi32> to vector<1x128xf32>
    %38 = arith.truncf %37 : vector<1x128xf32> to vector<1x128xbf16>
    %c0_14 = arith.constant 0 : index
    %c0_15 = arith.constant 0 : index
    %39 = vector.load %arg10[%c0_14, %c0_15] : memref<1x1280xf32, #tpu.memory_space<vmem>>, vector<1x1280xf32>
    %cst_16 = arith.constant dense<0.000000e+00> : vector<1x1280xf32>
    %40 = tpu.matmul %38, %29, %cst_16 {dimension_numbers = #tpu.dot_dimension_numbers<[1], [0], [0], [1], [0, 0, 1, 1], [], []>} : vector<1x128xbf16>, vector<128x1280xbf16>, vector<1x1280xf32> -> vector<1x1280xf32>
    %41 = arith.addf %39, %40 : vector<1x1280xf32>
    %c0_17 = arith.constant 0 : index
    %c0_18 = arith.constant 0 : index
    %42 = vector.load %arg10[%c0_17, %c0_18] : memref<1x1280xf32, #tpu.memory_space<vmem>>, vector<1x1280xf32>
    tpu.vector_store %arg10[%c0_17, %c0_18], %41 {strides = array<i32>} : memref<1x1280xf32, #tpu.memory_space<vmem>>, vector<1x1280xf32>,
    %c1_i32 = arith.constant 1 : i32
    %43 = arith.cmpi eq, %arg1, %c1_i32 : i32
    %44 = arith.extui %43 : i1 to i32
    %c0_i32_19 = arith.constant 0 : i32
    %45 = arith.cmpi ne, %44, %c0_i32_19 : i32
    scf.if %45 {
      %c0_20 = arith.constant 0 : index
      %c0_21 = arith.constant 0 : index
      %46 = vector.load %arg10[%c0_20, %c0_21] : memref<1x1280xf32, #tpu.memory_space<vmem>>, vector<1x1280xf32>
      %cst_22 = arith.constant 3.906250e-03 : f32
      %47 = vector.broadcast %cst_22 : f32 to vector<1x1280xf32>
      %48 = arith.mulf %46, %47 : vector<1x1280xf32>
      %49 = arith.truncf %48 : vector<1x1280xf32> to vector<1x1280xbf16>
      %c0_23 = arith.constant 0 : index
      %c0_24 = arith.constant 0 : index
      %50 = vector.load %arg7[%c0_23, %c0_24] : memref<1280x128xbf16, #tpu.memory_space<vmem>>, vector<1280x128xbf16>
      %cst_25 = arith.constant dense<0.000000e+00> : vector<1x128xf32>
      %51 = tpu.matmul %49, %50, %cst_25 {dimension_numbers = #tpu.dot_dimension_numbers<[1], [0], [0], [1], [0, 0, 1, 1], [], []>} : vector<1x1280xbf16>, vector<1280x128xbf16>, vector<1x128xf32> -> vector<1x128xf32>
      %c0_26 = arith.constant 0 : index
      %c0_27 = arith.constant 0 : index
      %52 = vector.load %arg8[%c0_26, %c0_27] : memref<1x128xf32, #tpu.memory_space<vmem>>, vector<1x128xf32>
      %53 = arith.addf %51, %52 : vector<1x128xf32>
      %c0_28 = arith.constant 0 : index
      %c0_29 = arith.constant 0 : index
      %c0_30 = arith.constant 0 : index
      %54 = vector.load %arg9[%c0_28, %c0_29, %c0_30] : memref<1x1x128xf32, #tpu.memory_space<vmem>>, vector<1x1x128xf32>
      %55 = vector.shape_cast %54 : vector<1x1x128xf32> to vector<1x128xf32>
      %56 = vector.shape_cast %53 : vector<1x128xf32> to vector<1x1x128xf32>
      tpu.vector_store %arg9[%c0_28, %c0_29, %c0_30], %56 {strides = array<i32>} : memref<1x1x128xf32, #tpu.memory_space<vmem>>, vector<1x1x128xf32>,
    } else {
    }
    return
  }
  func.func @transform_0(%arg0: i32, %arg1: i32) -> (i32, i32, i32) {
    %c0_i32 = arith.constant 0 : i32
    %c0_i32_0 = arith.constant 0 : i32
    return %arg0, %arg1, %c0_i32 : i32, i32, i32
  }
  func.func @transform_1(%arg0: i32, %arg1: i32) -> (i32, i32) {
    %c0_i32 = arith.constant 0 : i32
    %c0_i32_0 = arith.constant 0 : i32
    %c0_i32_1 = arith.constant 0 : i32
    return %c0_i32, %c0_i32_0 : i32, i32
  }
  func.func @transform_2(%arg0: i32, %arg1: i32) -> (i32, i32) {
    %c0_i32 = arith.constant 0 : i32
    %c0_i32_0 = arith.constant 0 : i32
    %c0_i32_1 = arith.constant 0 : i32
    return %c0_i32, %c0_i32_0 : i32, i32
  }
  func.func @transform_3(%arg0: i32, %arg1: i32) -> (i32, i32) {
    %c0_i32 = arith.constant 0 : i32
    %c0_i32_0 = arith.constant 0 : i32
    %c0_i32_1 = arith.constant 0 : i32
    return %c0_i32, %c0_i32_0 : i32, i32
  }
  func.func @transform_4(%arg0: i32, %arg1: i32) -> (i32, i32) {
    %c0_i32 = arith.constant 0 : i32
    %c0_i32_0 = arith.constant 0 : i32
    %c0_i32_1 = arith.constant 0 : i32
    return %c0_i32, %c0_i32_0 : i32, i32
  }
  func.func @transform_5(%arg0: i32, %arg1: i32) -> (i32, i32) {
    %c0_i32 = arith.constant 0 : i32
    %c0_i32_0 = arith.constant 0 : i32
    %c0_i32_1 = arith.constant 0 : i32
    return %c0_i32, %c0_i32_0 : i32, i32
  }
  func.func @transform_6(%arg0: i32, %arg1: i32) -> (i32, i32) {
    %c0_i32 = arith.constant 0 : i32
    %c0_i32_0 = arith.constant 0 : i32
    %c0_i32_1 = arith.constant 0 : i32
    return %c0_i32, %c0_i32_0 : i32, i32
  }
  func.func @transform_7(%arg0: i32, %arg1: i32) -> (i32, i32, i32) {
    %c0_i32 = arith.constant 0 : i32
    %c0_i32_0 = arith.constant 0 : i32
    %c0_i32_1 = arith.constant 0 : i32
    return %arg0, %c0_i32, %c0_i32_0 : i32, i32, i32
  }
}

</mosaic_0001>

<llo_original>
// kernel: multitask_forward.1
$region0: #{multitask_forward.1}
  #allocation0 [shape = 'u32[]', space=smem, size = 0x4, offset = 0x4, fixed_abs, tag = 'smem constant byte address 0x4 - core index']
  #allocation1 [shape = 'u32[144,128]{1,0:T(1,128)}', space=vmem, size = 0x12000, scoped, tag = 'internal scratch']
  #allocation2 [shape = 'f32[1,1280]{1,0:T(1,128)}', space=vmem, size = 0x1400, scoped, tag = 'scratch operand']
  %s0 = inlined_call_operand.vmem [shape: bf16[2,256,32], index: 0, kind: input, shape index: {}]
  %s1 = inlined_call_operand.vmem [shape: bf16[32,32], index: 1, kind: input, shape index: {}]
  %s2 = inlined_call_operand.vmem [shape: f32[1,32], index: 2, kind: input, shape index: {}]
  %s3 = inlined_call_operand.vmem [shape: bf16[32,1280], index: 3, kind: input, shape index: {}]
  %s4 = inlined_call_operand.vmem [shape: f32[1,1280], index: 4, kind: input, shape index: {}]
  %s5 = inlined_call_operand.vmem [shape: bf16[1280,128], index: 5, kind: input, shape index: {}]
  %s6 = inlined_call_operand.vmem [shape: f32[1,128], index: 6, kind: input, shape index: {}]
  %s7 = inlined_call_operand.vmem [shape: f32[2,1,128], index: 7, kind: output, shape index: {}]
  %s8 = sld [smem:[#allocation0]]
  $region69: #{multitask_forward.1} parent=0
    _
  %s10 = ssub.s32 1, %s8
  %s11 = scalar_select 0, %s10, %s8
  loop: start=0, step=1, limit=6
  $region2: #{multitask_forward.1} parent=0 // loop_pre_header
    _
  $region3: #{multitask_forward.1} parent=0 // loop_header
    %s13 = sphi 0, %s17
    %p14 = scmp.ge.s32.totalorder %s13, 6
    %s20 = sphi 0, %s32
    %s21 = sphi 0, %s28
    %s22 = sphi 0, %s20
    %s23 = sphi 0, %s21
    %s24 = sphi 0, %s22
    %s25 = sphi 0, %s23
    %s37 = sphi 0, %s39
    %s40 = sphi 0, %s37
    %s41 = sphi 0, %s40
    %s57 = sphi 0, %s41
    %s61 = sphi 0, %s61
    %s63 = sphi 0, %s61
    %s64 = sphi 0, %s63
    %s78 = sphi 0, %s64
    %s82 = sphi 0, %s82
    %s84 = sphi 0, %s82
    %s85 = sphi 0, %s84
    %s99 = sphi 0, %s85
    %s103 = sphi 0, %s103
    %s105 = sphi 0, %s103
    %s106 = sphi 0, %s105
    %s120 = sphi 0, %s106
    %s124 = sphi 0, %s124
    %s126 = sphi 0, %s124
    %s127 = sphi 0, %s126
    %s141 = sphi 0, %s127
    %s145 = sphi 0, %s145
    %s147 = sphi 0, %s145
    %s148 = sphi 0, %s147
    %s162 = sphi 0, %s148
    %s166 = sphi 0, %s166
    %s168 = sphi 0, %s166
    %s169 = sphi 0, %s168
    %s183 = sphi 0, %s169
    %s189 = sphi 0, %s191
    %s192 = sphi 0, %s189
    %s193 = sphi 0, %s192
    %s209 = sphi 0, %s193
  $region4: #{multitask_forward.1} parent=0 // loop_header_branch
    %16 = sbr.rel (%p14) target = $region8
  $region5: #{multitask_forward.1} parent=0 // loop_body
    %s18 = ssub.s32 %s13, 1
    %s19 = ssub.s32 %s13, 2
    %s26 = sadd.s32 1, %s21
    %p27 = scmp.ge.s32.totalorder %s26, 2
    %s28 = scalar_select %p27, 0, %s26
    %s29 = sadd.s32 1, %s20
    %s30 = scalar_select %p27, %s29, %s20
    %p31 = scmp.ge.s32.totalorder %s30, 2
    %s32 = scalar_select %p31, 0, %s30
    %s33 = ssub.s32 %s20, %s32
    %s34 = ssub.s32 %s21, %s28
    %s35 = sor.u32 %s33, %s34
    %p36 = scmp.eq.s32.totalorder %s35, 0
    %s38 = sadd.s32 %s37, 1
    %s39 = scalar_select %p36, %s37, %s38
    %p42 = pneg %p36
    %p43 = scmp.eq.s32.totalorder %s13, 3
    %p44 = por %p42, %p43
    %p45 = scmp.ne.s32.totalorder %s37, %s40
    %p46 = scmp.eq.s32.totalorder %s13, 0
    %p47 = por %p45, %p46
    %p48 = scmp.ne.s32.totalorder %s37, %s40
    %p49 = scmp.eq.s32.totalorder %s18, 3
    %p50 = por %p48, %p49
    %p51 = scmp.ne.s32.totalorder %s40, %s41
    %p52 = scmp.eq.s32.totalorder %s18, 0
    %p53 = por %p51, %p52
    %p54 = scmp.ne.s32.totalorder %s40, %s41
    %p55 = scmp.eq.s32.totalorder %s19, 3
    %p56 = por %p54, %p55
    %p58 = scmp.ne.s32.totalorder %s41, %s57
    %p59 = scmp.eq.s32.totalorder %s19, 0
    %p60 = por %p58, %p59
    %s62 = sadd.s32 %s61, 1
    %p65 = scmp.eq.s32.totalorder %s13, 3
    %p66 = scmp.ne.s32.totalorder %s61, %s63
    %p67 = scmp.eq.s32.totalorder %s13, 0
    %p68 = por %p66, %p67
    %p69 = scmp.ne.s32.totalorder %s61, %s63
    %p70 = scmp.eq.s32.totalorder %s18, 3
    %p71 = por %p69, %p70
    %p72 = scmp.ne.s32.totalorder %s63, %s64
    %p73 = scmp.eq.s32.totalorder %s18, 0
    %p74 = por %p72, %p73
    %p75 = scmp.ne.s32.totalorder %s63, %s64
    %p76 = scmp.eq.s32.totalorder %s19, 3
    %p77 = por %p75, %p76
    %p79 = scmp.ne.s32.totalorder %s64, %s78
    %p80 = scmp.eq.s32.totalorder %s19, 0
    %p81 = por %p79, %p80
    %s83 = sadd.s32 %s82, 1
    %p86 = scmp.eq.s32.totalorder %s13, 3
    %p87 = scmp.ne.s32.totalorder %s82, %s84
    %p88 = scmp.eq.s32.totalorder %s13, 0
    %p89 = por %p87, %p88
    %p90 = scmp.ne.s32.totalorder %s82, %s84
    %p91 = scmp.eq.s32.totalorder %s18, 3
    %p92 = por %p90, %p91
    %p93 = scmp.ne.s32.totalorder %s84, %s85
    %p94 = scmp.eq.s32.totalorder %s18, 0
    %p95 = por %p93, %p94
    %p96 = scmp.ne.s32.totalorder %s84, %s85
    %p97 = scmp.eq.s32.totalorder %s19, 3
    %p98 = por %p96, %p97
    %p100 = scmp.ne.s32.totalorder %s85, %s99
    %p101 = scmp.eq.s32.totalorder %s19, 0
    %p102 = por %p100, %p101
    %s104 = sadd.s32 %s103, 1
    %p107 = scmp.eq.s32.totalorder %s13, 3
    %p108 = scmp.ne.s32.totalorder %s103, %s105
    %p109 = scmp.eq.s32.totalorder %s13, 0
    %p110 = por %p108, %p109
    %p111 = scmp.ne.s32.totalorder %s103, %s105
    %p112 = scmp.eq.s32.totalorder %s18, 3
    %p113 = por %p111, %p112
    %p114 = scmp.ne.s32.totalorder %s105, %s106
    %p115 = scmp.eq.s32.totalorder %s18, 0
    %p116 = por %p114, %p115
    %p117 = scmp.ne.s32.totalorder %s105, %s106
    %p118 = scmp.eq.s32.totalorder %s19, 3
    %p119 = por %p117, %p118
    %p121 = scmp.ne.s32.totalorder %s106, %s120
    %p122 = scmp.eq.s32.totalorder %s19, 0
    %p123 = por %p121, %p122
    %s125 = sadd.s32 %s124, 1
    %p128 = scmp.eq.s32.totalorder %s13, 3
    %p129 = scmp.ne.s32.totalorder %s124, %s126
    %p130 = scmp.eq.s32.totalorder %s13, 0
    %p131 = por %p129, %p130
    %p132 = scmp.ne.s32.totalorder %s124, %s126
    %p133 = scmp.eq.s32.totalorder %s18, 3
    %p134 = por %p132, %p133
    %p135 = scmp.ne.s32.totalorder %s126, %s127
    %p136 = scmp.eq.s32.totalorder %s18, 0
    %p137 = por %p135, %p136
    %p138 = scmp.ne.s32.totalorder %s126, %s127
    %p139 = scmp.eq.s32.totalorder %s19, 3
    %p140 = por %p138, %p139
    %p142 = scmp.ne.s32.totalorder %s127, %s141
    %p143 = scmp.eq.s32.totalorder %s19, 0
    %p144 = por %p142, %p143
    %s146 = sadd.s32 %s145, 1
    %p149 = scmp.eq.s32.totalorder %s13, 3
    %p150 = scmp.ne.s32.totalorder %s145, %s147
    %p151 = scmp.eq.s32.totalorder %s13, 0
    %p152 = por %p150, %p151
    %p153 = scmp.ne.s32.totalorder %s145, %s147
    %p154 = scmp.eq.s32.totalorder %s18, 3
    %p155 = por %p153, %p154
    %p156 = scmp.ne.s32.totalorder %s147, %s148
    %p157 = scmp.eq.s32.totalorder %s18, 0
    %p158 = por %p156, %p157
    %p159 = scmp.ne.s32.totalorder %s147, %s148
    %p160 = scmp.eq.s32.totalorder %s19, 3
    %p161 = por %p159, %p160
    %p163 = scmp.ne.s32.totalorder %s148, %s162
    %p164 = scmp.eq.s32.totalorder %s19, 0
    %p165 = por %p163, %p164
    %s167 = sadd.s32 %s166, 1
    %p170 = scmp.eq.s32.totalorder %s13, 3
    %p171 = scmp.ne.s32.totalorder %s166, %s168
    %p172 = scmp.eq.s32.totalorder %s13, 0
    %p173 = por %p171, %p172
    %p174 = scmp.ne.s32.totalorder %s166, %s168
    %p175 = scmp.eq.s32.totalorder %s18, 3
    %p176 = por %p174, %p175
    %p177 = scmp.ne.s32.totalorder %s168, %s169
    %p178 = scmp.eq.s32.totalorder %s18, 0
    %p179 = por %p177, %p178
    %p180 = scmp.ne.s32.totalorder %s168, %s169
    %p181 = scmp.eq.s32.totalorder %s19, 3
    %p182 = por %p180, %p181
    %p184 = scmp.ne.s32.totalorder %s169, %s183
    %p185 = scmp.eq.s32.totalorder %s19, 0
    %p186 = por %p184, %p185
    %s187 = ssub.s32 %s20, %s32
    %p188 = scmp.eq.s32.totalorder %s187, 0
    %s190 = sadd.s32 %s189, 1
    %s191 = scalar_select %p188, %s189, %s190
    %p194 = pneg %p188
    %p195 = scmp.eq.s32.totalorder %s13, 3
    %p196 = por %p194, %p195
    %p197 = scmp.ne.s32.totalorder %s189, %s192
    %p198 = scmp.eq.s32.totalorder %s13, 0
    %p199 = por %p197, %p198
    %p200 = scmp.ne.s32.totalorder %s189, %s192
    %p201 = scmp.eq.s32.totalorder %s18, 3
    %p202 = por %p200, %p201
    %p203 = scmp.ne.s32.totalorder %s192, %s193
    %p204 = scmp.eq.s32.totalorder %s18, 0
    %p205 = por %p203, %p204
    %p206 = scmp.ne.s32.totalorder %s192, %s193
    %p207 = scmp.eq.s32.totalorder %s19, 3
    %p208 = por %p206, %p207
    %p210 = scmp.ne.s32.totalorder %s193, %s209
    %p211 = scmp.eq.s32.totalorder %s19, 0
    %p212 = por %p210, %p211
    %p213 = scmp.le.s32.totalorder 1, %s13
    %p214 = scmp.lt.s32.totalorder %s13, 5
    %p215 = pnand %p213, %p214
    %p216 = pneg %p215
    // Predicated region
    $region9: #{multitask_forward.1} parent=5 // pred_check
      _
    $region10: #{multitask_forward.1} parent=5 // pred_check_branch
      %218 = sbr.rel (%p215) target = $region12
    $region11: #{multitask_forward.1} parent=5 // pred_region
      %s219 = ssub.s32 %s13, 1
      // Predicated region
      $region13: #{multitask_forward.1} parent=11 // pred_check
        %p220 = pneg %p74
      $region14: #{multitask_forward.1} parent=11 // pred_check_branch
        %222 = sbr.rel (%p220) target = $region16
      $region15: #{multitask_forward.1} parent=11 // pred_region
        _
      $region16: #{multitask_forward.1} parent=11 // pred_fallthru
        _
      // Predicated region
      $region17: #{multitask_forward.1} parent=11 // pred_check
        %p223 = pneg %p95
      $region18: #{multitask_forward.1} parent=11 // pred_check_branch
        %225 = sbr.rel (%p223) target = $region20
      $region19: #{multitask_forward.1} parent=11 // pred_region
        _
      $region20: #{multitask_forward.1} parent=11 // pred_fallthru
        _
      // Predicated region
      $region21: #{multitask_forward.1} parent=11 // pred_check
        %p226 = pneg %p116
      $region22: #{multitask_forward.1} parent=11 // pred_check_branch
        %228 = sbr.rel (%p226) target = $region24
      $region23: #{multitask_forward.1} parent=11 // pred_region
        _
      $region24: #{multitask_forward.1} parent=11 // pred_fallthru
        _
      // Predicated region
      $region25: #{multitask_forward.1} parent=11 // pred_check
        %p229 = pneg %p137
      $region26: #{multitask_forward.1} parent=11 // pred_check_branch
        %231 = sbr.rel (%p229) target = $region28
      $region27: #{multitask_forward.1} parent=11 // pred_region
        _
      $region28: #{multitask_forward.1} parent=11 // pred_fallthru
        _
      // Predicated region
      $region29: #{multitask_forward.1} parent=11 // pred_check
        %p232 = pneg %p158
      $region30: #{multitask_forward.1} parent=11 // pred_check_branch
        %234 = sbr.rel (%p232) target = $region32
      $region31: #{multitask_forward.1} parent=11 // pred_region
        _
      $region32: #{multitask_forward.1} parent=11 // pred_fallthru
        _
      // Predicated region
      $region33: #{multitask_forward.1} parent=11 // pred_check
        %p235 = pneg %p179
      $region34: #{multitask_forward.1} parent=11 // pred_check_branch
        %237 = sbr.rel (%p235) target = $region36
      $region35: #{multitask_forward.1} parent=11 // pred_region
        _
      $region36: #{multitask_forward.1} parent=11 // pred_fallthru
        _
    $region12: #{multitask_forward.1} parent=5 // pred_fallthru
      _
    %p238 = scmp.lt.s32.totalorder %s13, 4
    // Predicated region
    $region37: #{multitask_forward.1} parent=5 // pred_check
      %p239 = pneg %p238
    $region38: #{multitask_forward.1} parent=5 // pred_check_branch
      %241 = sbr.rel (%p239) target = $region40
    $region39: #{multitask_forward.1} parent=5 // pred_region
      // Predicated region
      $region41: #{multitask_forward.1} parent=39 // pred_check
        %p242 = pneg %p47
      $region42: #{multitask_forward.1} parent=39 // pred_check_branch
        %244 = sbr.rel (%p242) target = $region44
      $region43: #{multitask_forward.1} parent=39 // pred_region
        %s245 = smul.u32 16, %s21
        %p246 = scmp.lt.s32.totalorder %s20, 1
        %s247 = scalar_select %p246, %s20, 1
        %p248 = scmp.lt.s32.totalorder %s245, 31
        %s249 = scalar_select %p248, %s245, 31
        %s250 = smul.addr %s247, 32
        %s251 = sadd.s32 %s249, %s250
        %s252 = smul.addr %s251, 4
        %s253 = scalar_lea.vmem %s0, %s252
        %s254 = smul.u32 16, %s21
      $region44: #{multitask_forward.1} parent=39 // pred_fallthru
        _
    $region40: #{multitask_forward.1} parent=5 // pred_fallthru
      _
    %p255 = scmp.le.s32.totalorder 1, %s13
    %p256 = scmp.lt.s32.totalorder %s13, 5
    %p257 = pnand %p255, %p256
    %p258 = pneg %p257
    // Predicated region
    $region45: #{multitask_forward.1} parent=5 // pred_check
      _
    $region46: #{multitask_forward.1} parent=5 // pred_check_branch
      %260 = sbr.rel (%p257) target = $region48
    $region47: #{multitask_forward.1} parent=5 // pred_region
      %s261 = ssub.s32 %s13, 1
      %s262 = smul.u32 16, %s23
      %p263 = scmp.lt.s32.totalorder %s22, 1
      %s264 = scalar_select %p263, %s22, 1
      %p265 = scmp.lt.s32.totalorder %s262, 31
      %s266 = scalar_select %p265, %s262, 31
      %s267 = smul.addr %s264, 32
      %s268 = sadd.s32 %s266, %s267
      %s269 = smul.addr %s268, 4
      %s270 = scalar_lea.vmem %s0, %s269
      %p271 = pneg %p53
      %p272 = pneg %p50
      %p273 = pneg %p74
      %p274 = pneg %p71
      %p275 = pneg %p95
      %p276 = pneg %p92
      %p277 = pneg %p116
      %p278 = pneg %p113
      %p279 = pneg %p137
      %p280 = pneg %p134
      %p281 = pneg %p158
      %p282 = pneg %p155
      %p283 = pneg %p179
      %p284 = pneg %p176
      %p285 = pneg %p205
      %p286 = pneg %p202
      %p287 = scmp.lt.s32.totalorder %s22, 1
      %s288 = scalar_select %p287, %s22, 1
      %s289 = scalar_lea.vmem %s7, %s288
      %s290 = smul.u32 16, %s23
      %p291 = scmp.lt.s32.totalorder %s22, 1
      %s292 = scalar_select %p291, %s22, 1
      %p293 = scmp.lt.s32.totalorder %s290, 31
      %s294 = scalar_select %p293, %s290, 31
      %s295 = smul.addr %s292, 32
      %s296 = sadd.s32 %s294, %s295
      %s297 = smul.addr %s296, 4
      %s298 = scalar_lea.vmem %s0, %s297
      %s299 = smul.u32 16, %s23
      %p300 = scmp.lt.s32.totalorder %s22, 1
      %s301 = scalar_select %p300, %s22, 1
      %s302 = scalar_lea.vmem %s7, %s301
      %p305 = scmp.eq.s32.totalorder %s23, 0
      // Predicated region
      $region49: #{multitask_forward.1} parent=47 // pred_check
        %p306 = pneg %p305
      $region50: #{multitask_forward.1} parent=47 // pred_check_branch
        %308 = sbr.rel (%p306) target = $region52
      $region51: #{multitask_forward.1} parent=47 // pred_region
        %309 = vst [vmem:[#allocation2] sm:$0xff] 0.0
        %v310 = vlaneseq
        %vm311 = vcmp.ge.s32.totalorder %v310, 0
        %vm312 = vcmp.lt.s32.totalorder %v310, 256
        %vm313 = vmand %vm311, %vm312
        %314 = vst.msk [vmem:[#allocation2 + $0x8] sm:$0x3] %vm313, 0.0
      $region52: #{multitask_forward.1} parent=47 // pred_fallthru
        _
      %v315 = vld [vmem:[%s298] sm:$0xf]
      %v316 = vld [vmem:[%s298 + $0x4] sm:$0xf]
      %v317 = vld [vmem:[%s298 + $0x8] sm:$0xf]
      %v318 = vld [vmem:[%s298 + $0xc] sm:$0xf]
      %v319 = vld [vmem:[%s298 + $0x10] sm:$0xf]
      %v320 = vld [vmem:[%s298 + $0x14] sm:$0xf]
      %v321 = vld [vmem:[%s298 + $0x18] sm:$0xf]
      %v322 = vld [vmem:[%s298 + $0x1c] sm:$0xf]
      %v323 = vld [vmem:[%s298 + $0x20] sm:$0xf]
      %v324 = vld [vmem:[%s298 + $0x24] sm:$0xf]
      %v325 = vld [vmem:[%s298 + $0x28] sm:$0xf]
      %v326 = vld [vmem:[%s298 + $0x2c] sm:$0xf]
      %v327 = vld [vmem:[%s298 + $0x30] sm:$0xf]
      %v328 = vld [vmem:[%s298 + $0x34] sm:$0xf]
      %v329 = vld [vmem:[%s298 + $0x38] sm:$0xf]
      %v330 = vld [vmem:[%s298 + $0x3c] sm:$0xf]
      %v331 = vld [vmem:[%s1] sm:$0xf]
      %v332 = vld [vmem:[%s1 + $0x4] sm:$0xf]
      %v333 = vld [vmem:[%s1 + $0x8] sm:$0xf]
      %v334 = vld [vmem:[%s1 + $0xc] sm:$0xf]
      %v335 = vld [vmem:[%s2] sm:$0x1]
      %v337 = vlaneseq
      %v338 = vshrl.u32 %v337, 7
      %v339 = vsub.s32 0, %v338
      %v340 = vrot.slane %v335, %v339
      %v358 = vunpack.c.l.b16 %v315
      %v359 = vunpack.c.l.b16 %v316
      %v360 = vunpack.c.l.b16 %v317
      %v361 = vunpack.c.l.b16 %v318
      %v362 = vunpack.c.l.b16 %v319
      %v363 = vunpack.c.l.b16 %v320
      %v364 = vunpack.c.l.b16 %v321
      %v365 = vunpack.c.l.b16 %v322
      %v366 = vunpack.c.l.b16 %v323
      %v367 = vunpack.c.l.b16 %v324
      %v368 = vunpack.c.l.b16 %v325
      %v369 = vunpack.c.l.b16 %v326
      %v370 = vunpack.c.l.b16 %v327
      %v371 = vunpack.c.l.b16 %v328
      %v372 = vunpack.c.l.b16 %v329
      %v373 = vunpack.c.l.b16 %v330
      %v374 = vpack.c.b16 %v359, %v358
      %v375 = vpack.c.b16 %v361, %v360
      %v376 = vpack.c.b16 %v363, %v362
      %v377 = vpack.c.b16 %v365, %v364
      %v378 = vpack.c.b16 %v367, %v366
      %v379 = vpack.c.b16 %v369, %v368
      %v380 = vpack.c.b16 %v371, %v370
      %v381 = vpack.c.b16 %v373, %v372
      %v386 = vunpack.c.l.b16 %v331
      %v387 = vunpack.c.l.b16 %v332
      %v388 = vunpack.c.l.b16 %v333
      %v389 = vunpack.c.l.b16 %v334
      %v390 = vpack.c.b16 %v387, %v386
      %v391 = vpack.c.b16 %v389, %v388
      %vm394 = vcmask 261120
      %v396 = vsel %vm394, %v374, 0
      %v399 = vsel %vm394, %v375, 0
      %v402 = vsel %vm394, %v376, 0
      %v405 = vsel %vm394, %v377, 0
      %v408 = vsel %vm394, %v378, 0
      %v411 = vsel %vm394, %v379, 0
      %v414 = vsel %vm394, %v380, 0
      %v417 = vsel %vm394, %v381, 0
      %419 = vmatprep.subr.bf16.mxu0 0
      %420 = vmatpush1.bf16.msra.mxu0 %v390
      %421 = vmatprep.subr.bf16.mxu0 0
      %422 = vmatpush1.bf16.msra.mxu0 %v391
      %423 = vmatprep.subr.bf16.mxu0 0
      %424 = vmatpush1.bf16.msra.mxu0 0
      %425 = vmatprep.subr.bf16.mxu0 0
      %426 = vmatpush1.bf16.msra.mxu0 0
      %427 = vmatprep.subr.bf16.mxu0 0
      %428 = vmatpush1.bf16.msra.mxu0 0
      %429 = vmatprep.subr.bf16.mxu0 0
      %430 = vmatpush1.bf16.msra.mxu0 0
      %431 = vmatprep.subr.bf16.mxu0 0
      %432 = vmatpush1.bf16.msra.mxu0 0
      %433 = vmatprep.subr.bf16.mxu0 0
      %434 = vmatpush1.bf16.msra.mxu0 0
      %435 = vmatprep.subr.bf16.mxu0 0
      %436 = vmatpush1.bf16.msra.mxu0 0
      %437 = vmatprep.subr.bf16.mxu0 0
      %438 = vmatpush1.bf16.msra.mxu0 0
      %439 = vmatprep.subr.bf16.mxu0 0
      %440 = vmatpush1.bf16.msra.mxu0 0
      %441 = vmatprep.subr.bf16.mxu0 0
      %442 = vmatpush1.bf16.msra.mxu0 0
      %443 = vmatprep.subr.bf16.mxu0 0
      %444 = vmatpush1.bf16.msra.mxu0 0
      %445 = vmatprep.subr.bf16.mxu0 0
      %446 = vmatpush1.bf16.msra.mxu0 0
      %447 = vmatprep.subr.bf16.mxu0 0
      %448 = vmatpush1.bf16.msra.mxu0 0
      %449 = vmatprep.subr.bf16.mxu0 0
      %450 = vmatpush1.bf16.msra.mxu0 0
      %451 = vmatprep.mubr.bf16.mxu0 0
      %452 = vmatmul.mubr.bf16.gmra.mrb[0].mxu0 %v396
      %v453 = vpop.f32.mrb[0].mxu0
      %v454 = vadd.f32 %v340, %v453
      %v455 = vpop.f32.mrb[0].mxu0
      %v456 = vpop.f32.mrb[0].mxu0
      %v457 = vadd.f32 %v340, %v456
      %v458 = vpop.f32.mrb[0].mxu0
      %459 = vmatprep.mubr.bf16.mxu0 0
      %460 = vmatmul.mubr.bf16.gmra.mrb[0].mxu0 %v399
      %v461 = vpop.f32.mrb[0].mxu0
      %v462 = vadd.f32 %v340, %v461
      %v463 = vpop.f32.mrb[0].mxu0
      %v464 = vpop.f32.mrb[0].mxu0
      %v465 = vadd.f32 %v340, %v464
      %v466 = vpop.f32.mrb[0].mxu0
      %467 = vmatprep.mubr.bf16.mxu0 0
      %468 = vmatmul.mubr.bf16.gmra.mrb[0].mxu0 %v402
      %v469 = vpop.f32.mrb[0].mxu0
      %v470 = vadd.f32 %v340, %v469
      %v471 = vpop.f32.mrb[0].mxu0
      %v472 = vpop.f32.mrb[0].mxu0
      %v473 = vadd.f32 %v340, %v472
      %v474 = vpop.f32.mrb[0].mxu0
      %475 = vmatprep.mubr.bf16.mxu0 0
      %476 = vmatmul.mubr.bf16.gmra.mrb[0].mxu0 %v405
      %v477 = vpop.f32.mrb[0].mxu0
      %v478 = vadd.f32 %v340, %v477
      %v479 = vpop.f32.mrb[0].mxu0
      %v480 = vpop.f32.mrb[0].mxu0
      %v481 = vadd.f32 %v340, %v480
      %v482 = vpop.f32.mrb[0].mxu0
      %483 = vmatprep.mubr.bf16.mxu0 0
      %484 = vmatmul.mubr.bf16.gmra.mrb[0].mxu0 %v408
      %v485 = vpop.f32.mrb[0].mxu0
      %v486 = vadd.f32 %v340, %v485
      %v487 = vpop.f32.mrb[0].mxu0
      %v488 = vpop.f32.mrb[0].mxu0
      %v489 = vadd.f32 %v340, %v488
      %v490 = vpop.f32.mrb[0].mxu0
      %491 = vmatprep.mubr.bf16.mxu0 0
      %492 = vmatmul.mubr.bf16.gmra.mrb[0].mxu0 %v411
      %v493 = vpop.f32.mrb[0].mxu0
      %v494 = vadd.f32 %v340, %v493
      %v495 = vpop.f32.mrb[0].mxu0
      %v496 = vpop.f32.mrb[0].mxu0
      %v497 = vadd.f32 %v340, %v496
      %v498 = vpop.f32.mrb[0].mxu0
      %499 = vmatprep.mubr.bf16.mxu0 0
      %500 = vmatmul.mubr.bf16.gmra.mrb[0].mxu0 %v414
      %v501 = vpop.f32.mrb[0].mxu0
      %v502 = vadd.f32 %v340, %v501
      %v503 = vpop.f32.mrb[0].mxu0
      %v504 = vpop.f32.mrb[0].mxu0
      %v505 = vadd.f32 %v340, %v504
      %v506 = vpop.f32.mrb[0].mxu0
      %507 = vmatprep.mubr.bf16.mxu0 0
      %508 = vmatmul.mubr.bf16.gmra.mrb[0].mxu0 %v417
      %v509 = vpop.f32.mrb[0].mxu0
      %v510 = vadd.f32 %v340, %v509
      %v511 = vpop.f32.mrb[0].mxu0
      %v512 = vpop.f32.mrb[0].mxu0
      %v513 = vadd.f32 %v340, %v512
      %v514 = vpop.f32.mrb[0].mxu0
      %515 = vdwg.mxu0
      %v516 = vxor.u32 %v454, 2147483648
      %v517 = vxor.u32 %v457, 2147483648
      %v518 = vxor.u32 %v462, 2147483648
      %v519 = vxor.u32 %v465, 2147483648
      %v520 = vxor.u32 %v470, 2147483648
      %v521 = vxor.u32 %v473, 2147483648
      %v522 = vxor.u32 %v478, 2147483648
      %v523 = vxor.u32 %v481, 2147483648
      %v524 = vxor.u32 %v486, 2147483648
      %v525 = vxor.u32 %v489, 2147483648
      %v526 = vxor.u32 %v494, 2147483648
      %v527 = vxor.u32 %v497, 2147483648
      %v528 = vxor.u32 %v502, 2147483648
      %v529 = vxor.u32 %v505, 2147483648
      %v530 = vxor.u32 %v510, 2147483648
      %v531 = vxor.u32 %v513, 2147483648
      %v532 = vmul.f32 %v516, 1.442695
      %v533 = vpow.pop %v532
      %v534 = vmul.f32 %v517, 1.442695
      %v535 = vpow.pop %v534
      %v536 = vmul.f32 %v518, 1.442695
      %v537 = vpow.pop %v536
      %v538 = vmul.f32 %v519, 1.442695
      %v539 = vpow.pop %v538
      %v540 = vmul.f32 %v520, 1.442695
      %v541 = vpow.pop %v540
      %v542 = vmul.f32 %v521, 1.442695
      %v543 = vpow.pop %v542
      %v544 = vmul.f32 %v522, 1.442695
      %v545 = vpow.pop %v544
      %v546 = vmul.f32 %v523, 1.442695
      %v547 = vpow.pop %v546
      %v548 = vmul.f32 %v524, 1.442695
      %v549 = vpow.pop %v548
      %v550 = vmul.f32 %v525, 1.442695
      %v551 = vpow.pop %v550
      %v552 = vmul.f32 %v526, 1.442695
      %v553 = vpow.pop %v552
      %v554 = vmul.f32 %v527, 1.442695
      %v555 = vpow.pop %v554
      %v556 = vmul.f32 %v528, 1.442695
      %v557 = vpow.pop %v556
      %v558 = vmul.f32 %v529, 1.442695
      %v559 = vpow.pop %v558
      %v560 = vmul.f32 %v530, 1.442695
      %v561 = vpow.pop %v560
      %v562 = vmul.f32 %v531, 1.442695
      %v563 = vpow.pop %v562
      %v564 = vadd.f32 %v533, 1.0
      %v565 = vadd.f32 %v535, 1.0
      %v566 = vadd.f32 %v537, 1.0
      %v567 = vadd.f32 %v539, 1.0
      %v568 = vadd.f32 %v541, 1.0
      %v569 = vadd.f32 %v543, 1.0
      %v570 = vadd.f32 %v545, 1.0
      %v571 = vadd.f32 %v547, 1.0
      %v572 = vadd.f32 %v549, 1.0
      %v573 = vadd.f32 %v551, 1.0
      %v574 = vadd.f32 %v553, 1.0
      %v575 = vadd.f32 %v555, 1.0
      %v576 = vadd.f32 %v557, 1.0
      %v577 = vadd.f32 %v559, 1.0
      %v578 = vadd.f32 %v561, 1.0
      %v579 = vadd.f32 %v563, 1.0
      %v580 = vrcp.pop %v564
      %v581 = vmul.f32 1.0, %v580
      %v582 = vrcp.pop %v565
      %v583 = vmul.f32 1.0, %v582
      %v584 = vrcp.pop %v566
      %v585 = vmul.f32 1.0, %v584
      %v586 = vrcp.pop %v567
      %v587 = vmul.f32 1.0, %v586
      %v588 = vrcp.pop %v568
      %v589 = vmul.f32 1.0, %v588
      %v590 = vrcp.pop %v569
      %v591 = vmul.f32 1.0, %v590
      %v592 = vrcp.pop %v570
      %v593 = vmul.f32 1.0, %v592
      %v594 = vrcp.pop %v571
      %v595 = vmul.f32 1.0, %v594
      %v596 = vrcp.pop %v572
      %v597 = vmul.f32 1.0, %v596
      %v598 = vrcp.pop %v573
      %v599 = vmul.f32 1.0, %v598
      %v600 = vrcp.pop %v574
      %v601 = vmul.f32 1.0, %v600
      %v602 = vrcp.pop %v575
      %v603 = vmul.f32 1.0, %v602
      %v604 = vrcp.pop %v576
      %v605 = vmul.f32 1.0, %v604
      %v606 = vrcp.pop %v577
      %v607 = vmul.f32 1.0, %v606
      %v608 = vrcp.pop %v578
      %v609 = vmul.f32 1.0, %v608
      %v610 = vrcp.pop %v579
      %v611 = vmul.f32 1.0, %v610
      %v612 = vmul.f32 %v454, %v581
      %v613 = vmul.f32 %v457, %v583
      %v614 = vmul.f32 %v462, %v585
      %v615 = vmul.f32 %v465, %v587
      %v616 = vmul.f32 %v470, %v589
      %v617 = vmul.f32 %v473, %v591
      %v618 = vmul.f32 %v478, %v593
      %v619 = vmul.f32 %v481, %v595
      %v620 = vmul.f32 %v486, %v597
      %v621 = vmul.f32 %v489, %v599
      %v622 = vmul.f32 %v494, %v601
      %v623 = vmul.f32 %v497, %v603
      %v624 = vmul.f32 %v502, %v605
      %v625 = vmul.f32 %v505, %v607
      %v626 = vmul.f32 %v510, %v609
      %v627 = vmul.f32 %v513, %v611
      %v628 = vpack.c.bf16 %v613, %v612
      %v629 = vpack.c.bf16 %v615, %v614
      %v630 = vpack.c.bf16 %v617, %v616
      %v631 = vpack.c.bf16 %v619, %v618
      %v632 = vpack.c.bf16 %v621, %v620
      %v633 = vpack.c.bf16 %v623, %v622
      %v634 = vpack.c.bf16 %v625, %v624
      %v635 = vpack.c.bf16 %v627, %v626
      %v636 = vld [vmem:[%s3] sm:$0xff]
      %v637 = vld [vmem:[%s3 + $0x8] sm:$0xff]
      %v638 = vld [vmem:[%s3 + $0x10] sm:$0xff]
      %v639 = vld [vmem:[%s3 + $0x18] sm:$0xff]
      %v640 = vld [vmem:[%s3 + $0x20] sm:$0xff]
      %v641 = vld [vmem:[%s3 + $0x28] sm:$0xff]
      %v642 = vld [vmem:[%s3 + $0x30] sm:$0xff]
      %v643 = vld [vmem:[%s3 + $0x38] sm:$0xff]
      %v644 = vld [vmem:[%s3 + $0x40] sm:$0xff]
      %v645 = vld [vmem:[%s3 + $0x48] sm:$0xff]
      %v646 = vld [vmem:[%s3 + $0x50] sm:$0xff]
      %v647 = vld [vmem:[%s3 + $0x58] sm:$0xff]
      %v648 = vld [vmem:[%s3 + $0x60] sm:$0xff]
      %v649 = vld [vmem:[%s3 + $0x68] sm:$0xff]
      %v650 = vld [vmem:[%s3 + $0x70] sm:$0xff]
      %v651 = vld [vmem:[%s3 + $0x78] sm:$0xff]
      %v652 = vld [vmem:[%s3 + $0x80] sm:$0xff]
      %v653 = vld [vmem:[%s3 + $0x88] sm:$0xff]
      %v654 = vld [vmem:[%s3 + $0x90] sm:$0xff]
      %v655 = vld [vmem:[%s3 + $0x98] sm:$0xff]
      %v676 = vunpack.c.l.b16 %v636
      %v677 = vunpack.c.h.b16 %v636
      %v678 = vunpack.c.l.b16 %v637
      %v679 = vunpack.c.h.b16 %v637
      %v680 = vunpack.c.l.b16 %v638
      %v681 = vunpack.c.h.b16 %v638
      %v682 = vunpack.c.l.b16 %v639
      %v683 = vunpack.c.h.b16 %v639
      %v684 = vunpack.c.l.b16 %v640
      %v685 = vunpack.c.h.b16 %v640
      %v686 = vunpack.c.l.b16 %v641
      %v687 = vunpack.c.h.b16 %v641
      %v688 = vunpack.c.l.b16 %v642
      %v689 = vunpack.c.h.b16 %v642
      %v690 = vunpack.c.l.b16 %v643
      %v691 = vunpack.c.h.b16 %v643
      %v692 = vunpack.c.l.b16 %v644
      %v693 = vunpack.c.h.b16 %v644
      %v694 = vunpack.c.l.b16 %v645
      %v695 = vunpack.c.h.b16 %v645
      %v696 = vunpack.c.l.b16 %v646
      %v697 = vunpack.c.h.b16 %v646
      %v698 = vunpack.c.l.b16 %v647
      %v699 = vunpack.c.h.b16 %v647
      %v700 = vunpack.c.l.b16 %v648
      %v701 = vunpack.c.h.b16 %v648
      %v702 = vunpack.c.l.b16 %v649
      %v703 = vunpack.c.h.b16 %v649
      %v704 = vunpack.c.l.b16 %v650
      %v705 = vunpack.c.h.b16 %v650
      %v706 = vunpack.c.l.b16 %v651
      %v707 = vunpack.c.h.b16 %v651
      %v708 = vunpack.c.l.b16 %v652
      %v709 = vunpack.c.h.b16 %v652
      %v710 = vunpack.c.l.b16 %v653
      %v711 = vunpack.c.h.b16 %v653
      %v712 = vunpack.c.l.b16 %v654
      %v713 = vunpack.c.h.b16 %v654
      %v714 = vunpack.c.l.b16 %v655
      %v715 = vunpack.c.h.b16 %v655
      %v716 = vpack.c.b16 %v686, %v676
      %v717 = vpack.c.b16 %v687, %v677
      %v718 = vpack.c.b16 %v688, %v678
      %v719 = vpack.c.b16 %v689, %v679
      %v720 = vpack.c.b16 %v690, %v680
      %v721 = vpack.c.b16 %v691, %v681
      %v722 = vpack.c.b16 %v692, %v682
      %v723 = vpack.c.b16 %v693, %v683
      %v724 = vpack.c.b16 %v694, %v684
      %v725 = vpack.c.b16 %v695, %v685
      %v726 = vpack.c.b16 %v706, %v696
      %v727 = vpack.c.b16 %v707, %v697
      %v728 = vpack.c.b16 %v708, %v698
      %v729 = vpack.c.b16 %v709, %v699
      %v730 = vpack.c.b16 %v710, %v700
      %v731 = vpack.c.b16 %v711, %v701
      %v732 = vpack.c.b16 %v712, %v702
      %v733 = vpack.c.b16 %v713, %v703
      %v734 = vpack.c.b16 %v714, %v704
      %v735 = vpack.c.b16 %v715, %v705
      %v757 = vsel %vm394, %v628, 0
      %v760 = vsel %vm394, %v629, 0
      %v763 = vsel %vm394, %v630, 0
      %v766 = vsel %vm394, %v631, 0
      %v769 = vsel %vm394, %v632, 0
      %v772 = vsel %vm394, %v633, 0
      %v775 = vsel %vm394, %v634, 0
      %v778 = vsel %vm394, %v635, 0
      %780 = vmatprep.subr.bf16.mxu0 %v717
      %781 = vmatpush1.bf16.msra.mxu0 %v716
      %782 = vmatprep.subr.bf16.mxu0 %v727
      %783 = vmatpush1.bf16.msra.mxu0 %v726
      %784 = vmatprep.subr.bf16.mxu0 0
      %785 = vmatpush1.bf16.msra.mxu0 0
      %786 = vmatprep.subr.bf16.mxu0 0
      %787 = vmatpush1.bf16.msra.mxu0 0
      %788 = vmatprep.subr.bf16.mxu0 0
      %789 = vmatpush1.bf16.msra.mxu0 0
      %790 = vmatprep.subr.bf16.mxu0 0
      %791 = vmatpush1.bf16.msra.mxu0 0
      %792 = vmatprep.subr.bf16.mxu0 0
      %793 = vmatpush1.bf16.msra.mxu0 0
      %794 = vmatprep.subr.bf16.mxu0 0
      %795 = vmatpush1.bf16.msra.mxu0 0
      %796 = vmatprep.subr.bf16.mxu0 0
      %797 = vmatpush1.bf16.msra.mxu0 0
      %798 = vmatprep.subr.bf16.mxu0 0
      %799 = vmatpush1.bf16.msra.mxu0 0
      %800 = vmatprep.subr.bf16.mxu0 0
      %801 = vmatpush1.bf16.msra.mxu0 0
      %802 = vmatprep.subr.bf16.mxu0 0
      %803 = vmatpush1.bf16.msra.mxu0 0
      %804 = vmatprep.subr.bf16.mxu0 0
      %805 = vmatpush1.bf16.msra.mxu0 0
      %806 = vmatprep.subr.bf16.mxu0 0
      %807 = vmatpush1.bf16.msra.mxu0 0
      %808 = vmatprep.subr.bf16.mxu0 0
      %809 = vmatpush1.bf16.msra.mxu0 0
      %810 = vmatprep.subr.bf16.mxu0 0
      %811 = vmatpush1.bf16.msra.mxu0 0
      %812 = vmatprep.mubr.bf16.mxu0 0
      %813 = vmatmul.mubr.bf16.gmra.mrb[0].mxu0 %v757
      %v814 = vpop.f32.mrb[0].mxu0
      %v815 = vadd.f32 0.0, %v814
      %v816 = vpop.f32.mrb[0].mxu0
      %v817 = vadd.f32 0.0, %v816
      %v818 = vpop.f32.mrb[0].mxu0
      %v819 = vadd.f32 0.0, %v818
      %v820 = vpop.f32.mrb[0].mxu0
      %v821 = vadd.f32 0.0, %v820
      %822 = vmatprep.mubr.bf16.mxu0 0
      %823 = vmatmul.mubr.bf16.gmra.mrb[0].mxu0 %v760
      %v824 = vpop.f32.mrb[0].mxu0
      %v825 = vadd.f32 0.0, %v824
      %v826 = vpop.f32.mrb[0].mxu0
      %v827 = vadd.f32 0.0, %v826
      %v828 = vpop.f32.mrb[0].mxu0
      %v829 = vadd.f32 0.0, %v828
      %v830 = vpop.f32.mrb[0].mxu0
      %v831 = vadd.f32 0.0, %v830
      %832 = vmatprep.mubr.bf16.mxu0 0
      %833 = vmatmul.mubr.bf16.gmra.mrb[0].mxu0 %v763
      %v834 = vpop.f32.mrb[0].mxu0
      %v835 = vadd.f32 0.0, %v834
      %v836 = vpop.f32.mrb[0].mxu0
      %v837 = vadd.f32 0.0, %v836
      %v838 = vpop.f32.mrb[0].mxu0
      %v839 = vadd.f32 0.0, %v838
      %v840 = vpop.f32.mrb[0].mxu0
      %v841 = vadd.f32 0.0, %v840
      %842 = vmatprep.mubr.bf16.mxu0 0
      %843 = vmatmul.mubr.bf16.gmra.mrb[0].mxu0 %v766
      %v844 = vpop.f32.mrb[0].mxu0
      %v845 = vadd.f32 0.0, %v844
      %v846 = vpop.f32.mrb[0].mxu0
      %v847 = vadd.f32 0.0, %v846
      %v848 = vpop.f32.mrb[0].mxu0
      %v849 = vadd.f32 0.0, %v848
      %v850 = vpop.f32.mrb[0].mxu0
      %v851 = vadd.f32 0.0, %v850
      %852 = vmatprep.mubr.bf16.mxu0 0
      %853 = vmatmul.mubr.bf16.gmra.mrb[0].mxu0 %v769
      %v854 = vpop.f32.mrb[0].mxu0
      %v855 = vadd.f32 0.0, %v854
      %v856 = vpop.f32.mrb[0].mxu0
      %v857 = vadd.f32 0.0, %v856
      %v858 = vpop.f32.mrb[0].mxu0
      %v859 = vadd.f32 0.0, %v858
      %v860 = vpop.f32.mrb[0].mxu0
      %v861 = vadd.f32 0.0, %v860
      %862 = vmatprep.mubr.bf16.mxu0 0
      %863 = vmatmul.mubr.bf16.gmra.mrb[0].mxu0 %v772
      %v864 = vpop.f32.mrb[0].mxu0
      %v865 = vadd.f32 0.0, %v864
      %v866 = vpop.f32.mrb[0].mxu0
      %v867 = vadd.f32 0.0, %v866
      %v868 = vpop.f32.mrb[0].mxu0
      %v869 = vadd.f32 0.0, %v868
      %v870 = vpop.f32.mrb[0].mxu0
      %v871 = vadd.f32 0.0, %v870
      %872 = vmatprep.mubr.bf16.mxu0 0
      %873 = vmatmul.mubr.bf16.gmra.mrb[0].mxu0 %v775
      %v874 = vpop.f32.mrb[0].mxu0
      %v875 = vadd.f32 0.0, %v874
      %v876 = vpop.f32.mrb[0].mxu0
      %v877 = vadd.f32 0.0, %v876
      %v878 = vpop.f32.mrb[0].mxu0
      %v879 = vadd.f32 0.0, %v878
      %v880 = vpop.f32.mrb[0].mxu0
      %v881 = vadd.f32 0.0, %v880
      %882 = vmatprep.mubr.bf16.mxu0 0
      %883 = vmatmul.mubr.bf16.gmra.mrb[0].mxu0 %v778
      %v884 = vpop.f32.mrb[0].mxu0
      %v885 = vadd.f32 0.0, %v884
      %v886 = vpop.f32.mrb[0].mxu0
      %v887 = vadd.f32 0.0, %v886
      %v888 = vpop.f32.mrb[0].mxu0
      %v889 = vadd.f32 0.0, %v888
      %v890 = vpop.f32.mrb[0].mxu0
      %v891 = vadd.f32 0.0, %v890
      %892 = vdwg.mxu0
      %893 = vmatprep.subr.bf16.mxu0 %v719
      %894 = vmatpush1.bf16.msra.mxu0 %v718
      %895 = vmatprep.subr.bf16.mxu0 %v729
      %896 = vmatpush1.bf16.msra.mxu0 %v728
      %897 = vmatprep.subr.bf16.mxu0 0
      %898 = vmatpush1.bf16.msra.mxu0 0
      %899 = vmatprep.subr.bf16.mxu0 0
      %900 = vmatpush1.bf16.msra.mxu0 0
      %901 = vmatprep.subr.bf16.mxu0 0
      %902 = vmatpush1.bf16.msra.mxu0 0
      %903 = vmatprep.subr.bf16.mxu0 0
      %904 = vmatpush1.bf16.msra.mxu0 0
      %905 = vmatprep.subr.bf16.mxu0 0
      %906 = vmatpush1.bf16.msra.mxu0 0
      %907 = vmatprep.subr.bf16.mxu0 0
      %908 = vmatpush1.bf16.msra.mxu0 0
      %909 = vmatprep.subr.bf16.mxu0 0
      %910 = vmatpush1.bf16.msra.mxu0 0
      %911 = vmatprep.subr.bf16.mxu0 0
      %912 = vmatpush1.bf16.msra.mxu0 0
      %913 = vmatprep.subr.bf16.mxu0 0
      %914 = vmatpush1.bf16.msra.mxu0 0
      %915 = vmatprep.subr.bf16.mxu0 0
      %916 = vmatpush1.bf16.msra.mxu0 0
      %917 = vmatprep.subr.bf16.mxu0 0
      %918 = vmatpush1.bf16.msra.mxu0 0
      %919 = vmatprep.subr.bf16.mxu0 0
      %920 = vmatpush1.bf16.msra.mxu0 0
      %921 = vmatprep.subr.bf16.mxu0 0
      %922 = vmatpush1.bf16.msra.mxu0 0
      %923 = vmatprep.subr.bf16.mxu0 0
      %924 = vmatpush1.bf16.msra.mxu0 0
      %925 = vmatprep.mubr.bf16.mxu0 0
      %926 = vmatmul.mubr.bf16.gmra.mrb[0].mxu0 %v757
      %v927 = vpop.f32.mrb[0].mxu0
      %v928 = vadd.f32 0.0, %v927
      %v929 = vpop.f32.mrb[0].mxu0
      %v930 = vadd.f32 0.0, %v929
      %v931 = vpop.f32.mrb[0].mxu0
      %v932 = vadd.f32 0.0, %v931
      %v933 = vpop.f32.mrb[0].mxu0
      %v934 = vadd.f32 0.0, %v933
      %935 = vmatprep.mubr.bf16.mxu0 0
      %936 = vmatmul.mubr.bf16.gmra.mrb[0].mxu0 %v760
      %v937 = vpop.f32.mrb[0].mxu0
      %v938 = vadd.f32 0.0, %v937
      %v939 = vpop.f32.mrb[0].mxu0
      %v940 = vadd.f32 0.0, %v939
      %v941 = vpop.f32.mrb[0].mxu0
      %v942 = vadd.f32 0.0, %v941
      %v943 = vpop.f32.mrb[0].mxu0
      %v944 = vadd.f32 0.0, %v943
      %945 = vmatprep.mubr.bf16.mxu0 0
      %946 = vmatmul.mubr.bf16.gmra.mrb[0].mxu0 %v763
      %v947 = vpop.f32.mrb[0].mxu0
      %v948 = vadd.f32 0.0, %v947
      %v949 = vpop.f32.mrb[0].mxu0
      %v950 = vadd.f32 0.0, %v949
      %v951 = vpop.f32.mrb[0].mxu0
      %v952 = vadd.f32 0.0, %v951
      %v953 = vpop.f32.mrb[0].mxu0
      %v954 = vadd.f32 0.0, %v953
      %955 = vmatprep.mubr.bf16.mxu0 0
      %956 = vmatmul.mubr.bf16.gmra.mrb[0].mxu0 %v766
      %v957 = vpop.f32.mrb[0].mxu0
      %v958 = vadd.f32 0.0, %v957
      %v959 = vpop.f32.mrb[0].mxu0
      %v960 = vadd.f32 0.0, %v959
      %v961 = vpop.f32.mrb[0].mxu0
      %v962 = vadd.f32 0.0, %v961
      %v963 = vpop.f32.mrb[0].mxu0
      %v964 = vadd.f32 0.0, %v963
      %965 = vmatprep.mubr.bf16.mxu0 0
      %966 = vmatmul.mubr.bf16.gmra.mrb[0].mxu0 %v769
      %v967 = vpop.f32.mrb[0].mxu0
      %v968 = vadd.f32 0.0, %v967
      %v969 = vpop.f32.mrb[0].mxu0
      %v970 = vadd.f32 0.0, %v969
      %v971 = vpop.f32.mrb[0].mxu0
      %v972 = vadd.f32 0.0, %v971
      %v973 = vpop.f32.mrb[0].mxu0
      %v974 = vadd.f32 0.0, %v973
      %975 = vmatprep.mubr.bf16.mxu0 0
      %976 = vmatmul.mubr.bf16.gmra.mrb[0].mxu0 %v772
      %v977 = vpop.f32.mrb[0].mxu0
      %v978 = vadd.f32 0.0, %v977
      %v979 = vpop.f32.mrb[0].mxu0
      %v980 = vadd.f32 0.0, %v979
      %v981 = vpop.f32.mrb[0].mxu0
      %v982 = vadd.f32 0.0, %v981
      %v983 = vpop.f32.mrb[0].mxu0
      %v984 = vadd.f32 0.0, %v983
      %985 = vmatprep.mubr.bf16.mxu0 0
      %986 = vmatmul.mubr.bf16.gmra.mrb[0].mxu0 %v775
      %v987 = vpop.f32.mrb[0].mxu0
      %v988 = vadd.f32 0.0, %v987
      %v989 = vpop.f32.mrb[0].mxu0
      %v990 = vadd.f32 0.0, %v989
      %v991 = vpop.f32.mrb[0].mxu0
      %v992 = vadd.f32 0.0, %v991
      %v993 = vpop.f32.mrb[0].mxu0
      %v994 = vadd.f32 0.0, %v993
      %995 = vmatprep.mubr.bf16.mxu0 0
      %996 = vmatmul.mubr.bf16.gmra.mrb[0].mxu0 %v778
      %v997 = vpop.f32.mrb[0].mxu0
      %v998 = vadd.f32 0.0, %v997
      %v999 = vpop.f32.mrb[0].mxu0
      %v1000 = vadd.f32 0.0, %v999
      %v1001 = vpop.f32.mrb[0].mxu0
      %v1002 = vadd.f32 0.0, %v1001
      %v1003 = vpop.f32.mrb[0].mxu0
      %v1004 = vadd.f32 0.0, %v1003
      %1005 = vdwg.mxu0
      %1006 = vmatprep.subr.bf16.mxu0 %v721
      %1007 = vmatpush1.bf16.msra.mxu0 %v720
      %1008 = vmatprep.subr.bf16.mxu0 %v731
      %1009 = vmatpush1.bf16.msra.mxu0 %v730
      %1010 = vmatprep.subr.bf16.mxu0 0
      %1011 = vmatpush1.bf16.msra.mxu0 0
      %1012 = vmatprep.subr.bf16.mxu0 0
      %1013 = vmatpush1.bf16.msra.mxu0 0
      %1014 = vmatprep.subr.bf16.mxu0 0
      %1015 = vmatpush1.bf16.msra.mxu0 0
      %1016 = vmatprep.subr.bf16.mxu0 0
      %1017 = vmatpush1.bf16.msra.mxu0 0
      %1018 = vmatprep.subr.bf16.mxu0 0
      %1019 = vmatpush1.bf16.msra.mxu0 0
      %1020 = vmatprep.subr.bf16.mxu0 0
      %1021 = vmatpush1.bf16.msra.mxu0 0
      %1022 = vmatprep.subr.bf16.mxu0 0
      %1023 = vmatpush1.bf16.msra.mxu0 0
      %1024 = vmatprep.subr.bf16.mxu0 0
      %1025 = vmatpush1.bf16.msra.mxu0 0
      %1026 = vmatprep.subr.bf16.mxu0 0
      %1027 = vmatpush1.bf16.msra.mxu0 0
      %1028 = vmatprep.subr.bf16.mxu0 0
      %1029 = vmatpush1.bf16.msra.mxu0 0
      %1030 = vmatprep.subr.bf16.mxu0 0
      %1031 = vmatpush1.bf16.msra.mxu0 0
      %1032 = vmatprep.subr.bf16.mxu0 0
      %1033 = vmatpush1.bf16.msra.mxu0 0
      %1034 = vmatprep.subr.bf16.mxu0 0
      %1035 = vmatpush1.bf16.msra.mxu0 0
      %1036 = vmatprep.subr.bf16.mxu0 0
      %1037 = vmatpush1.bf16.msra.mxu0 0
      %1038 = vmatprep.mubr.bf16.mxu0 0
      %1039 = vmatmul.mubr.bf16.gmra.mrb[0].mxu0 %v757
      %v1040 = vpop.f32.mrb[0].mxu0
      %v1041 = vadd.f32 0.0, %v1040
      %v1042 = vpop.f32.mrb[0].mxu0
      %v1043 = vadd.f32 0.0, %v1042
      %v1044 = vpop.f32.mrb[0].mxu0
      %v1045 = vadd.f32 0.0, %v1044
      %v1046 = vpop.f32.mrb[0].mxu0
      %v1047 = vadd.f32 0.0, %v1046
      %1048 = vmatprep.mubr.bf16.mxu0 0
      %1049 = vmatmul.mubr.bf16.gmra.mrb[0].mxu0 %v760
      %v1050 = vpop.f32.mrb[0].mxu0
      %v1051 = vadd.f32 0.0, %v1050
      %v1052 = vpop.f32.mrb[0].mxu0
      %v1053 = vadd.f32 0.0, %v1052
      %v1054 = vpop.f32.mrb[0].mxu0
      %v1055 = vadd.f32 0.0, %v1054
      %v1056 = vpop.f32.mrb[0].mxu0
      %v1057 = vadd.f32 0.0, %v1056
      %1058 = vmatprep.mubr.bf16.mxu0 0
      %1059 = vmatmul.mubr.bf16.gmra.mrb[0].mxu0 %v763
      %v1060 = vpop.f32.mrb[0].mxu0
      %v1061 = vadd.f32 0.0, %v1060
      %v1062 = vpop.f32.mrb[0].mxu0
      %v1063 = vadd.f32 0.0, %v1062
      %v1064 = vpop.f32.mrb[0].mxu0
      %v1065 = vadd.f32 0.0, %v1064
      %v1066 = vpop.f32.mrb[0].mxu0
      %v1067 = vadd.f32 0.0, %v1066
      %1068 = vmatprep.mubr.bf16.mxu0 0
      %1069 = vmatmul.mubr.bf16.gmra.mrb[0].mxu0 %v766
      %v1070 = vpop.f32.mrb[0].mxu0
      %v1071 = vadd.f32 0.0, %v1070
      %v1072 = vpop.f32.mrb[0].mxu0
      %v1073 = vadd.f32 0.0, %v1072
      %v1074 = vpop.f32.mrb[0].mxu0
      %v1075 = vadd.f32 0.0, %v1074
      %v1076 = vpop.f32.mrb[0].mxu0
      %v1077 = vadd.f32 0.0, %v1076
      %1078 = vmatprep.mubr.bf16.mxu0 0
      %1079 = vmatmul.mubr.bf16.gmra.mrb[0].mxu0 %v769
      %v1080 = vpop.f32.mrb[0].mxu0
      %v1081 = vadd.f32 0.0, %v1080
      %v1082 = vpop.f32.mrb[0].mxu0
      %v1083 = vadd.f32 0.0, %v1082
      %v1084 = vpop.f32.mrb[0].mxu0
      %v1085 = vadd.f32 0.0, %v1084
      %v1086 = vpop.f32.mrb[0].mxu0
      %v1087 = vadd.f32 0.0, %v1086
      %1088 = vmatprep.mubr.bf16.mxu0 0
      %1089 = vmatmul.mubr.bf16.gmra.mrb[0].mxu0 %v772
      %v1090 = vpop.f32.mrb[0].mxu0
      %v1091 = vadd.f32 0.0, %v1090
      %v1092 = vpop.f32.mrb[0].mxu0
      %v1093 = vadd.f32 0.0, %v1092
      %v1094 = vpop.f32.mrb[0].mxu0
      %v1095 = vadd.f32 0.0, %v1094
      %v1096 = vpop.f32.mrb[0].mxu0
      %v1097 = vadd.f32 0.0, %v1096
      %1098 = vmatprep.mubr.bf16.mxu0 0
      %1099 = vmatmul.mubr.bf16.gmra.mrb[0].mxu0 %v775
      %v1100 = vpop.f32.mrb[0].mxu0
      %v1101 = vadd.f32 0.0, %v1100
      %v1102 = vpop.f32.mrb[0].mxu0
      %v1103 = vadd.f32 0.0, %v1102
      %v1104 = vpop.f32.mrb[0].mxu0
      %v1105 = vadd.f32 0.0, %v1104
      %v1106 = vpop.f32.mrb[0].mxu0
      %v1107 = vadd.f32 0.0, %v1106
      %1108 = vmatprep.mubr.bf16.mxu0 0
      %1109 = vmatmul.mubr.bf16.gmra.mrb[0].mxu0 %v778
      %v1110 = vpop.f32.mrb[0].mxu0
      %v1111 = vadd.f32 0.0, %v1110
      %v1112 = vpop.f32.mrb[0].mxu0
      %v1113 = vadd.f32 0.0, %v1112
      %v1114 = vpop.f32.mrb[0].mxu0
      %v1115 = vadd.f32 0.0, %v1114
      %v1116 = vpop.f32.mrb[0].mxu0
      %v1117 = vadd.f32 0.0, %v1116
      %1118 = vdwg.mxu0
      %1119 = vmatprep.subr.bf16.mxu0 %v723
      %1120 = vmatpush1.bf16.msra.mxu0 %v722
      %1121 = vmatprep.subr.bf16.mxu0 %v733
      %1122 = vmatpush1.bf16.msra.mxu0 %v732
      %1123 = vmatprep.subr.bf16.mxu0 0
      %1124 = vmatpush1.bf16.msra.mxu0 0
      %1125 = vmatprep.subr.bf16.mxu0 0
      %1126 = vmatpush1.bf16.msra.mxu0 0
      %1127 = vmatprep.subr.bf16.mxu0 0
      %1128 = vmatpush1.bf16.msra.mxu0 0
      %1129 = vmatprep.subr.bf16.mxu0 0
      %1130 = vmatpush1.bf16.msra.mxu0 0
      %1131 = vmatprep.subr.bf16.mxu0 0
      %1132 = vmatpush1.bf16.msra.mxu0 0
      %1133 = vmatprep.subr.bf16.mxu0 0
      %1134 = vmatpush1.bf16.msra.mxu0 0
      %1135 = vmatprep.subr.bf16.mxu0 0
      %1136 = vmatpush1.bf16.msra.mxu0 0
      %1137 = vmatprep.subr.bf16.mxu0 0
      %1138 = vmatpush1.bf16.msra.mxu0 0
      %1139 = vmatprep.subr.bf16.mxu0 0
      %1140 = vmatpush1.bf16.msra.mxu0 0
      %1141 = vmatprep.subr.bf16.mxu0 0
      %1142 = vmatpush1.bf16.msra.mxu0 0
      %1143 = vmatprep.subr.bf16.mxu0 0
      %1144 = vmatpush1.bf16.msra.mxu0 0
      %1145 = vmatprep.subr.bf16.mxu0 0
      %1146 = vmatpush1.bf16.msra.mxu0 0
      %1147 = vmatprep.subr.bf16.mxu0 0
      %1148 = vmatpush1.bf16.msra.mxu0 0
      %1149 = vmatprep.subr.bf16.mxu0 0
      %1150 = vmatpush1.bf16.msra.mxu0 0
      %1151 = vmatprep.mubr.bf16.mxu0 0
      %1152 = vmatmul.mubr.bf16.gmra.mrb[0].mxu0 %v757
      %v1153 = vpop.f32.mrb[0].mxu0
      %v1154 = vadd.f32 0.0, %v1153
      %v1155 = vpop.f32.mrb[0].mxu0
      %v1156 = vadd.f32 0.0, %v1155
      %v1157 = vpop.f32.mrb[0].mxu0
      %v1158 = vadd.f32 0.0, %v1157
      %v1159 = vpop.f32.mrb[0].mxu0
      %v1160 = vadd.f32 0.0, %v1159
      %1161 = vmatprep.mubr.bf16.mxu0 0
      %1162 = vmatmul.mubr.bf16.gmra.mrb[0].mxu0 %v760
      %v1163 = vpop.f32.mrb[0].mxu0
      %v1164 = vadd.f32 0.0, %v1163
      %v1165 = vpop.f32.mrb[0].mxu0
      %v1166 = vadd.f32 0.0, %v1165
      %v1167 = vpop.f32.mrb[0].mxu0
      %v1168 = vadd.f32 0.0, %v1167
      %v1169 = vpop.f32.mrb[0].mxu0
      %v1170 = vadd.f32 0.0, %v1169
      %1171 = vmatprep.mubr.bf16.mxu0 0
      %1172 = vmatmul.mubr.bf16.gmra.mrb[0].mxu0 %v763
      %v1173 = vpop.f32.mrb[0].mxu0
      %v1174 = vadd.f32 0.0, %v1173
      %v1175 = vpop.f32.mrb[0].mxu0
      %v1176 = vadd.f32 0.0, %v1175
      %v1177 = vpop.f32.mrb[0].mxu0
      %v1178 = vadd.f32 0.0, %v1177
      %v1179 = vpop.f32.mrb[0].mxu0
      %v1180 = vadd.f32 0.0, %v1179
      %1181 = vmatprep.mubr.bf16.mxu0 0
      %1182 = vmatmul.mubr.bf16.gmra.mrb[0].mxu0 %v766
      %v1183 = vpop.f32.mrb[0].mxu0
      %v1184 = vadd.f32 0.0, %v1183
      %v1185 = vpop.f32.mrb[0].mxu0
      %v1186 = vadd.f32 0.0, %v1185
      %v1187 = vpop.f32.mrb[0].mxu0
      %v1188 = vadd.f32 0.0, %v1187
      %v1189 = vpop.f32.mrb[0].mxu0
      %v1190 = vadd.f32 0.0, %v1189
      %1191 = vmatprep.mubr.bf16.mxu0 0
      %1192 = vmatmul.mubr.bf16.gmra.mrb[0].mxu0 %v769
      %v1193 = vpop.f32.mrb[0].mxu0
      %v1194 = vadd.f32 0.0, %v1193
      %v1195 = vpop.f32.mrb[0].mxu0
      %v1196 = vadd.f32 0.0, %v1195
      %v1197 = vpop.f32.mrb[0].mxu0
      %v1198 = vadd.f32 0.0, %v1197
      %v1199 = vpop.f32.mrb[0].mxu0
      %v1200 = vadd.f32 0.0, %v1199
      %1201 = vmatprep.mubr.bf16.mxu0 0
      %1202 = vmatmul.mubr.bf16.gmra.mrb[0].mxu0 %v772
      %v1203 = vpop.f32.mrb[0].mxu0
      %v1204 = vadd.f32 0.0, %v1203
      %v1205 = vpop.f32.mrb[0].mxu0
      %v1206 = vadd.f32 0.0, %v1205
      %v1207 = vpop.f32.mrb[0].mxu0
      %v1208 = vadd.f32 0.0, %v1207
      %v1209 = vpop.f32.mrb[0].mxu0
      %v1210 = vadd.f32 0.0, %v1209
      %1211 = vmatprep.mubr.bf16.mxu0 0
      %1212 = vmatmul.mubr.bf16.gmra.mrb[0].mxu0 %v775
      %v1213 = vpop.f32.mrb[0].mxu0
      %v1214 = vadd.f32 0.0, %v1213
      %v1215 = vpop.f32.mrb[0].mxu0
      %v1216 = vadd.f32 0.0, %v1215
      %v1217 = vpop.f32.mrb[0].mxu0
      %v1218 = vadd.f32 0.0, %v1217
      %v1219 = vpop.f32.mrb[0].mxu0
      %v1220 = vadd.f32 0.0, %v1219
      %1221 = vmatprep.mubr.bf16.mxu0 0
      %1222 = vmatmul.mubr.bf16.gmra.mrb[0].mxu0 %v778
      %v1223 = vpop.f32.mrb[0].mxu0
      %v1224 = vadd.f32 0.0, %v1223
      %v1225 = vpop.f32.mrb[0].mxu0
      %v1226 = vadd.f32 0.0, %v1225
      %v1227 = vpop.f32.mrb[0].mxu0
      %v1228 = vadd.f32 0.0, %v1227
      %v1229 = vpop.f32.mrb[0].mxu0
      %v1230 = vadd.f32 0.0, %v1229
      %1231 = vdwg.mxu0
      %1232 = vmatprep.subr.bf16.mxu0 %v725
      %1233 = vmatpush1.bf16.msra.mxu0 %v724
      %1234 = vmatprep.subr.bf16.mxu0 %v735
      %1235 = vmatpush1.bf16.msra.mxu0 %v734
      %1236 = vmatprep.subr.bf16.mxu0 0
      %1237 = vmatpush1.bf16.msra.mxu0 0
      %1238 = vmatprep.subr.bf16.mxu0 0
      %1239 = vmatpush1.bf16.msra.mxu0 0
      %1240 = vmatprep.subr.bf16.mxu0 0
      %1241 = vmatpush1.bf16.msra.mxu0 0
      %1242 = vmatprep.subr.bf16.mxu0 0
      %1243 = vmatpush1.bf16.msra.mxu0 0
      %1244 = vmatprep.subr.bf16.mxu0 0
      %1245 = vmatpush1.bf16.msra.mxu0 0
      %1246 = vmatprep.subr.bf16.mxu0 0
      %1247 = vmatpush1.bf16.msra.mxu0 0
      %1248 = vmatprep.subr.bf16.mxu0 0
      %1249 = vmatpush1.bf16.msra.mxu0 0
      %1250 = vmatprep.subr.bf16.mxu0 0
      %1251 = vmatpush1.bf16.msra.mxu0 0
      %1252 = vmatprep.subr.bf16.mxu0 0
      %1253 = vmatpush1.bf16.msra.mxu0 0
      %1254 = vmatprep.subr.bf16.mxu0 0
      %1255 = vmatpush1.bf16.msra.mxu0 0
      %1256 = vmatprep.subr.bf16.mxu0 0
      %1257 = vmatpush1.bf16.msra.mxu0 0
      %1258 = vmatprep.subr.bf16.mxu0 0
      %1259 = vmatpush1.bf16.msra.mxu0 0
      %1260 = vmatprep.subr.bf16.mxu0 0
      %1261 = vmatpush1.bf16.msra.mxu0 0
      %1262 = vmatprep.subr.bf16.mxu0 0
      %1263 = vmatpush1.bf16.msra.mxu0 0
      %1264 = vmatprep.mubr.bf16.mxu0 0
      %1265 = vmatmul.mubr.bf16.gmra.mrb[0].mxu0 %v757
      %v1266 = vpop.f32.mrb[0].mxu0
      %v1267 = vadd.f32 0.0, %v1266
      %v1268 = vpop.f32.mrb[0].mxu0
      %v1269 = vadd.f32 0.0, %v1268
      %v1270 = vpop.f32.mrb[0].mxu0
      %v1271 = vadd.f32 0.0, %v1270
      %v1272 = vpop.f32.mrb[0].mxu0
      %v1273 = vadd.f32 0.0, %v1272
      %1274 = vmatprep.mubr.bf16.mxu0 0
      %1275 = vmatmul.mubr.bf16.gmra.mrb[0].mxu0 %v760
      %v1276 = vpop.f32.mrb[0].mxu0
      %v1277 = vadd.f32 0.0, %v1276
      %v1278 = vpop.f32.mrb[0].mxu0
      %v1279 = vadd.f32 0.0, %v1278
      %v1280 = vpop.f32.mrb[0].mxu0
      %v1281 = vadd.f32 0.0, %v1280
      %v1282 = vpop.f32.mrb[0].mxu0
      %v1283 = vadd.f32 0.0, %v1282
      %1284 = vmatprep.mubr.bf16.mxu0 0
      %1285 = vmatmul.mubr.bf16.gmra.mrb[0].mxu0 %v763
      %v1286 = vpop.f32.mrb[0].mxu0
      %v1287 = vadd.f32 0.0, %v1286
      %v1288 = vpop.f32.mrb[0].mxu0
      %v1289 = vadd.f32 0.0, %v1288
      %v1290 = vpop.f32.mrb[0].mxu0
      %v1291 = vadd.f32 0.0, %v1290
      %v1292 = vpop.f32.mrb[0].mxu0
      %v1293 = vadd.f32 0.0, %v1292
      %1294 = vmatprep.mubr.bf16.mxu0 0
      %1295 = vmatmul.mubr.bf16.gmra.mrb[0].mxu0 %v766
      %v1296 = vpop.f32.mrb[0].mxu0
      %v1297 = vadd.f32 0.0, %v1296
      %v1298 = vpop.f32.mrb[0].mxu0
      %v1299 = vadd.f32 0.0, %v1298
      %v1300 = vpop.f32.mrb[0].mxu0
      %v1301 = vadd.f32 0.0, %v1300
      %v1302 = vpop.f32.mrb[0].mxu0
      %v1303 = vadd.f32 0.0, %v1302
      %1304 = vmatprep.mubr.bf16.mxu0 0
      %1305 = vmatmul.mubr.bf16.gmra.mrb[0].mxu0 %v769
      %v1306 = vpop.f32.mrb[0].mxu0
      %v1307 = vadd.f32 0.0, %v1306
      %v1308 = vpop.f32.mrb[0].mxu0
      %v1309 = vadd.f32 0.0, %v1308
      %v1310 = vpop.f32.mrb[0].mxu0
      %v1311 = vadd.f32 0.0, %v1310
      %v1312 = vpop.f32.mrb[0].mxu0
      %v1313 = vadd.f32 0.0, %v1312
      %1314 = vmatprep.mubr.bf16.mxu0 0
      %1315 = vmatmul.mubr.bf16.gmra.mrb[0].mxu0 %v772
      %v1316 = vpop.f32.mrb[0].mxu0
      %v1317 = vadd.f32 0.0, %v1316
      %v1318 = vpop.f32.mrb[0].mxu0
      %v1319 = vadd.f32 0.0, %v1318
      %v1320 = vpop.f32.mrb[0].mxu0
      %v1321 = vadd.f32 0.0, %v1320
      %v1322 = vpop.f32.mrb[0].mxu0
      %v1323 = vadd.f32 0.0, %v1322
      %1324 = vmatprep.mubr.bf16.mxu0 0
      %1325 = vmatmul.mubr.bf16.gmra.mrb[0].mxu0 %v775
      %v1326 = vpop.f32.mrb[0].mxu0
      %v1327 = vadd.f32 0.0, %v1326
      %v1328 = vpop.f32.mrb[0].mxu0
      %v1329 = vadd.f32 0.0, %v1328
      %v1330 = vpop.f32.mrb[0].mxu0
      %v1331 = vadd.f32 0.0, %v1330
      %v1332 = vpop.f32.mrb[0].mxu0
      %v1333 = vadd.f32 0.0, %v1332
      %1334 = vmatprep.mubr.bf16.mxu0 0
      %1335 = vmatmul.mubr.bf16.gmra.mrb[0].mxu0 %v778
      %v1336 = vpop.f32.mrb[0].mxu0
      %v1337 = vadd.f32 0.0, %v1336
      %v1338 = vpop.f32.mrb[0].mxu0
      %v1339 = vadd.f32 0.0, %v1338
      %v1340 = vpop.f32.mrb[0].mxu0
      %v1341 = vadd.f32 0.0, %v1340
      %v1342 = vpop.f32.mrb[0].mxu0
      %v1343 = vadd.f32 0.0, %v1342
      %1344 = vdwg.mxu0
      %v1345 = vpack.c.bf16 %v819, %v815
      %v1346 = vpack.c.bf16 %v821, %v817
      %v1347 = vpack.c.bf16 %v932, %v928
      %v1348 = vpack.c.bf16 %v934, %v930
      %v1349 = vpack.c.bf16 %v1045, %v1041
      %v1350 = vpack.c.bf16 %v1047, %v1043
      %v1351 = vpack.c.bf16 %v1158, %v1154
      %v1352 = vpack.c.bf16 %v1160, %v1156
      %v1353 = vpack.c.bf16 %v1271, %v1267
      %v1354 = vpack.c.bf16 %v1273, %v1269
      %v1355 = vpack.c.bf16 %v829, %v825
      %v1356 = vpack.c.bf16 %v831, %v827
      %v1357 = vpack.c.bf16 %v942, %v938
      %v1358 = vpack.c.bf16 %v944, %v940
      %v1359 = vpack.c.bf16 %v1055, %v1051
      %v1360 = vpack.c.bf16 %v1057, %v1053
      %v1361 = vpack.c.bf16 %v1168, %v1164
      %v1362 = vpack.c.bf16 %v1170, %v1166
      %v1363 = vpack.c.bf16 %v1281, %v1277
      %v1364 = vpack.c.bf16 %v1283, %v1279
      %v1365 = vpack.c.bf16 %v839, %v835
      %v1366 = vpack.c.bf16 %v841, %v837
      %v1367 = vpack.c.bf16 %v952, %v948
      %v1368 = vpack.c.bf16 %v954, %v950
      %v1369 = vpack.c.bf16 %v1065, %v1061
      %v1370 = vpack.c.bf16 %v1067, %v1063
      %v1371 = vpack.c.bf16 %v1178, %v1174
      %v1372 = vpack.c.bf16 %v1180, %v1176
      %v1373 = vpack.c.bf16 %v1291, %v1287
      %v1374 = vpack.c.bf16 %v1293, %v1289
      %v1375 = vpack.c.bf16 %v849, %v845
      %v1376 = vpack.c.bf16 %v851, %v847
      %v1377 = vpack.c.bf16 %v962, %v958
      %v1378 = vpack.c.bf16 %v964, %v960
      %v1379 = vpack.c.bf16 %v1075, %v1071
      %v1380 = vpack.c.bf16 %v1077, %v1073
      %v1381 = vpack.c.bf16 %v1188, %v1184
      %v1382 = vpack.c.bf16 %v1190, %v1186
      %v1383 = vpack.c.bf16 %v1301, %v1297
      %v1384 = vpack.c.bf16 %v1303, %v1299
      %v1385 = vpack.c.bf16 %v859, %v855
      %v1386 = vpack.c.bf16 %v861, %v857
      %v1387 = vpack.c.bf16 %v972, %v968
      %v1388 = vpack.c.bf16 %v974, %v970
      %v1389 = vpack.c.bf16 %v1085, %v1081
      %v1390 = vpack.c.bf16 %v1087, %v1083
      %v1391 = vpack.c.bf16 %v1198, %v1194
      %v1392 = vpack.c.bf16 %v1200, %v1196
      %v1393 = vpack.c.bf16 %v1311, %v1307
      %v1394 = vpack.c.bf16 %v1313, %v1309
      %v1395 = vpack.c.bf16 %v869, %v865
      %v1396 = vpack.c.bf16 %v871, %v867
      %v1397 = vpack.c.bf16 %v982, %v978
      %v1398 = vpack.c.bf16 %v984, %v980
      %v1399 = vpack.c.bf16 %v1095, %v1091
      %v1400 = vpack.c.bf16 %v1097, %v1093
      %v1401 = vpack.c.bf16 %v1208, %v1204
      %v1402 = vpack.c.bf16 %v1210, %v1206
      %v1403 = vpack.c.bf16 %v1321, %v1317
      %v1404 = vpack.c.bf16 %v1323, %v1319
      %v1405 = vpack.c.bf16 %v879, %v875
      %v1406 = vpack.c.bf16 %v881, %v877
      %v1407 = vpack.c.bf16 %v992, %v988
      %v1408 = vpack.c.bf16 %v994, %v990
      %v1409 = vpack.c.bf16 %v1105, %v1101
      %v1410 = vpack.c.bf16 %v1107, %v1103
      %v1411 = vpack.c.bf16 %v1218, %v1214
      %v1412 = vpack.c.bf16 %v1220, %v1216
      %v1413 = vpack.c.bf16 %v1331, %v1327
      %v1414 = vpack.c.bf16 %v1333, %v1329
      %v1415 = vpack.c.bf16 %v889, %v885
      %v1416 = vpack.c.bf16 %v891, %v887
      %v1417 = vpack.c.bf16 %v1002, %v998
      %v1418 = vpack.c.bf16 %v1004, %v1000
      %v1419 = vpack.c.bf16 %v1115, %v1111
      %v1420 = vpack.c.bf16 %v1117, %v1113
      %v1421 = vpack.c.bf16 %v1228, %v1224
      %v1422 = vpack.c.bf16 %v1230, %v1226
      %v1423 = vpack.c.bf16 %v1341, %v1337
      %v1424 = vpack.c.bf16 %v1343, %v1339
      %v1425 = vld [vmem:[%s4] sm:$0xff]
      %v1426 = vld [vmem:[%s4 + $0x8] sm:$0x3]
      %v1429 = vlaneseq
      %v1430 = vshrl.u32 %v1429, 7
      %v1431 = vsub.s32 0, %v1430
      %v1432 = vrot.slane %v1425, %v1431
      %v1433 = vlaneseq
      %v1434 = vshrl.u32 %v1433, 7
      %v1435 = vsub.s32 1, %v1434
      %v1436 = vrot.slane %v1425, %v1435
      %v1437 = vlaneseq
      %v1438 = vshrl.u32 %v1437, 7
      %v1439 = vsub.s32 2, %v1438
      %v1440 = vrot.slane %v1425, %v1439
      %v1441 = vlaneseq
      %v1442 = vshrl.u32 %v1441, 7
      %v1443 = vsub.s32 3, %v1442
      %v1444 = vrot.slane %v1425, %v1443
      %v1445 = vlaneseq
      %v1446 = vshrl.u32 %v1445, 7
      %v1447 = vsub.s32 4, %v1446
      %v1448 = vrot.slane %v1425, %v1447
      %v1449 = vlaneseq
      %v1450 = vshrl.u32 %v1449, 7
      %v1451 = vsub.s32 5, %v1450
      %v1452 = vrot.slane %v1425, %v1451
      %v1453 = vlaneseq
      %v1454 = vshrl.u32 %v1453, 7
      %v1455 = vsub.s32 6, %v1454
      %v1456 = vrot.slane %v1425, %v1455
      %v1457 = vlaneseq
      %v1458 = vshrl.u32 %v1457, 7
      %v1459 = vsub.s32 7, %v1458
      %v1460 = vrot.slane %v1425, %v1459
      %v1461 = vlaneseq
      %v1462 = vshrl.u32 %v1461, 7
      %v1463 = vsub.s32 0, %v1462
      %v1464 = vrot.slane %v1426, %v1463
      %v1465 = vlaneseq
      %v1466 = vshrl.u32 %v1465, 7
      %v1467 = vsub.s32 1, %v1466
      %v1468 = vrot.slane %v1426, %v1467
      %v1479 = vpack.c.bf16 %v1432, %v1432
      %v1480 = vpack.c.bf16 %v1436, %v1436
      %v1481 = vpack.c.bf16 %v1440, %v1440
      %v1482 = vpack.c.bf16 %v1444, %v1444
      %v1483 = vpack.c.bf16 %v1448, %v1448
      %v1484 = vpack.c.bf16 %v1452, %v1452
      %v1485 = vpack.c.bf16 %v1456, %v1456
      %v1486 = vpack.c.bf16 %v1460, %v1460
      %v1487 = vpack.c.bf16 %v1464, %v1464
      %v1488 = vpack.c.bf16 %v1468, %v1468
      %v1490 = vpack.i.b16 %v1479, %v1479
      %v1492 = vlaneseq
      %v1493 = vshrl.u32 %v1492, 7
      %v1494 = vsub.s32 0, %v1493
      %v1495 = vrot.slane %v1490, %v1494
      %v1497 = vpack.i.b16 %v1480, %v1480
      %v1499 = vlaneseq
      %v1500 = vshrl.u32 %v1499, 7
      %v1501 = vsub.s32 0, %v1500
      %v1502 = vrot.slane %v1497, %v1501
      %v1504 = vpack.i.b16 %v1481, %v1481
      %v1506 = vlaneseq
      %v1507 = vshrl.u32 %v1506, 7
      %v1508 = vsub.s32 0, %v1507
      %v1509 = vrot.slane %v1504, %v1508
      %v1511 = vpack.i.b16 %v1482, %v1482
      %v1513 = vlaneseq
      %v1514 = vshrl.u32 %v1513, 7
      %v1515 = vsub.s32 0, %v1514
      %v1516 = vrot.slane %v1511, %v1515
      %v1518 = vpack.i.b16 %v1483, %v1483
      %v1520 = vlaneseq
      %v1521 = vshrl.u32 %v1520, 7
      %v1522 = vsub.s32 0, %v1521
      %v1523 = vrot.slane %v1518, %v1522
      %v1525 = vpack.i.b16 %v1484, %v1484
      %v1527 = vlaneseq
      %v1528 = vshrl.u32 %v1527, 7
      %v1529 = vsub.s32 0, %v1528
      %v1530 = vrot.slane %v1525, %v1529
      %v1532 = vpack.i.b16 %v1485, %v1485
      %v1534 = vlaneseq
      %v1535 = vshrl.u32 %v1534, 7
      %v1536 = vsub.s32 0, %v1535
      %v1537 = vrot.slane %v1532, %v1536
      %v1539 = vpack.i.b16 %v1486, %v1486
      %v1541 = vlaneseq
      %v1542 = vshrl.u32 %v1541, 7
      %v1543 = vsub.s32 0, %v1542
      %v1544 = vrot.slane %v1539, %v1543
      %v1546 = vpack.i.b16 %v1487, %v1487
      %v1548 = vlaneseq
      %v1549 = vshrl.u32 %v1548, 7
      %v1550 = vsub.s32 0, %v1549
      %v1551 = vrot.slane %v1546, %v1550
      %v1553 = vpack.i.b16 %v1488, %v1488
      %v1555 = vlaneseq
      %v1556 = vshrl.u32 %v1555, 7
      %v1557 = vsub.s32 0, %v1556
      %v1558 = vrot.slane %v1553, %v1557
      %v1559 = vadd.bf16 %v1345, %v1495
      %v1560 = vadd.bf16 %v1346, %v1502
      %v1561 = vadd.bf16 %v1347, %v1509
      %v1562 = vadd.bf16 %v1348, %v1516
      %v1563 = vadd.bf16 %v1349, %v1523
      %v1564 = vadd.bf16 %v1350, %v1530
      %v1565 = vadd.bf16 %v1351, %v1537
      %v1566 = vadd.bf16 %v1352, %v1544
      %v1567 = vadd.bf16 %v1353, %v1551
      %v1568 = vadd.bf16 %v1354, %v1558
      %v1569 = vadd.bf16 %v1355, %v1495
      %v1570 = vadd.bf16 %v1356, %v1502
      %v1571 = vadd.bf16 %v1357, %v1509
      %v1572 = vadd.bf16 %v1358, %v1516
      %v1573 = vadd.bf16 %v1359, %v1523
      %v1574 = vadd.bf16 %v1360, %v1530
      %v1575 = vadd.bf16 %v1361, %v1537
      %v1576 = vadd.bf16 %v1362, %v1544
      %v1577 = vadd.bf16 %v1363, %v1551
      %v1578 = vadd.bf16 %v1364, %v1558
      %v1579 = vadd.bf16 %v1365, %v1495
      %v1580 = vadd.bf16 %v1366, %v1502
      %v1581 = vadd.bf16 %v1367, %v1509
      %v1582 = vadd.bf16 %v1368, %v1516
      %v1583 = vadd.bf16 %v1369, %v1523
      %v1584 = vadd.bf16 %v1370, %v1530
      %v1585 = vadd.bf16 %v1371, %v1537
      %v1586 = vadd.bf16 %v1372, %v1544
      %v1587 = vadd.bf16 %v1373, %v1551
      %v1588 = vadd.bf16 %v1374, %v1558
      %v1589 = vadd.bf16 %v1375, %v1495
      %v1590 = vadd.bf16 %v1376, %v1502
      %v1591 = vadd.bf16 %v1377, %v1509
      %v1592 = vadd.bf16 %v1378, %v1516
      %v1593 = vadd.bf16 %v1379, %v1523
      %v1594 = vadd.bf16 %v1380, %v1530
      %v1595 = vadd.bf16 %v1381, %v1537
      %v1596 = vadd.bf16 %v1382, %v1544
      %v1597 = vadd.bf16 %v1383, %v1551
      %v1598 = vadd.bf16 %v1384, %v1558
      %v1599 = vadd.bf16 %v1385, %v1495
      %v1600 = vadd.bf16 %v1386, %v1502
      %v1601 = vadd.bf16 %v1387, %v1509
      %v1602 = vadd.bf16 %v1388, %v1516
      %v1603 = vadd.bf16 %v1389, %v1523
      %v1604 = vadd.bf16 %v1390, %v1530
      %v1605 = vadd.bf16 %v1391, %v1537
      %v1606 = vadd.bf16 %v1392, %v1544
      %v1607 = vadd.bf16 %v1393, %v1551
      %v1608 = vadd.bf16 %v1394, %v1558
      %v1609 = vadd.bf16 %v1395, %v1495
      %v1610 = vadd.bf16 %v1396, %v1502
      %v1611 = vadd.bf16 %v1397, %v1509
      %v1612 = vadd.bf16 %v1398, %v1516
      %v1613 = vadd.bf16 %v1399, %v1523
      %v1614 = vadd.bf16 %v1400, %v1530
      %v1615 = vadd.bf16 %v1401, %v1537
      %v1616 = vadd.bf16 %v1402, %v1544
      %v1617 = vadd.bf16 %v1403, %v1551
      %v1618 = vadd.bf16 %v1404, %v1558
      %v1619 = vadd.bf16 %v1405, %v1495
      %v1620 = vadd.bf16 %v1406, %v1502
      %v1621 = vadd.bf16 %v1407, %v1509
      %v1622 = vadd.bf16 %v1408, %v1516
      %v1623 = vadd.bf16 %v1409, %v1523
      %v1624 = vadd.bf16 %v1410, %v1530
      %v1625 = vadd.bf16 %v1411, %v1537
      %v1626 = vadd.bf16 %v1412, %v1544
      %v1627 = vadd.bf16 %v1413, %v1551
      %v1628 = vadd.bf16 %v1414, %v1558
      %v1629 = vadd.bf16 %v1415, %v1495
      %v1630 = vadd.bf16 %v1416, %v1502
      %v1631 = vadd.bf16 %v1417, %v1509
      %v1632 = vadd.bf16 %v1418, %v1516
      %v1633 = vadd.bf16 %v1419, %v1523
      %v1634 = vadd.bf16 %v1420, %v1530
      %v1635 = vadd.bf16 %v1421, %v1537
      %v1636 = vadd.bf16 %v1422, %v1544
      %v1637 = vadd.bf16 %v1423, %v1551
      %v1638 = vadd.bf16 %v1424, %v1558
      %v1639 = vxor.u32 %v1559, 2147516416
      %v1640 = vxor.u32 %v1560, 2147516416
      %v1641 = vxor.u32 %v1561, 2147516416
      %v1642 = vxor.u32 %v1562, 2147516416
      %v1643 = vxor.u32 %v1563, 2147516416
      %v1644 = vxor.u32 %v1564, 2147516416
      %v1645 = vxor.u32 %v1565, 2147516416
      %v1646 = vxor.u32 %v1566, 2147516416
      %v1647 = vxor.u32 %v1567, 2147516416
      %v1648 = vxor.u32 %v1568, 2147516416
      %v1649 = vxor.u32 %v1569, 2147516416
      %v1650 = vxor.u32 %v1570, 2147516416
      %v1651 = vxor.u32 %v1571, 2147516416
      %v1652 = vxor.u32 %v1572, 2147516416
      %v1653 = vxor.u32 %v1573, 2147516416
      %v1654 = vxor.u32 %v1574, 2147516416
      %v1655 = vxor.u32 %v1575, 2147516416
      %v1656 = vxor.u32 %v1576, 2147516416
      %v1657 = vxor.u32 %v1577, 2147516416
      %v1658 = vxor.u32 %v1578, 2147516416
      %v1659 = vxor.u32 %v1579, 2147516416
      %v1660 = vxor.u32 %v1580, 2147516416
      %v1661 = vxor.u32 %v1581, 2147516416
      %v1662 = vxor.u32 %v1582, 2147516416
      %v1663 = vxor.u32 %v1583, 2147516416
      %v1664 = vxor.u32 %v1584, 2147516416
      %v1665 = vxor.u32 %v1585, 2147516416
      %v1666 = vxor.u32 %v1586, 2147516416
      %v1667 = vxor.u32 %v1587, 2147516416
      %v1668 = vxor.u32 %v1588, 2147516416
      %v1669 = vxor.u32 %v1589, 2147516416
      %v1670 = vxor.u32 %v1590, 2147516416
      %v1671 = vxor.u32 %v1591, 2147516416
      %v1672 = vxor.u32 %v1592, 2147516416
      %v1673 = vxor.u32 %v1593, 2147516416
      %v1674 = vxor.u32 %v1594, 2147516416
      %v1675 = vxor.u32 %v1595, 2147516416
      %v1676 = vxor.u32 %v1596, 2147516416
      %v1677 = vxor.u32 %v1597, 2147516416
      %v1678 = vxor.u32 %v1598, 2147516416
      %v1679 = vxor.u32 %v1599, 2147516416
      %v1680 = vxor.u32 %v1600, 2147516416
      %v1681 = vxor.u32 %v1601, 2147516416
      %v1682 = vxor.u32 %v1602, 2147516416
      %v1683 = vxor.u32 %v1603, 2147516416
      %v1684 = vxor.u32 %v1604, 2147516416
      %v1685 = vxor.u32 %v1605, 2147516416
      %v1686 = vxor.u32 %v1606, 2147516416
      %v1687 = vxor.u32 %v1607, 2147516416
      %v1688 = vxor.u32 %v1608, 2147516416
      %v1689 = vxor.u32 %v1609, 2147516416
      %v1690 = vxor.u32 %v1610, 2147516416
      %v1691 = vxor.u32 %v1611, 2147516416
      %v1692 = vxor.u32 %v1612, 2147516416
      %v1693 = vxor.u32 %v1613, 2147516416
      %v1694 = vxor.u32 %v1614, 2147516416
      %v1695 = vxor.u32 %v1615, 2147516416
      %v1696 = vxor.u32 %v1616, 2147516416
      %v1697 = vxor.u32 %v1617, 2147516416
      %v1698 = vxor.u32 %v1618, 2147516416
      %v1699 = vxor.u32 %v1619, 2147516416
      %v1700 = vxor.u32 %v1620, 2147516416
      %v1701 = vxor.u32 %v1621, 2147516416
      %v1702 = vxor.u32 %v1622, 2147516416
      %v1703 = vxor.u32 %v1623, 2147516416
      %v1704 = vxor.u32 %v1624, 2147516416
      %v1705 = vxor.u32 %v1625, 2147516416
      %v1706 = vxor.u32 %v1626, 2147516416
      %v1707 = vxor.u32 %v1627, 2147516416
      %v1708 = vxor.u32 %v1628, 2147516416
      %v1709 = vxor.u32 %v1629, 2147516416
      %v1710 = vxor.u32 %v1630, 2147516416
      %v1711 = vxor.u32 %v1631, 2147516416
      %v1712 = vxor.u32 %v1632, 2147516416
      %v1713 = vxor.u32 %v1633, 2147516416
      %v1714 = vxor.u32 %v1634, 2147516416
      %v1715 = vxor.u32 %v1635, 2147516416
      %v1716 = vxor.u32 %v1636, 2147516416
      %v1717 = vxor.u32 %v1637, 2147516416
      %v1718 = vxor.u32 %v1638, 2147516416
      %v1720 = vmul.bf16 %v1639, 1069105081
      %v1721 = vpow.bf16.pop %v1720
      %v1723 = vmul.bf16 %v1640, 1069105081
      %v1724 = vpow.bf16.pop %v1723
      %v1726 = vmul.bf16 %v1641, 1069105081
      %v1727 = vpow.bf16.pop %v1726
      %v1729 = vmul.bf16 %v1642, 1069105081
      %v1730 = vpow.bf16.pop %v1729
      %v1732 = vmul.bf16 %v1643, 1069105081
      %v1733 = vpow.bf16.pop %v1732
      %v1735 = vmul.bf16 %v1644, 1069105081
      %v1736 = vpow.bf16.pop %v1735
      %v1738 = vmul.bf16 %v1645, 1069105081
      %v1739 = vpow.bf16.pop %v1738
      %v1741 = vmul.bf16 %v1646, 1069105081
      %v1742 = vpow.bf16.pop %v1741
      %v1744 = vmul.bf16 %v1647, 1069105081
      %v1745 = vpow.bf16.pop %v1744
      %v1747 = vmul.bf16 %v1648, 1069105081
      %v1748 = vpow.bf16.pop %v1747
      %v1750 = vmul.bf16 %v1649, 1069105081
      %v1751 = vpow.bf16.pop %v1750
      %v1753 = vmul.bf16 %v1650, 1069105081
      %v1754 = vpow.bf16.pop %v1753
      %v1756 = vmul.bf16 %v1651, 1069105081
      %v1757 = vpow.bf16.pop %v1756
      %v1759 = vmul.bf16 %v1652, 1069105081
      %v1760 = vpow.bf16.pop %v1759
      %v1762 = vmul.bf16 %v1653, 1069105081
      %v1763 = vpow.bf16.pop %v1762
      %v1765 = vmul.bf16 %v1654, 1069105081
      %v1766 = vpow.bf16.pop %v1765
      %v1768 = vmul.bf16 %v1655, 1069105081
      %v1769 = vpow.bf16.pop %v1768
      %v1771 = vmul.bf16 %v1656, 1069105081
      %v1772 = vpow.bf16.pop %v1771
      %v1774 = vmul.bf16 %v1657, 1069105081
      %v1775 = vpow.bf16.pop %v1774
      %v1777 = vmul.bf16 %v1658, 1069105081
      %v1778 = vpow.bf16.pop %v1777
      %v1780 = vmul.bf16 %v1659, 1069105081
      %v1781 = vpow.bf16.pop %v1780
      %v1783 = vmul.bf16 %v1660, 1069105081
      %v1784 = vpow.bf16.pop %v1783
      %v1786 = vmul.bf16 %v1661, 1069105081
      %v1787 = vpow.bf16.pop %v1786
      %v1789 = vmul.bf16 %v1662, 1069105081
      %v1790 = vpow.bf16.pop %v1789
      %v1792 = vmul.bf16 %v1663, 1069105081
      %v1793 = vpow.bf16.pop %v1792
      %v1795 = vmul.bf16 %v1664, 1069105081
      %v1796 = vpow.bf16.pop %v1795
      %v1798 = vmul.bf16 %v1665, 1069105081
      %v1799 = vpow.bf16.pop %v1798
      %v1801 = vmul.bf16 %v1666, 1069105081
      %v1802 = vpow.bf16.pop %v1801
      %v1804 = vmul.bf16 %v1667, 1069105081
      %v1805 = vpow.bf16.pop %v1804
      %v1807 = vmul.bf16 %v1668, 1069105081
      %v1808 = vpow.bf16.pop %v1807
      %v1810 = vmul.bf16 %v1669, 1069105081
      %v1811 = vpow.bf16.pop %v1810
      %v1813 = vmul.bf16 %v1670, 1069105081
      %v1814 = vpow.bf16.pop %v1813
      %v1816 = vmul.bf16 %v1671, 1069105081
      %v1817 = vpow.bf16.pop %v1816
      %v1819 = vmul.bf16 %v1672, 1069105081
      %v1820 = vpow.bf16.pop %v1819
      %v1822 = vmul.bf16 %v1673, 1069105081
      %v1823 = vpow.bf16.pop %v1822
      %v1825 = vmul.bf16 %v1674, 1069105081
      %v1826 = vpow.bf16.pop %v1825
      %v1828 = vmul.bf16 %v1675, 1069105081
      %v1829 = vpow.bf16.pop %v1828
      %v1831 = vmul.bf16 %v1676, 1069105081
      %v1832 = vpow.bf16.pop %v1831
      %v1834 = vmul.bf16 %v1677, 1069105081
      %v1835 = vpow.bf16.pop %v1834
      %v1837 = vmul.bf16 %v1678, 1069105081
      %v1838 = vpow.bf16.pop %v1837
      %v1840 = vmul.bf16 %v1679, 1069105081
      %v1841 = vpow.bf16.pop %v1840
      %v1843 = vmul.bf16 %v1680, 1069105081
      %v1844 = vpow.bf16.pop %v1843
      %v1846 = vmul.bf16 %v1681, 1069105081
      %v1847 = vpow.bf16.pop %v1846
      %v1849 = vmul.bf16 %v1682, 1069105081
      %v1850 = vpow.bf16.pop %v1849
      %v1852 = vmul.bf16 %v1683, 1069105081
      %v1853 = vpow.bf16.pop %v1852
      %v1855 = vmul.bf16 %v1684, 1069105081
      %v1856 = vpow.bf16.pop %v1855
      %v1858 = vmul.bf16 %v1685, 1069105081
      %v1859 = vpow.bf16.pop %v1858
      %v1861 = vmul.bf16 %v1686, 1069105081
      %v1862 = vpow.bf16.pop %v1861
      %v1864 = vmul.bf16 %v1687, 1069105081
      %v1865 = vpow.bf16.pop %v1864
      %v1867 = vmul.bf16 %v1688, 1069105081
      %v1868 = vpow.bf16.pop %v1867
      %v1870 = vmul.bf16 %v1689, 1069105081
      %v1871 = vpow.bf16.pop %v1870
      %v1873 = vmul.bf16 %v1690, 1069105081
      %v1874 = vpow.bf16.pop %v1873
      %v1876 = vmul.bf16 %v1691, 1069105081
      %v1877 = vpow.bf16.pop %v1876
      %v1879 = vmul.bf16 %v1692, 1069105081
      %v1880 = vpow.bf16.pop %v1879
      %v1882 = vmul.bf16 %v1693, 1069105081
      %v1883 = vpow.bf16.pop %v1882
      %v1885 = vmul.bf16 %v1694, 1069105081
      %v1886 = vpow.bf16.pop %v1885
      %v1888 = vmul.bf16 %v1695, 1069105081
      %v1889 = vpow.bf16.pop %v1888
      %v1891 = vmul.bf16 %v1696, 1069105081
      %v1892 = vpow.bf16.pop %v1891
      %v1894 = vmul.bf16 %v1697, 1069105081
      %v1895 = vpow.bf16.pop %v1894
      %v1897 = vmul.bf16 %v1698, 1069105081
      %v1898 = vpow.bf16.pop %v1897
      %v1900 = vmul.bf16 %v1699, 1069105081
      %v1901 = vpow.bf16.pop %v1900
      %v1903 = vmul.bf16 %v1700, 1069105081
      %v1904 = vpow.bf16.pop %v1903
      %v1906 = vmul.bf16 %v1701, 1069105081
      %v1907 = vpow.bf16.pop %v1906
      %v1909 = vmul.bf16 %v1702, 1069105081
      %v1910 = vpow.bf16.pop %v1909
      %v1912 = vmul.bf16 %v1703, 1069105081
      %v1913 = vpow.bf16.pop %v1912
      %v1915 = vmul.bf16 %v1704, 1069105081
      %v1916 = vpow.bf16.pop %v1915
      %v1918 = vmul.bf16 %v1705, 1069105081
      %v1919 = vpow.bf16.pop %v1918
      %v1921 = vmul.bf16 %v1706, 1069105081
      %v1922 = vpow.bf16.pop %v1921
      %v1924 = vmul.bf16 %v1707, 1069105081
      %v1925 = vpow.bf16.pop %v1924
      %v1927 = vmul.bf16 %v1708, 1069105081
      %v1928 = vpow.bf16.pop %v1927
      %v1930 = vmul.bf16 %v1709, 1069105081
      %v1931 = vpow.bf16.pop %v1930
      %v1933 = vmul.bf16 %v1710, 1069105081
      %v1934 = vpow.bf16.pop %v1933
      %v1936 = vmul.bf16 %v1711, 1069105081
      %v1937 = vpow.bf16.pop %v1936
      %v1939 = vmul.bf16 %v1712, 1069105081
      %v1940 = vpow.bf16.pop %v1939
      %v1942 = vmul.bf16 %v1713, 1069105081
      %v1943 = vpow.bf16.pop %v1942
      %v1945 = vmul.bf16 %v1714, 1069105081
      %v1946 = vpow.bf16.pop %v1945
      %v1948 = vmul.bf16 %v1715, 1069105081
      %v1949 = vpow.bf16.pop %v1948
      %v1951 = vmul.bf16 %v1716, 1069105081
      %v1952 = vpow.bf16.pop %v1951
      %v1954 = vmul.bf16 %v1717, 1069105081
      %v1955 = vpow.bf16.pop %v1954
      %v1957 = vmul.bf16 %v1718, 1069105081
      %v1958 = vpow.bf16.pop %v1957
      %v1959 = vadd.bf16 %v1721, 1065369472
      %v1960 = vadd.bf16 %v1724, 1065369472
      %v1961 = vadd.bf16 %v1727, 1065369472
      %v1962 = vadd.bf16 %v1730, 1065369472
      %v1963 = vadd.bf16 %v1733, 1065369472
      %v1964 = vadd.bf16 %v1736, 1065369472
      %v1965 = vadd.bf16 %v1739, 1065369472
      %v1966 = vadd.bf16 %v1742, 1065369472
      %v1967 = vadd.bf16 %v1745, 1065369472
      %v1968 = vadd.bf16 %v1748, 1065369472
      %v1969 = vadd.bf16 %v1751, 1065369472
      %v1970 = vadd.bf16 %v1754, 1065369472
      %v1971 = vadd.bf16 %v1757, 1065369472
      %v1972 = vadd.bf16 %v1760, 1065369472
      %v1973 = vadd.bf16 %v1763, 1065369472
      %v1974 = vadd.bf16 %v1766, 1065369472
      %v1975 = vadd.bf16 %v1769, 1065369472
      %v1976 = vadd.bf16 %v1772, 1065369472
      %v1977 = vadd.bf16 %v1775, 1065369472
      %v1978 = vadd.bf16 %v1778, 1065369472
      %v1979 = vadd.bf16 %v1781, 1065369472
      %v1980 = vadd.bf16 %v1784, 1065369472
      %v1981 = vadd.bf16 %v1787, 1065369472
      %v1982 = vadd.bf16 %v1790, 1065369472
      %v1983 = vadd.bf16 %v1793, 1065369472
      %v1984 = vadd.bf16 %v1796, 1065369472
      %v1985 = vadd.bf16 %v1799, 1065369472
      %v1986 = vadd.bf16 %v1802, 1065369472
      %v1987 = vadd.bf16 %v1805, 1065369472
      %v1988 = vadd.bf16 %v1808, 1065369472
      %v1989 = vadd.bf16 %v1811, 1065369472
      %v1990 = vadd.bf16 %v1814, 1065369472
      %v1991 = vadd.bf16 %v1817, 1065369472
      %v1992 = vadd.bf16 %v1820, 1065369472
      %v1993 = vadd.bf16 %v1823, 1065369472
      %v1994 = vadd.bf16 %v1826, 1065369472
      %v1995 = vadd.bf16 %v1829, 1065369472
      %v1996 = vadd.bf16 %v1832, 1065369472
      %v1997 = vadd.bf16 %v1835, 1065369472
      %v1998 = vadd.bf16 %v1838, 1065369472
      %v1999 = vadd.bf16 %v1841, 1065369472
      %v2000 = vadd.bf16 %v1844, 1065369472
      %v2001 = vadd.bf16 %v1847, 1065369472
      %v2002 = vadd.bf16 %v1850, 1065369472
      %v2003 = vadd.bf16 %v1853, 1065369472
      %v2004 = vadd.bf16 %v1856, 1065369472
      %v2005 = vadd.bf16 %v1859, 1065369472
      %v2006 = vadd.bf16 %v1862, 1065369472
      %v2007 = vadd.bf16 %v1865, 1065369472
      %v2008 = vadd.bf16 %v1868, 1065369472
      %v2009 = vadd.bf16 %v1871, 1065369472
      %v2010 = vadd.bf16 %v1874, 1065369472
      %v2011 = vadd.bf16 %v1877, 1065369472
      %v2012 = vadd.bf16 %v1880, 1065369472
      %v2013 = vadd.bf16 %v1883, 1065369472
      %v2014 = vadd.bf16 %v1886, 1065369472
      %v2015 = vadd.bf16 %v1889, 1065369472
      %v2016 = vadd.bf16 %v1892, 1065369472
      %v2017 = vadd.bf16 %v1895, 1065369472
      %v2018 = vadd.bf16 %v1898, 1065369472
      %v2019 = vadd.bf16 %v1901, 1065369472
      %v2020 = vadd.bf16 %v1904, 1065369472
      %v2021 = vadd.bf16 %v1907, 1065369472
      %v2022 = vadd.bf16 %v1910, 1065369472
      %v2023 = vadd.bf16 %v1913, 1065369472
      %v2024 = vadd.bf16 %v1916, 1065369472
      %v2025 = vadd.bf16 %v1919, 1065369472
      %v2026 = vadd.bf16 %v1922, 1065369472
      %v2027 = vadd.bf16 %v1925, 1065369472
      %v2028 = vadd.bf16 %v1928, 1065369472
      %v2029 = vadd.bf16 %v1931, 1065369472
      %v2030 = vadd.bf16 %v1934, 1065369472
      %v2031 = vadd.bf16 %v1937, 1065369472
      %v2032 = vadd.bf16 %v1940, 1065369472
      %v2033 = vadd.bf16 %v1943, 1065369472
      %v2034 = vadd.bf16 %v1946, 1065369472
      %v2035 = vadd.bf16 %v1949, 1065369472
      %v2036 = vadd.bf16 %v1952, 1065369472
      %v2037 = vadd.bf16 %v1955, 1065369472
      %v2038 = vadd.bf16 %v1958, 1065369472
      %v2039 = vrcp.bf16.pop %v1959
      %v2040 = vmul.bf16 1065369472, %v2039
      %v2041 = vrcp.bf16.pop %v1960
      %v2042 = vmul.bf16 1065369472, %v2041
      %v2043 = vrcp.bf16.pop %v1961
      %v2044 = vmul.bf16 1065369472, %v2043
      %v2045 = vrcp.bf16.pop %v1962
      %v2046 = vmul.bf16 1065369472, %v2045
      %v2047 = vrcp.bf16.pop %v1963
      %v2048 = vmul.bf16 1065369472, %v2047
      %v2049 = vrcp.bf16.pop %v1964
      %v2050 = vmul.bf16 1065369472, %v2049
      %v2051 = vrcp.bf16.pop %v1965
      %v2052 = vmul.bf16 1065369472, %v2051
      %v2053 = vrcp.bf16.pop %v1966
      %v2054 = vmul.bf16 1065369472, %v2053
      %v2055 = vrcp.bf16.pop %v1967
      %v2056 = vmul.bf16 1065369472, %v2055
      %v2057 = vrcp.bf16.pop %v1968
      %v2058 = vmul.bf16 1065369472, %v2057
      %v2059 = vrcp.bf16.pop %v1969
      %v2060 = vmul.bf16 1065369472, %v2059
      %v2061 = vrcp.bf16.pop %v1970
      %v2062 = vmul.bf16 1065369472, %v2061
      %v2063 = vrcp.bf16.pop %v1971
      %v2064 = vmul.bf16 1065369472, %v2063
      %v2065 = vrcp.bf16.pop %v1972
      %v2066 = vmul.bf16 1065369472, %v2065
      %v2067 = vrcp.bf16.pop %v1973
      %v2068 = vmul.bf16 1065369472, %v2067
      %v2069 = vrcp.bf16.pop %v1974
      %v2070 = vmul.bf16 1065369472, %v2069
      %v2071 = vrcp.bf16.pop %v1975
      %v2072 = vmul.bf16 1065369472, %v2071
      %v2073 = vrcp.bf16.pop %v1976
      %v2074 = vmul.bf16 1065369472, %v2073
      %v2075 = vrcp.bf16.pop %v1977
      %v2076 = vmul.bf16 1065369472, %v2075
      %v2077 = vrcp.bf16.pop %v1978
      %v2078 = vmul.bf16 1065369472, %v2077
      %v2079 = vrcp.bf16.pop %v1979
      %v2080 = vmul.bf16 1065369472, %v2079
      %v2081 = vrcp.bf16.pop %v1980
      %v2082 = vmul.bf16 1065369472, %v2081
      %v2083 = vrcp.bf16.pop %v1981
      %v2084 = vmul.bf16 1065369472, %v2083
      %v2085 = vrcp.bf16.pop %v1982
      %v2086 = vmul.bf16 1065369472, %v2085
      %v2087 = vrcp.bf16.pop %v1983
      %v2088 = vmul.bf16 1065369472, %v2087
      %v2089 = vrcp.bf16.pop %v1984
      %v2090 = vmul.bf16 1065369472, %v2089
      %v2091 = vrcp.bf16.pop %v1985
      %v2092 = vmul.bf16 1065369472, %v2091
      %v2093 = vrcp.bf16.pop %v1986
      %v2094 = vmul.bf16 1065369472, %v2093
      %v2095 = vrcp.bf16.pop %v1987
      %v2096 = vmul.bf16 1065369472, %v2095
      %v2097 = vrcp.bf16.pop %v1988
      %v2098 = vmul.bf16 1065369472, %v2097
      %v2099 = vrcp.bf16.pop %v1989
      %v2100 = vmul.bf16 1065369472, %v2099
      %v2101 = vrcp.bf16.pop %v1990
      %v2102 = vmul.bf16 1065369472, %v2101
      %v2103 = vrcp.bf16.pop %v1991
      %v2104 = vmul.bf16 1065369472, %v2103
      %v2105 = vrcp.bf16.pop %v1992
      %v2106 = vmul.bf16 1065369472, %v2105
      %v2107 = vrcp.bf16.pop %v1993
      %v2108 = vmul.bf16 1065369472, %v2107
      %v2109 = vrcp.bf16.pop %v1994
      %v2110 = vmul.bf16 1065369472, %v2109
      %v2111 = vrcp.bf16.pop %v1995
      %v2112 = vmul.bf16 1065369472, %v2111
      %v2113 = vrcp.bf16.pop %v1996
      %v2114 = vmul.bf16 1065369472, %v2113
      %v2115 = vrcp.bf16.pop %v1997
      %v2116 = vmul.bf16 1065369472, %v2115
      %v2117 = vrcp.bf16.pop %v1998
      %v2118 = vmul.bf16 1065369472, %v2117
      %v2119 = vrcp.bf16.pop %v1999
      %v2120 = vmul.bf16 1065369472, %v2119
      %v2121 = vrcp.bf16.pop %v2000
      %v2122 = vmul.bf16 1065369472, %v2121
      %v2123 = vrcp.bf16.pop %v2001
      %v2124 = vmul.bf16 1065369472, %v2123
      %v2125 = vrcp.bf16.pop %v2002
      %v2126 = vmul.bf16 1065369472, %v2125
      %v2127 = vrcp.bf16.pop %v2003
      %v2128 = vmul.bf16 1065369472, %v2127
      %v2129 = vrcp.bf16.pop %v2004
      %v2130 = vmul.bf16 1065369472, %v2129
      %v2131 = vrcp.bf16.pop %v2005
      %v2132 = vmul.bf16 1065369472, %v2131
      %v2133 = vrcp.bf16.pop %v2006
      %v2134 = vmul.bf16 1065369472, %v2133
      %v2135 = vrcp.bf16.pop %v2007
      %v2136 = vmul.bf16 1065369472, %v2135
      %v2137 = vrcp.bf16.pop %v2008
      %v2138 = vmul.bf16 1065369472, %v2137
      %v2139 = vrcp.bf16.pop %v2009
      %v2140 = vmul.bf16 1065369472, %v2139
      %v2141 = vrcp.bf16.pop %v2010
      %v2142 = vmul.bf16 1065369472, %v2141
      %v2143 = vrcp.bf16.pop %v2011
      %v2144 = vmul.bf16 1065369472, %v2143
      %v2145 = vrcp.bf16.pop %v2012
      %v2146 = vmul.bf16 1065369472, %v2145
      %v2147 = vrcp.bf16.pop %v2013
      %v2148 = vmul.bf16 1065369472, %v2147
      %v2149 = vrcp.bf16.pop %v2014
      %v2150 = vmul.bf16 1065369472, %v2149
      %v2151 = vrcp.bf16.pop %v2015
      %v2152 = vmul.bf16 1065369472, %v2151
      %v2153 = vrcp.bf16.pop %v2016
      %v2154 = vmul.bf16 1065369472, %v2153
      %v2155 = vrcp.bf16.pop %v2017
      %v2156 = vmul.bf16 1065369472, %v2155
      %v2157 = vrcp.bf16.pop %v2018
      %v2158 = vmul.bf16 1065369472, %v2157
      %v2159 = vrcp.bf16.pop %v2019
      %v2160 = vmul.bf16 1065369472, %v2159
      %v2161 = vrcp.bf16.pop %v2020
      %v2162 = vmul.bf16 1065369472, %v2161
      %v2163 = vrcp.bf16.pop %v2021
      %v2164 = vmul.bf16 1065369472, %v2163
      %v2165 = vrcp.bf16.pop %v2022
      %v2166 = vmul.bf16 1065369472, %v2165
      %v2167 = vrcp.bf16.pop %v2023
      %v2168 = vmul.bf16 1065369472, %v2167
      %v2169 = vrcp.bf16.pop %v2024
      %v2170 = vmul.bf16 1065369472, %v2169
      %v2171 = vrcp.bf16.pop %v2025
      %v2172 = vmul.bf16 1065369472, %v2171
      %v2173 = vrcp.bf16.pop %v2026
      %v2174 = vmul.bf16 1065369472, %v2173
      %v2175 = vrcp.bf16.pop %v2027
      %v2176 = vmul.bf16 1065369472, %v2175
      %v2177 = vrcp.bf16.pop %v2028
      %v2178 = vmul.bf16 1065369472, %v2177
      %v2179 = vrcp.bf16.pop %v2029
      %v2180 = vmul.bf16 1065369472, %v2179
      %v2181 = vrcp.bf16.pop %v2030
      %v2182 = vmul.bf16 1065369472, %v2181
      %v2183 = vrcp.bf16.pop %v2031
      %v2184 = vmul.bf16 1065369472, %v2183
      %v2185 = vrcp.bf16.pop %v2032
      %v2186 = vmul.bf16 1065369472, %v2185
      %v2187 = vrcp.bf16.pop %v2033
      %v2188 = vmul.bf16 1065369472, %v2187
      %v2189 = vrcp.bf16.pop %v2034
      %v2190 = vmul.bf16 1065369472, %v2189
      %v2191 = vrcp.bf16.pop %v2035
      %v2192 = vmul.bf16 1065369472, %v2191
      %v2193 = vrcp.bf16.pop %v2036
      %v2194 = vmul.bf16 1065369472, %v2193
      %v2195 = vrcp.bf16.pop %v2037
      %v2196 = vmul.bf16 1065369472, %v2195
      %v2197 = vrcp.bf16.pop %v2038
      %v2198 = vmul.bf16 1065369472, %v2197
      %v2199 = vmul.bf16 %v1559, %v2040
      %v2200 = vmul.bf16 %v1560, %v2042
      %v2201 = vmul.bf16 %v1561, %v2044
      %v2202 = vmul.bf16 %v1562, %v2046
      %v2203 = vmul.bf16 %v1563, %v2048
      %v2204 = vmul.bf16 %v1564, %v2050
      %v2205 = vmul.bf16 %v1565, %v2052
      %v2206 = vmul.bf16 %v1566, %v2054
      %v2207 = vmul.bf16 %v1567, %v2056
      %v2208 = vmul.bf16 %v1568, %v2058
      %v2209 = vmul.bf16 %v1569, %v2060
      %v2210 = vmul.bf16 %v1570, %v2062
      %v2211 = vmul.bf16 %v1571, %v2064
      %v2212 = vmul.bf16 %v1572, %v2066
      %v2213 = vmul.bf16 %v1573, %v2068
      %v2214 = vmul.bf16 %v1574, %v2070
      %v2215 = vmul.bf16 %v1575, %v2072
      %v2216 = vmul.bf16 %v1576, %v2074
      %v2217 = vmul.bf16 %v1577, %v2076
      %v2218 = vmul.bf16 %v1578, %v2078
      %v2219 = vmul.bf16 %v1579, %v2080
      %v2220 = vmul.bf16 %v1580, %v2082
      %v2221 = vmul.bf16 %v1581, %v2084
      %v2222 = vmul.bf16 %v1582, %v2086
      %v2223 = vmul.bf16 %v1583, %v2088
      %v2224 = vmul.bf16 %v1584, %v2090
      %v2225 = vmul.bf16 %v1585, %v2092
      %v2226 = vmul.bf16 %v1586, %v2094
      %v2227 = vmul.bf16 %v1587, %v2096
      %v2228 = vmul.bf16 %v1588, %v2098
      %v2229 = vmul.bf16 %v1589, %v2100
      %v2230 = vmul.bf16 %v1590, %v2102
      %v2231 = vmul.bf16 %v1591, %v2104
      %v2232 = vmul.bf16 %v1592, %v2106
      %v2233 = vmul.bf16 %v1593, %v2108
      %v2234 = vmul.bf16 %v1594, %v2110
      %v2235 = vmul.bf16 %v1595, %v2112
      %v2236 = vmul.bf16 %v1596, %v2114
      %v2237 = vmul.bf16 %v1597, %v2116
      %v2238 = vmul.bf16 %v1598, %v2118
      %v2239 = vmul.bf16 %v1599, %v2120
      %v2240 = vmul.bf16 %v1600, %v2122
      %v2241 = vmul.bf16 %v1601, %v2124
      %v2242 = vmul.bf16 %v1602, %v2126
      %v2243 = vmul.bf16 %v1603, %v2128
      %v2244 = vmul.bf16 %v1604, %v2130
      %v2245 = vmul.bf16 %v1605, %v2132
      %v2246 = vmul.bf16 %v1606, %v2134
      %v2247 = vmul.bf16 %v1607, %v2136
      %v2248 = vmul.bf16 %v1608, %v2138
      %v2249 = vmul.bf16 %v1609, %v2140
      %v2250 = vmul.bf16 %v1610, %v2142
      %v2251 = vmul.bf16 %v1611, %v2144
      %v2252 = vmul.bf16 %v1612, %v2146
      %v2253 = vmul.bf16 %v1613, %v2148
      %v2254 = vmul.bf16 %v1614, %v2150
      %v2255 = vmul.bf16 %v1615, %v2152
      %v2256 = vmul.bf16 %v1616, %v2154
      %v2257 = vmul.bf16 %v1617, %v2156
      %v2258 = vmul.bf16 %v1618, %v2158
      %v2259 = vmul.bf16 %v1619, %v2160
      %v2260 = vmul.bf16 %v1620, %v2162
      %v2261 = vmul.bf16 %v1621, %v2164
      %v2262 = vmul.bf16 %v1622, %v2166
      %v2263 = vmul.bf16 %v1623, %v2168
      %v2264 = vmul.bf16 %v1624, %v2170
      %v2265 = vmul.bf16 %v1625, %v2172
      %v2266 = vmul.bf16 %v1626, %v2174
      %v2267 = vmul.bf16 %v1627, %v2176
      %v2268 = vmul.bf16 %v1628, %v2178
      %v2269 = vmul.bf16 %v1629, %v2180
      %v2270 = vmul.bf16 %v1630, %v2182
      %v2271 = vmul.bf16 %v1631, %v2184
      %v2272 = vmul.bf16 %v1632, %v2186
      %v2273 = vmul.bf16 %v1633, %v2188
      %v2274 = vmul.bf16 %v1634, %v2190
      %v2275 = vmul.bf16 %v1635, %v2192
      %v2276 = vmul.bf16 %v1636, %v2194
      %v2277 = vmul.bf16 %v1637, %v2196
      %v2278 = vmul.bf16 %v1638, %v2198
      %s2279 = smul.u32 %s23, 128
      %v2280 = vlaneseq
      %v2281 = vand.u32 %v2280, 127
      %v2282 = vstv %s2279
      %v2283 = vadd.s32 %v2282, %v2281
      %vm2284 = vcmp.lt.s32.totalorder %v2283, 256
      %v2285 = vsel %vm2284, 1, 0
      %v2286 = vcvt.s32.f32 %v2285
      %v2287 = vpack.c.bf16 %v2286, %v2286
      %v2288 = vld [vmem:[#allocation2] sm:$0xff]
      %v2289 = vld [vmem:[#allocation2 + $0x8] sm:$0x3]
      %2290 = vmatprep.subr.bf16.mxu0 %v2200
      %2291 = vmatpush1.bf16.msra.mxu0 %v2199
      %2292 = vmatprep.subr.bf16.mxu0 %v2210
      %2293 = vmatpush1.bf16.msra.mxu0 %v2209
      %2294 = vmatprep.subr.bf16.mxu0 %v2220
      %2295 = vmatpush1.bf16.msra.mxu0 %v2219
      %2296 = vmatprep.subr.bf16.mxu0 %v2230
      %2297 = vmatpush1.bf16.msra.mxu0 %v2229
      %2298 = vmatprep.subr.bf16.mxu0 %v2240
      %2299 = vmatpush1.bf16.msra.mxu0 %v2239
      %2300 = vmatprep.subr.bf16.mxu0 %v2250
      %2301 = vmatpush1.bf16.msra.mxu0 %v2249
      %2302 = vmatprep.subr.bf16.mxu0 %v2260
      %2303 = vmatpush1.bf16.msra.mxu0 %v2259
      %2304 = vmatprep.subr.bf16.mxu0 %v2270
      %2305 = vmatpush1.bf16.msra.mxu0 %v2269
      %2306 = vmatprep.subr.bf16.mxu0 0
      %2307 = vmatpush1.bf16.msra.mxu0 0
      %2308 = vmatprep.subr.bf16.mxu0 0
      %2309 = vmatpush1.bf16.msra.mxu0 0
      %2310 = vmatprep.subr.bf16.mxu0 0
      %2311 = vmatpush1.bf16.msra.mxu0 0
      %2312 = vmatprep.subr.bf16.mxu0 0
      %2313 = vmatpush1.bf16.msra.mxu0 0
      %2314 = vmatprep.subr.bf16.mxu0 0
      %2315 = vmatpush1.bf16.msra.mxu0 0
      %2316 = vmatprep.subr.bf16.mxu0 0
      %2317 = vmatpush1.bf16.msra.mxu0 0
      %2318 = vmatprep.subr.bf16.mxu0 0
      %2319 = vmatpush1.bf16.msra.mxu0 0
      %2320 = vmatprep.subr.bf16.mxu0 0
      %2321 = vmatpush1.bf16.msra.mxu0 0
      %2322 = vmatprep.mubr.bf16.mxu0 0
      %2323 = vmatmul.mubr.bf16.gmra.mrb[0].mxu0 %v2287
      %v2324 = vpop.f32.mrb[0].mxu0
      %v2325 = vadd.f32 0.0, %v2324
      %v2326 = vpop.f32.mrb[0].mxu0
      %v2327 = vadd.f32 0.0, %v2326
      %v2328 = vpop.f32.mrb[0].mxu0
      %v2329 = vpop.f32.mrb[0].mxu0
      %2330 = vdwg.mxu0
      %2331 = vmatprep.subr.bf16.mxu0 %v2202
      %2332 = vmatpush1.bf16.msra.mxu0 %v2201
      %2333 = vmatprep.subr.bf16.mxu0 %v2212
      %2334 = vmatpush1.bf16.msra.mxu0 %v2211
      %2335 = vmatprep.subr.bf16.mxu0 %v2222
      %2336 = vmatpush1.bf16.msra.mxu0 %v2221
      %2337 = vmatprep.subr.bf16.mxu0 %v2232
      %2338 = vmatpush1.bf16.msra.mxu0 %v2231
      %2339 = vmatprep.subr.bf16.mxu0 %v2242
      %2340 = vmatpush1.bf16.msra.mxu0 %v2241
      %2341 = vmatprep.subr.bf16.mxu0 %v2252
      %2342 = vmatpush1.bf16.msra.mxu0 %v2251
      %2343 = vmatprep.subr.bf16.mxu0 %v2262
      %2344 = vmatpush1.bf16.msra.mxu0 %v2261
      %2345 = vmatprep.subr.bf16.mxu0 %v2272
      %2346 = vmatpush1.bf16.msra.mxu0 %v2271
      %2347 = vmatprep.subr.bf16.mxu0 0
      %2348 = vmatpush1.bf16.msra.mxu0 0
      %2349 = vmatprep.subr.bf16.mxu0 0
      %2350 = vmatpush1.bf16.msra.mxu0 0
      %2351 = vmatprep.subr.bf16.mxu0 0
      %2352 = vmatpush1.bf16.msra.mxu0 0
      %2353 = vmatprep.subr.bf16.mxu0 0
      %2354 = vmatpush1.bf16.msra.mxu0 0
      %2355 = vmatprep.subr.bf16.mxu0 0
      %2356 = vmatpush1.bf16.msra.mxu0 0
      %2357 = vmatprep.subr.bf16.mxu0 0
      %2358 = vmatpush1.bf16.msra.mxu0 0
      %2359 = vmatprep.subr.bf16.mxu0 0
      %2360 = vmatpush1.bf16.msra.mxu0 0
      %2361 = vmatprep.subr.bf16.mxu0 0
      %2362 = vmatpush1.bf16.msra.mxu0 0
      %2363 = vmatprep.mubr.bf16.mxu0 0
      %2364 = vmatmul.mubr.bf16.gmra.mrb[0].mxu0 %v2287
      %v2365 = vpop.f32.mrb[0].mxu0
      %v2366 = vadd.f32 0.0, %v2365
      %v2367 = vpop.f32.mrb[0].mxu0
      %v2368 = vadd.f32 0.0, %v2367
      %v2369 = vpop.f32.mrb[0].mxu0
      %v2370 = vpop.f32.mrb[0].mxu0
      %2371 = vdwg.mxu0
      %2372 = vmatprep.subr.bf16.mxu0 %v2204
      %2373 = vmatpush1.bf16.msra.mxu0 %v2203
      %2374 = vmatprep.subr.bf16.mxu0 %v2214
      %2375 = vmatpush1.bf16.msra.mxu0 %v2213
      %2376 = vmatprep.subr.bf16.mxu0 %v2224
      %2377 = vmatpush1.bf16.msra.mxu0 %v2223
      %2378 = vmatprep.subr.bf16.mxu0 %v2234
      %2379 = vmatpush1.bf16.msra.mxu0 %v2233
      %2380 = vmatprep.subr.bf16.mxu0 %v2244
      %2381 = vmatpush1.bf16.msra.mxu0 %v2243
      %2382 = vmatprep.subr.bf16.mxu0 %v2254
      %2383 = vmatpush1.bf16.msra.mxu0 %v2253
      %2384 = vmatprep.subr.bf16.mxu0 %v2264
      %2385 = vmatpush1.bf16.msra.mxu0 %v2263
      %2386 = vmatprep.subr.bf16.mxu0 %v2274
      %2387 = vmatpush1.bf16.msra.mxu0 %v2273
      %2388 = vmatprep.subr.bf16.mxu0 0
      %2389 = vmatpush1.bf16.msra.mxu0 0
      %2390 = vmatprep.subr.bf16.mxu0 0
      %2391 = vmatpush1.bf16.msra.mxu0 0
      %2392 = vmatprep.subr.bf16.mxu0 0
      %2393 = vmatpush1.bf16.msra.mxu0 0
      %2394 = vmatprep.subr.bf16.mxu0 0
      %2395 = vmatpush1.bf16.msra.mxu0 0
      %2396 = vmatprep.subr.bf16.mxu0 0
      %2397 = vmatpush1.bf16.msra.mxu0 0
      %2398 = vmatprep.subr.bf16.mxu0 0
      %2399 = vmatpush1.bf16.msra.mxu0 0
      %2400 = vmatprep.subr.bf16.mxu0 0
      %2401 = vmatpush1.bf16.msra.mxu0 0
      %2402 = vmatprep.subr.bf16.mxu0 0
      %2403 = vmatpush1.bf16.msra.mxu0 0
      %2404 = vmatprep.mubr.bf16.mxu0 0
      %2405 = vmatmul.mubr.bf16.gmra.mrb[0].mxu0 %v2287
      %v2406 = vpop.f32.mrb[0].mxu0
      %v2407 = vadd.f32 0.0, %v2406
      %v2408 = vpop.f32.mrb[0].mxu0
      %v2409 = vadd.f32 0.0, %v2408
      %v2410 = vpop.f32.mrb[0].mxu0
      %v2411 = vpop.f32.mrb[0].mxu0
      %2412 = vdwg.mxu0
      %2413 = vmatprep.subr.bf16.mxu0 %v2206
      %2414 = vmatpush1.bf16.msra.mxu0 %v2205
      %2415 = vmatprep.subr.bf16.mxu0 %v2216
      %2416 = vmatpush1.bf16.msra.mxu0 %v2215
      %2417 = vmatprep.subr.bf16.mxu0 %v2226
      %2418 = vmatpush1.bf16.msra.mxu0 %v2225
      %2419 = vmatprep.subr.bf16.mxu0 %v2236
      %2420 = vmatpush1.bf16.msra.mxu0 %v2235
      %2421 = vmatprep.subr.bf16.mxu0 %v2246
      %2422 = vmatpush1.bf16.msra.mxu0 %v2245
      %2423 = vmatprep.subr.bf16.mxu0 %v2256
      %2424 = vmatpush1.bf16.msra.mxu0 %v2255
      %2425 = vmatprep.subr.bf16.mxu0 %v2266
      %2426 = vmatpush1.bf16.msra.mxu0 %v2265
      %2427 = vmatprep.subr.bf16.mxu0 %v2276
      %2428 = vmatpush1.bf16.msra.mxu0 %v2275
      %2429 = vmatprep.subr.bf16.mxu0 0
      %2430 = vmatpush1.bf16.msra.mxu0 0
      %2431 = vmatprep.subr.bf16.mxu0 0
      %2432 = vmatpush1.bf16.msra.mxu0 0
      %2433 = vmatprep.subr.bf16.mxu0 0
      %2434 = vmatpush1.bf16.msra.mxu0 0
      %2435 = vmatprep.subr.bf16.mxu0 0
      %2436 = vmatpush1.bf16.msra.mxu0 0
      %2437 = vmatprep.subr.bf16.mxu0 0
      %2438 = vmatpush1.bf16.msra.mxu0 0
      %2439 = vmatprep.subr.bf16.mxu0 0
      %2440 = vmatpush1.bf16.msra.mxu0 0
      %2441 = vmatprep.subr.bf16.mxu0 0
      %2442 = vmatpush1.bf16.msra.mxu0 0
      %2443 = vmatprep.subr.bf16.mxu0 0
      %2444 = vmatpush1.bf16.msra.mxu0 0
      %2445 = vmatprep.mubr.bf16.mxu0 0
      %2446 = vmatmul.mubr.bf16.gmra.mrb[0].mxu0 %v2287
      %v2447 = vpop.f32.mrb[0].mxu0
      %v2448 = vadd.f32 0.0, %v2447
      %v2449 = vpop.f32.mrb[0].mxu0
      %v2450 = vadd.f32 0.0, %v2449
      %v2451 = vpop.f32.mrb[0].mxu0
      %v2452 = vpop.f32.mrb[0].mxu0
      %2453 = vdwg.mxu0
      %2454 = vmatprep.subr.bf16.mxu0 %v2208
      %2455 = vmatpush1.bf16.msra.mxu0 %v2207
      %2456 = vmatprep.subr.bf16.mxu0 %v2218
      %2457 = vmatpush1.bf16.msra.mxu0 %v2217
      %2458 = vmatprep.subr.bf16.mxu0 %v2228
      %2459 = vmatpush1.bf16.msra.mxu0 %v2227
      %2460 = vmatprep.subr.bf16.mxu0 %v2238
      %2461 = vmatpush1.bf16.msra.mxu0 %v2237
      %2462 = vmatprep.subr.bf16.mxu0 %v2248
      %2463 = vmatpush1.bf16.msra.mxu0 %v2247
      %2464 = vmatprep.subr.bf16.mxu0 %v2258
      %2465 = vmatpush1.bf16.msra.mxu0 %v2257
      %2466 = vmatprep.subr.bf16.mxu0 %v2268
      %2467 = vmatpush1.bf16.msra.mxu0 %v2267
      %2468 = vmatprep.subr.bf16.mxu0 %v2278
      %2469 = vmatpush1.bf16.msra.mxu0 %v2277
      %2470 = vmatprep.subr.bf16.mxu0 0
      %2471 = vmatpush1.bf16.msra.mxu0 0
      %2472 = vmatprep.subr.bf16.mxu0 0
      %2473 = vmatpush1.bf16.msra.mxu0 0
      %2474 = vmatprep.subr.bf16.mxu0 0
      %2475 = vmatpush1.bf16.msra.mxu0 0
      %2476 = vmatprep.subr.bf16.mxu0 0
      %2477 = vmatpush1.bf16.msra.mxu0 0
      %2478 = vmatprep.subr.bf16.mxu0 0
      %2479 = vmatpush1.bf16.msra.mxu0 0
      %2480 = vmatprep.subr.bf16.mxu0 0
      %2481 = vmatpush1.bf16.msra.mxu0 0
      %2482 = vmatprep.subr.bf16.mxu0 0
      %2483 = vmatpush1.bf16.msra.mxu0 0
      %2484 = vmatprep.subr.bf16.mxu0 0
      %2485 = vmatpush1.bf16.msra.mxu0 0
      %2486 = vmatprep.mubr.bf16.mxu0 0
      %2487 = vmatmul.mubr.bf16.gmra.mrb[0].mxu0 %v2287
      %v2488 = vpop.f32.mrb[0].mxu0
      %v2489 = vadd.f32 0.0, %v2488
      %v2490 = vpop.f32.mrb[0].mxu0
      %v2491 = vadd.f32 0.0, %v2490
      %v2492 = vpop.f32.mrb[0].mxu0
      %v2493 = vpop.f32.mrb[0].mxu0
      %2494 = vdwg.mxu0
      %v2505 = vcombine.low %v2325, %v2327
      %v2506 = vcombine.low %v2366, %v2368
      %v2507 = vcombine.low %v2407, %v2409
      %v2508 = vcombine.low %v2448, %v2450
      %v2510 = vunpack.c.l.s4 1966171168
      %v2511 = vunpack.c.0.s8 %v2510
      %v2512 = vlaneseq
      %v2513 = vshrl.u32 %v2512, 7
      %v2514 = vsub.s32 %v2511, %v2513
      %v2515 = vrot.slane %v2505, %v2514
      %v2517 = vunpack.c.l.s4 1966171168
      %v2518 = vunpack.c.0.s8 %v2517
      %v2519 = vlaneseq
      %v2520 = vshrl.u32 %v2519, 7
      %v2521 = vsub.s32 %v2518, %v2520
      %v2522 = vrot.slane %v2506, %v2521
      %v2524 = vunpack.c.l.s4 1966171168
      %v2525 = vunpack.c.0.s8 %v2524
      %v2526 = vlaneseq
      %v2527 = vshrl.u32 %v2526, 7
      %v2528 = vsub.s32 %v2525, %v2527
      %v2529 = vrot.slane %v2507, %v2528
      %v2531 = vunpack.c.l.s4 1966171168
      %v2532 = vunpack.c.0.s8 %v2531
      %v2533 = vlaneseq
      %v2534 = vshrl.u32 %v2533, 7
      %v2535 = vsub.s32 %v2532, %v2534
      %v2536 = vrot.slane %v2508, %v2535
      %v2537 = vcombine.low %v2515, %v2522
      %v2538 = vcombine.low %v2529, %v2536
      %v2540 = vunpack.c.l.s4 1966171168
      %v2541 = vunpack.c.0.s8 %v2540
      %v2542 = vlaneseq
      %v2543 = vshrl.u32 %v2542, 7
      %v2544 = vsub.s32 %v2541, %v2543
      %v2545 = vrot.slane %v2537, %v2544
      %v2547 = vunpack.c.l.s4 1966171168
      %v2548 = vunpack.c.0.s8 %v2547
      %v2549 = vlaneseq
      %v2550 = vshrl.u32 %v2549, 7
      %v2551 = vsub.s32 %v2548, %v2550
      %v2552 = vrot.slane %v2538, %v2551
      %v2553 = vcombine.low %v2545, %v2552
      %v2554 = vcombine.low %v2489, %v2491
      %v2556 = vunpack.c.l.s4 1966171168
      %v2557 = vunpack.c.0.s8 %v2556
      %v2558 = vlaneseq
      %v2559 = vshrl.u32 %v2558, 7
      %v2560 = vsub.s32 %v2557, %v2559
      %v2561 = vrot.slane %v2554, %v2560
      %v2563 = vunpack.c.l.s4 1966171168
      %v2564 = vunpack.c.0.s8 %v2563
      %v2565 = vlaneseq
      %v2566 = vshrl.u32 %v2565, 7
      %v2567 = vsub.s32 %v2564, %v2566
      %v2568 = vrot.slane %v2561, %v2567
      %v2571 = vadd.f32 %v2288, %v2553
      %v2572 = vadd.f32 %v2289, %v2568
      %2573 = vst [vmem:[#allocation2] sm:$0xff] %v2571
      %v2574 = vlaneseq
      %vm2575 = vcmp.ge.s32.totalorder %v2574, 0
      %vm2576 = vcmp.lt.s32.totalorder %v2574, 256
      %vm2577 = vmand %vm2575, %vm2576
      %2578 = vst.msk [vmem:[#allocation2 + $0x8] sm:$0x3] %vm2577, %v2572
      %p2579 = scmp.eq.s32.totalorder %s23, 1
      // Predicated region
      $region53: #{multitask_forward.1} parent=47 // pred_check
        %p2580 = pneg %p2579
      $region54: #{multitask_forward.1} parent=47 // pred_check_branch
        %2582 = sbr.rel (%p2580) target = $region56
      $region55: #{multitask_forward.1} parent=47 // pred_region
        %v2583 = vld [vmem:[#allocation2] sm:$0xff]
        %v2584 = vld [vmem:[#allocation2 + $0x8] sm:$0x3]
        %v2585 = vmul.f32 %v2583, 0.00390625
        %v2586 = vmul.f32 %v2584, 0.00390625
        %v2589 = vlaneseq
        %v2590 = vshrl.u32 %v2589, 7
        %v2591 = vsub.s32 0, %v2590
        %v2592 = vrot.slane %v2585, %v2591
        %v2593 = vlaneseq
        %v2594 = vshrl.u32 %v2593, 7
        %v2595 = vsub.s32 1, %v2594
        %v2596 = vrot.slane %v2585, %v2595
        %v2597 = vlaneseq
        %v2598 = vshrl.u32 %v2597, 7
        %v2599 = vsub.s32 2, %v2598
        %v2600 = vrot.slane %v2585, %v2599
        %v2601 = vlaneseq
        %v2602 = vshrl.u32 %v2601, 7
        %v2603 = vsub.s32 3, %v2602
        %v2604 = vrot.slane %v2585, %v2603
        %v2605 = vlaneseq
        %v2606 = vshrl.u32 %v2605, 7
        %v2607 = vsub.s32 4, %v2606
        %v2608 = vrot.slane %v2585, %v2607
        %v2609 = vlaneseq
        %v2610 = vshrl.u32 %v2609, 7
        %v2611 = vsub.s32 5, %v2610
        %v2612 = vrot.slane %v2585, %v2611
        %v2613 = vlaneseq
        %v2614 = vshrl.u32 %v2613, 7
        %v2615 = vsub.s32 6, %v2614
        %v2616 = vrot.slane %v2585, %v2615
        %v2617 = vlaneseq
        %v2618 = vshrl.u32 %v2617, 7
        %v2619 = vsub.s32 7, %v2618
        %v2620 = vrot.slane %v2585, %v2619
        %v2621 = vlaneseq
        %v2622 = vshrl.u32 %v2621, 7
        %v2623 = vsub.s32 0, %v2622
        %v2624 = vrot.slane %v2586, %v2623
        %v2625 = vlaneseq
        %v2626 = vshrl.u32 %v2625, 7
        %v2627 = vsub.s32 1, %v2626
        %v2628 = vrot.slane %v2586, %v2627
        %v2639 = vpack.c.bf16 %v2592, %v2592
        %v2640 = vpack.c.bf16 %v2596, %v2596
        %v2641 = vpack.c.bf16 %v2600, %v2600
        %v2642 = vpack.c.bf16 %v2604, %v2604
        %v2643 = vpack.c.bf16 %v2608, %v2608
        %v2644 = vpack.c.bf16 %v2612, %v2612
        %v2645 = vpack.c.bf16 %v2616, %v2616
        %v2646 = vpack.c.bf16 %v2620, %v2620
        %v2647 = vpack.c.bf16 %v2624, %v2624
        %v2648 = vpack.c.bf16 %v2628, %v2628
        %v2649 = vld [vmem:[%s5] sm:$0xf]
        %v2650 = vld [vmem:[%s5 + $0x4] sm:$0xf]
        %v2651 = vld [vmem:[%s5 + $0x8] sm:$0xf]
        %v2652 = vld [vmem:[%s5 + $0xc] sm:$0xf]
        %v2653 = vld [vmem:[%s5 + $0x10] sm:$0xf]
        %v2654 = vld [vmem:[%s5 + $0x14] sm:$0xf]
        %v2655 = vld [vmem:[%s5 + $0x18] sm:$0xf]
        %v2656 = vld [vmem:[%s5 + $0x1c] sm:$0xf]
        %v2657 = vld [vmem:[%s5 + $0x20] sm:$0xf]
        %v2658 = vld [vmem:[%s5 + $0x24] sm:$0xf]
        %v2659 = vld [vmem:[%s5 + $0x28] sm:$0xf]
        %v2660 = vld [vmem:[%s5 + $0x2c] sm:$0xf]
        %v2661 = vld [vmem:[%s5 + $0x30] sm:$0xf]
        %v2662 = vld [vmem:[%s5 + $0x34] sm:$0xf]
        %v2663 = vld [vmem:[%s5 + $0x38] sm:$0xf]
        %v2664 = vld [vmem:[%s5 + $0x3c] sm:$0xf]
        %v2665 = vld [vmem:[%s5 + $0x40] sm:$0xf]
        %v2666 = vld [vmem:[%s5 + $0x44] sm:$0xf]
        %v2667 = vld [vmem:[%s5 + $0x48] sm:$0xf]
        %v2668 = vld [vmem:[%s5 + $0x4c] sm:$0xf]
        %v2669 = vld [vmem:[%s5 + $0x50] sm:$0xf]
        %v2670 = vld [vmem:[%s5 + $0x54] sm:$0xf]
        %v2671 = vld [vmem:[%s5 + $0x58] sm:$0xf]
        %v2672 = vld [vmem:[%s5 + $0x5c] sm:$0xf]
        %v2673 = vld [vmem:[%s5 + $0x60] sm:$0xf]
        %v2674 = vld [vmem:[%s5 + $0x64] sm:$0xf]
        %v2675 = vld [vmem:[%s5 + $0x68] sm:$0xf]
        %v2676 = vld [vmem:[%s5 + $0x6c] sm:$0xf]
        %v2677 = vld [vmem:[%s5 + $0x70] sm:$0xf]
        %v2678 = vld [vmem:[%s5 + $0x74] sm:$0xf]
        %v2679 = vld [vmem:[%s5 + $0x78] sm:$0xf]
        %v2680 = vld [vmem:[%s5 + $0x7c] sm:$0xf]
        %v2681 = vld [vmem:[%s5 + $0x80] sm:$0xf]
        %v2682 = vld [vmem:[%s5 + $0x84] sm:$0xf]
        %v2683 = vld [vmem:[%s5 + $0x88] sm:$0xf]
        %v2684 = vld [vmem:[%s5 + $0x8c] sm:$0xf]
        %v2685 = vld [vmem:[%s5 + $0x90] sm:$0xf]
        %v2686 = vld [vmem:[%s5 + $0x94] sm:$0xf]
        %v2687 = vld [vmem:[%s5 + $0x98] sm:$0xf]
        %v2688 = vld [vmem:[%s5 + $0x9c] sm:$0xf]
        %v2689 = vld [vmem:[%s5 + $0xa0] sm:$0xf]
        %v2690 = vld [vmem:[%s5 + $0xa4] sm:$0xf]
        %v2691 = vld [vmem:[%s5 + $0xa8] sm:$0xf]
        %v2692 = vld [vmem:[%s5 + $0xac] sm:$0xf]
        %v2693 = vld [vmem:[%s5 + $0xb0] sm:$0xf]
        %v2694 = vld [vmem:[%s5 + $0xb4] sm:$0xf]
        %v2695 = vld [vmem:[%s5 + $0xb8] sm:$0xf]
        %v2696 = vld [vmem:[%s5 + $0xbc] sm:$0xf]
        %v2697 = vld [vmem:[%s5 + $0xc0] sm:$0xf]
        %v2698 = vld [vmem:[%s5 + $0xc4] sm:$0xf]
        %v2699 = vld [vmem:[%s5 + $0xc8] sm:$0xf]
        %v2700 = vld [vmem:[%s5 + $0xcc] sm:$0xf]
        %v2701 = vld [vmem:[%s5 + $0xd0] sm:$0xf]
        %v2702 = vld [vmem:[%s5 + $0xd4] sm:$0xf]
        %v2703 = vld [vmem:[%s5 + $0xd8] sm:$0xf]
        %v2704 = vld [vmem:[%s5 + $0xdc] sm:$0xf]
        %v2705 = vld [vmem:[%s5 + $0xe0] sm:$0xf]
        %v2706 = vld [vmem:[%s5 + $0xe4] sm:$0xf]
        %v2707 = vld [vmem:[%s5 + $0xe8] sm:$0xf]
        %v2708 = vld [vmem:[%s5 + $0xec] sm:$0xf]
        %v2709 = vld [vmem:[%s5 + $0xf0] sm:$0xf]
        %v2710 = vld [vmem:[%s5 + $0xf4] sm:$0xf]
        %v2711 = vld [vmem:[%s5 + $0xf8] sm:$0xf]
        %v2712 = vld [vmem:[%s5 + $0xfc] sm:$0xf]
        %v2713 = vld [vmem:[%s5 + $0x100] sm:$0xf]
        %v2714 = vld [vmem:[%s5 + $0x104] sm:$0xf]
        %v2715 = vld [vmem:[%s5 + $0x108] sm:$0xf]
        %v2716 = vld [vmem:[%s5 + $0x10c] sm:$0xf]
        %v2717 = vld [vmem:[%s5 + $0x110] sm:$0xf]
        %v2718 = vld [vmem:[%s5 + $0x114] sm:$0xf]
        %v2719 = vld [vmem:[%s5 + $0x118] sm:$0xf]
        %v2720 = vld [vmem:[%s5 + $0x11c] sm:$0xf]
        %v2721 = vld [vmem:[%s5 + $0x120] sm:$0xf]
        %v2722 = vld [vmem:[%s5 + $0x124] sm:$0xf]
        %v2723 = vld [vmem:[%s5 + $0x128] sm:$0xf]
        %v2724 = vld [vmem:[%s5 + $0x12c] sm:$0xf]
        %v2725 = vld [vmem:[%s5 + $0x130] sm:$0xf]
        %v2726 = vld [vmem:[%s5 + $0x134] sm:$0xf]
        %v2727 = vld [vmem:[%s5 + $0x138] sm:$0xf]
        %v2728 = vld [vmem:[%s5 + $0x13c] sm:$0xf]
        %v2729 = vld [vmem:[%s5 + $0x140] sm:$0xf]
        %v2730 = vld [vmem:[%s5 + $0x144] sm:$0xf]
        %v2731 = vld [vmem:[%s5 + $0x148] sm:$0xf]
        %v2732 = vld [vmem:[%s5 + $0x14c] sm:$0xf]
        %v2733 = vld [vmem:[%s5 + $0x150] sm:$0xf]
        %v2734 = vld [vmem:[%s5 + $0x154] sm:$0xf]
        %v2735 = vld [vmem:[%s5 + $0x158] sm:$0xf]
        %v2736 = vld [vmem:[%s5 + $0x15c] sm:$0xf]
        %v2737 = vld [vmem:[%s5 + $0x160] sm:$0xf]
        %v2738 = vld [vmem:[%s5 + $0x164] sm:$0xf]
        %v2739 = vld [vmem:[%s5 + $0x168] sm:$0xf]
        %v2740 = vld [vmem:[%s5 + $0x16c] sm:$0xf]
        %v2741 = vld [vmem:[%s5 + $0x170] sm:$0xf]
        %v2742 = vld [vmem:[%s5 + $0x174] sm:$0xf]
        %v2743 = vld [vmem:[%s5 + $0x178] sm:$0xf]
        %v2744 = vld [vmem:[%s5 + $0x17c] sm:$0xf]
        %v2745 = vld [vmem:[%s5 + $0x180] sm:$0xf]
        %v2746 = vld [vmem:[%s5 + $0x184] sm:$0xf]
        %v2747 = vld [vmem:[%s5 + $0x188] sm:$0xf]
        %v2748 = vld [vmem:[%s5 + $0x18c] sm:$0xf]
        %v2749 = vld [vmem:[%s5 + $0x190] sm:$0xf]
        %v2750 = vld [vmem:[%s5 + $0x194] sm:$0xf]
        %v2751 = vld [vmem:[%s5 + $0x198] sm:$0xf]
        %v2752 = vld [vmem:[%s5 + $0x19c] sm:$0xf]
        %v2753 = vld [vmem:[%s5 + $0x1a0] sm:$0xf]
        %v2754 = vld [vmem:[%s5 + $0x1a4] sm:$0xf]
        %v2755 = vld [vmem:[%s5 + $0x1a8] sm:$0xf]
        %v2756 = vld [vmem:[%s5 + $0x1ac] sm:$0xf]
        %v2757 = vld [vmem:[%s5 + $0x1b0] sm:$0xf]
        %v2758 = vld [vmem:[%s5 + $0x1b4] sm:$0xf]
        %v2759 = vld [vmem:[%s5 + $0x1b8] sm:$0xf]
        %v2760 = vld [vmem:[%s5 + $0x1bc] sm:$0xf]
        %v2761 = vld [vmem:[%s5 + $0x1c0] sm:$0xf]
        %v2762 = vld [vmem:[%s5 + $0x1c4] sm:$0xf]
        %v2763 = vld [vmem:[%s5 + $0x1c8] sm:$0xf]
        %v2764 = vld [vmem:[%s5 + $0x1cc] sm:$0xf]
        %v2765 = vld [vmem:[%s5 + $0x1d0] sm:$0xf]
        %v2766 = vld [vmem:[%s5 + $0x1d4] sm:$0xf]
        %v2767 = vld [vmem:[%s5 + $0x1d8] sm:$0xf]
        %v2768 = vld [vmem:[%s5 + $0x1dc] sm:$0xf]
        %v2769 = vld [vmem:[%s5 + $0x1e0] sm:$0xf]
        %v2770 = vld [vmem:[%s5 + $0x1e4] sm:$0xf]
        %v2771 = vld [vmem:[%s5 + $0x1e8] sm:$0xf]
        %v2772 = vld [vmem:[%s5 + $0x1ec] sm:$0xf]
        %v2773 = vld [vmem:[%s5 + $0x1f0] sm:$0xf]
        %v2774 = vld [vmem:[%s5 + $0x1f4] sm:$0xf]
        %v2775 = vld [vmem:[%s5 + $0x1f8] sm:$0xf]
        %v2776 = vld [vmem:[%s5 + $0x1fc] sm:$0xf]
        %v2777 = vld [vmem:[%s5 + $0x200] sm:$0xf]
        %v2778 = vld [vmem:[%s5 + $0x204] sm:$0xf]
        %v2779 = vld [vmem:[%s5 + $0x208] sm:$0xf]
        %v2780 = vld [vmem:[%s5 + $0x20c] sm:$0xf]
        %v2781 = vld [vmem:[%s5 + $0x210] sm:$0xf]
        %v2782 = vld [vmem:[%s5 + $0x214] sm:$0xf]
        %v2783 = vld [vmem:[%s5 + $0x218] sm:$0xf]
        %v2784 = vld [vmem:[%s5 + $0x21c] sm:$0xf]
        %v2785 = vld [vmem:[%s5 + $0x220] sm:$0xf]
        %v2786 = vld [vmem:[%s5 + $0x224] sm:$0xf]
        %v2787 = vld [vmem:[%s5 + $0x228] sm:$0xf]
        %v2788 = vld [vmem:[%s5 + $0x22c] sm:$0xf]
        %v2789 = vld [vmem:[%s5 + $0x230] sm:$0xf]
        %v2790 = vld [vmem:[%s5 + $0x234] sm:$0xf]
        %v2791 = vld [vmem:[%s5 + $0x238] sm:$0xf]
        %v2792 = vld [vmem:[%s5 + $0x23c] sm:$0xf]
        %v2793 = vld [vmem:[%s5 + $0x240] sm:$0xf]
        %v2794 = vld [vmem:[%s5 + $0x244] sm:$0xf]
        %v2795 = vld [vmem:[%s5 + $0x248] sm:$0xf]
        %v2796 = vld [vmem:[%s5 + $0x24c] sm:$0xf]
        %v2797 = vld [vmem:[%s5 + $0x250] sm:$0xf]
        %v2798 = vld [vmem:[%s5 + $0x254] sm:$0xf]
        %v2799 = vld [vmem:[%s5 + $0x258] sm:$0xf]
        %v2800 = vld [vmem:[%s5 + $0x25c] sm:$0xf]
        %v2801 = vld [vmem:[%s5 + $0x260] sm:$0xf]
        %v2802 = vld [vmem:[%s5 + $0x264] sm:$0xf]
        %v2803 = vld [vmem:[%s5 + $0x268] sm:$0xf]
        %v2804 = vld [vmem:[%s5 + $0x26c] sm:$0xf]
        %v2805 = vld [vmem:[%s5 + $0x270] sm:$0xf]
        %v2806 = vld [vmem:[%s5 + $0x274] sm:$0xf]
        %v2807 = vld [vmem:[%s5 + $0x278] sm:$0xf]
        %v2808 = vld [vmem:[%s5 + $0x27c] sm:$0xf]
        %v2809 = vld [vmem:[%s6] sm:$0x1]
        %v2970 = vunpack.c.l.b16 %v2649
        %v2971 = vunpack.c.l.b16 %v2650
        %v2972 = vunpack.c.l.b16 %v2651
        %v2973 = vunpack.c.l.b16 %v2652
        %v2974 = vunpack.c.l.b16 %v2653
        %v2975 = vunpack.c.l.b16 %v2654
        %v2976 = vunpack.c.l.b16 %v2655
        %v2977 = vunpack.c.l.b16 %v2656
        %v2978 = vunpack.c.l.b16 %v2657
        %v2979 = vunpack.c.l.b16 %v2658
        %v2980 = vunpack.c.l.b16 %v2659
        %v2981 = vunpack.c.l.b16 %v2660
        %v2982 = vunpack.c.l.b16 %v2661
        %v2983 = vunpack.c.l.b16 %v2662
        %v2984 = vunpack.c.l.b16 %v2663
        %v2985 = vunpack.c.l.b16 %v2664
        %v2986 = vunpack.c.l.b16 %v2665
        %v2987 = vunpack.c.l.b16 %v2666
        %v2988 = vunpack.c.l.b16 %v2667
        %v2989 = vunpack.c.l.b16 %v2668
        %v2990 = vunpack.c.l.b16 %v2669
        %v2991 = vunpack.c.l.b16 %v2670
        %v2992 = vunpack.c.l.b16 %v2671
        %v2993 = vunpack.c.l.b16 %v2672
        %v2994 = vunpack.c.l.b16 %v2673
        %v2995 = vunpack.c.l.b16 %v2674
        %v2996 = vunpack.c.l.b16 %v2675
        %v2997 = vunpack.c.l.b16 %v2676
        %v2998 = vunpack.c.l.b16 %v2677
        %v2999 = vunpack.c.l.b16 %v2678
        %v3000 = vunpack.c.l.b16 %v2679
        %v3001 = vunpack.c.l.b16 %v2680
        %v3002 = vunpack.c.l.b16 %v2681
        %v3003 = vunpack.c.l.b16 %v2682
        %v3004 = vunpack.c.l.b16 %v2683
        %v3005 = vunpack.c.l.b16 %v2684
        %v3006 = vunpack.c.l.b16 %v2685
        %v3007 = vunpack.c.l.b16 %v2686
        %v3008 = vunpack.c.l.b16 %v2687
        %v3009 = vunpack.c.l.b16 %v2688
        %v3010 = vunpack.c.l.b16 %v2689
        %v3011 = vunpack.c.l.b16 %v2690
        %v3012 = vunpack.c.l.b16 %v2691
        %v3013 = vunpack.c.l.b16 %v2692
        %v3014 = vunpack.c.l.b16 %v2693
        %v3015 = vunpack.c.l.b16 %v2694
        %v3016 = vunpack.c.l.b16 %v2695
        %v3017 = vunpack.c.l.b16 %v2696
        %v3018 = vunpack.c.l.b16 %v2697
        %v3019 = vunpack.c.l.b16 %v2698
        %v3020 = vunpack.c.l.b16 %v2699
        %v3021 = vunpack.c.l.b16 %v2700
        %v3022 = vunpack.c.l.b16 %v2701
        %v3023 = vunpack.c.l.b16 %v2702
        %v3024 = vunpack.c.l.b16 %v2703
        %v3025 = vunpack.c.l.b16 %v2704
        %v3026 = vunpack.c.l.b16 %v2705
        %v3027 = vunpack.c.l.b16 %v2706
        %v3028 = vunpack.c.l.b16 %v2707
        %v3029 = vunpack.c.l.b16 %v2708
        %v3030 = vunpack.c.l.b16 %v2709
        %v3031 = vunpack.c.l.b16 %v2710
        %v3032 = vunpack.c.l.b16 %v2711
        %v3033 = vunpack.c.l.b16 %v2712
        %v3034 = vunpack.c.l.b16 %v2713
        %v3035 = vunpack.c.l.b16 %v2714
        %v3036 = vunpack.c.l.b16 %v2715
        %v3037 = vunpack.c.l.b16 %v2716
        %v3038 = vunpack.c.l.b16 %v2717
        %v3039 = vunpack.c.l.b16 %v2718
        %v3040 = vunpack.c.l.b16 %v2719
        %v3041 = vunpack.c.l.b16 %v2720
        %v3042 = vunpack.c.l.b16 %v2721
        %v3043 = vunpack.c.l.b16 %v2722
        %v3044 = vunpack.c.l.b16 %v2723
        %v3045 = vunpack.c.l.b16 %v2724
        %v3046 = vunpack.c.l.b16 %v2725
        %v3047 = vunpack.c.l.b16 %v2726
        %v3048 = vunpack.c.l.b16 %v2727
        %v3049 = vunpack.c.l.b16 %v2728
        %v3050 = vunpack.c.l.b16 %v2729
        %v3051 = vunpack.c.l.b16 %v2730
        %v3052 = vunpack.c.l.b16 %v2731
        %v3053 = vunpack.c.l.b16 %v2732
        %v3054 = vunpack.c.l.b16 %v2733
        %v3055 = vunpack.c.l.b16 %v2734
        %v3056 = vunpack.c.l.b16 %v2735
        %v3057 = vunpack.c.l.b16 %v2736
        %v3058 = vunpack.c.l.b16 %v2737
        %v3059 = vunpack.c.l.b16 %v2738
        %v3060 = vunpack.c.l.b16 %v2739
        %v3061 = vunpack.c.l.b16 %v2740
        %v3062 = vunpack.c.l.b16 %v2741
        %v3063 = vunpack.c.l.b16 %v2742
        %v3064 = vunpack.c.l.b16 %v2743
        %v3065 = vunpack.c.l.b16 %v2744
        %v3066 = vunpack.c.l.b16 %v2745
        %v3067 = vunpack.c.l.b16 %v2746
        %v3068 = vunpack.c.l.b16 %v2747
        %v3069 = vunpack.c.l.b16 %v2748
        %v3070 = vunpack.c.l.b16 %v2749
        %v3071 = vunpack.c.l.b16 %v2750
        %v3072 = vunpack.c.l.b16 %v2751
        %v3073 = vunpack.c.l.b16 %v2752
        %v3074 = vunpack.c.l.b16 %v2753
        %v3075 = vunpack.c.l.b16 %v2754
        %v3076 = vunpack.c.l.b16 %v2755
        %v3077 = vunpack.c.l.b16 %v2756
        %v3078 = vunpack.c.l.b16 %v2757
        %v3079 = vunpack.c.l.b16 %v2758
        %v3080 = vunpack.c.l.b16 %v2759
        %v3081 = vunpack.c.l.b16 %v2760
        %v3082 = vunpack.c.l.b16 %v2761
        %v3083 = vunpack.c.l.b16 %v2762
        %v3084 = vunpack.c.l.b16 %v2763
        %v3085 = vunpack.c.l.b16 %v2764
        %v3086 = vunpack.c.l.b16 %v2765
        %v3087 = vunpack.c.l.b16 %v2766
        %v3088 = vunpack.c.l.b16 %v2767
        %v3089 = vunpack.c.l.b16 %v2768
        %v3090 = vunpack.c.l.b16 %v2769
        %v3091 = vunpack.c.l.b16 %v2770
        %v3092 = vunpack.c.l.b16 %v2771
        %v3093 = vunpack.c.l.b16 %v2772
        %v3094 = vunpack.c.l.b16 %v2773
        %v3095 = vunpack.c.l.b16 %v2774
        %v3096 = vunpack.c.l.b16 %v2775
        %v3097 = vunpack.c.l.b16 %v2776
        %v3098 = vunpack.c.l.b16 %v2777
        %v3099 = vunpack.c.l.b16 %v2778
        %v3100 = vunpack.c.l.b16 %v2779
        %v3101 = vunpack.c.l.b16 %v2780
        %v3102 = vunpack.c.l.b16 %v2781
        %v3103 = vunpack.c.l.b16 %v2782
        %v3104 = vunpack.c.l.b16 %v2783
        %v3105 = vunpack.c.l.b16 %v2784
        %v3106 = vunpack.c.l.b16 %v2785
        %v3107 = vunpack.c.l.b16 %v2786
        %v3108 = vunpack.c.l.b16 %v2787
        %v3109 = vunpack.c.l.b16 %v2788
        %v3110 = vunpack.c.l.b16 %v2789
        %v3111 = vunpack.c.l.b16 %v2790
        %v3112 = vunpack.c.l.b16 %v2791
        %v3113 = vunpack.c.l.b16 %v2792
        %v3114 = vunpack.c.l.b16 %v2793
        %v3115 = vunpack.c.l.b16 %v2794
        %v3116 = vunpack.c.l.b16 %v2795
        %v3117 = vunpack.c.l.b16 %v2796
        %v3118 = vunpack.c.l.b16 %v2797
        %v3119 = vunpack.c.l.b16 %v2798
        %v3120 = vunpack.c.l.b16 %v2799
        %v3121 = vunpack.c.l.b16 %v2800
        %v3122 = vunpack.c.l.b16 %v2801
        %v3123 = vunpack.c.l.b16 %v2802
        %v3124 = vunpack.c.l.b16 %v2803
        %v3125 = vunpack.c.l.b16 %v2804
        %v3126 = vunpack.c.l.b16 %v2805
        %v3127 = vunpack.c.l.b16 %v2806
        %v3128 = vunpack.c.l.b16 %v2807
        %v3129 = vunpack.c.l.b16 %v2808
        %v3130 = vpack.c.b16 %v2971, %v2970
        %v3131 = vpack.c.b16 %v2973, %v2972
        %v3132 = vpack.c.b16 %v2975, %v2974
        %v3133 = vpack.c.b16 %v2977, %v2976
        %v3134 = vpack.c.b16 %v2979, %v2978
        %v3135 = vpack.c.b16 %v2981, %v2980
        %v3136 = vpack.c.b16 %v2983, %v2982
        %v3137 = vpack.c.b16 %v2985, %v2984
        %v3138 = vpack.c.b16 %v2987, %v2986
        %v3139 = vpack.c.b16 %v2989, %v2988
        %v3140 = vpack.c.b16 %v2991, %v2990
        %v3141 = vpack.c.b16 %v2993, %v2992
        %v3142 = vpack.c.b16 %v2995, %v2994
        %v3143 = vpack.c.b16 %v2997, %v2996
        %v3144 = vpack.c.b16 %v2999, %v2998
        %v3145 = vpack.c.b16 %v3001, %v3000
        %v3146 = vpack.c.b16 %v3003, %v3002
        %v3147 = vpack.c.b16 %v3005, %v3004
        %v3148 = vpack.c.b16 %v3007, %v3006
        %v3149 = vpack.c.b16 %v3009, %v3008
        %v3150 = vpack.c.b16 %v3011, %v3010
        %v3151 = vpack.c.b16 %v3013, %v3012
        %v3152 = vpack.c.b16 %v3015, %v3014
        %v3153 = vpack.c.b16 %v3017, %v3016
        %v3154 = vpack.c.b16 %v3019, %v3018
        %v3155 = vpack.c.b16 %v3021, %v3020
        %v3156 = vpack.c.b16 %v3023, %v3022
        %v3157 = vpack.c.b16 %v3025, %v3024
        %v3158 = vpack.c.b16 %v3027, %v3026
        %v3159 = vpack.c.b16 %v3029, %v3028
        %v3160 = vpack.c.b16 %v3031, %v3030
        %v3161 = vpack.c.b16 %v3033, %v3032
        %v3162 = vpack.c.b16 %v3035, %v3034
        %v3163 = vpack.c.b16 %v3037, %v3036
        %v3164 = vpack.c.b16 %v3039, %v3038
        %v3165 = vpack.c.b16 %v3041, %v3040
        %v3166 = vpack.c.b16 %v3043, %v3042
        %v3167 = vpack.c.b16 %v3045, %v3044
        %v3168 = vpack.c.b16 %v3047, %v3046
        %v3169 = vpack.c.b16 %v3049, %v3048
        %v3170 = vpack.c.b16 %v3051, %v3050
        %v3171 = vpack.c.b16 %v3053, %v3052
        %v3172 = vpack.c.b16 %v3055, %v3054
        %v3173 = vpack.c.b16 %v3057, %v3056
        %v3174 = vpack.c.b16 %v3059, %v3058
        %v3175 = vpack.c.b16 %v3061, %v3060
        %v3176 = vpack.c.b16 %v3063, %v3062
        %v3177 = vpack.c.b16 %v3065, %v3064
        %v3178 = vpack.c.b16 %v3067, %v3066
        %v3179 = vpack.c.b16 %v3069, %v3068
        %v3180 = vpack.c.b16 %v3071, %v3070
        %v3181 = vpack.c.b16 %v3073, %v3072
        %v3182 = vpack.c.b16 %v3075, %v3074
        %v3183 = vpack.c.b16 %v3077, %v3076
        %v3184 = vpack.c.b16 %v3079, %v3078
        %v3185 = vpack.c.b16 %v3081, %v3080
        %v3186 = vpack.c.b16 %v3083, %v3082
        %v3187 = vpack.c.b16 %v3085, %v3084
        %v3188 = vpack.c.b16 %v3087, %v3086
        %v3189 = vpack.c.b16 %v3089, %v3088
        %v3190 = vpack.c.b16 %v3091, %v3090
        %v3191 = vpack.c.b16 %v3093, %v3092
        %v3192 = vpack.c.b16 %v3095, %v3094
        %v3193 = vpack.c.b16 %v3097, %v3096
        %v3194 = vpack.c.b16 %v3099, %v3098
        %v3195 = vpack.c.b16 %v3101, %v3100
        %v3196 = vpack.c.b16 %v3103, %v3102
        %v3197 = vpack.c.b16 %v3105, %v3104
        %v3198 = vpack.c.b16 %v3107, %v3106
        %v3199 = vpack.c.b16 %v3109, %v3108
        %v3200 = vpack.c.b16 %v3111, %v3110
        %v3201 = vpack.c.b16 %v3113, %v3112
        %v3202 = vpack.c.b16 %v3115, %v3114
        %v3203 = vpack.c.b16 %v3117, %v3116
        %v3204 = vpack.c.b16 %v3119, %v3118
        %v3205 = vpack.c.b16 %v3121, %v3120
        %v3206 = vpack.c.b16 %v3123, %v3122
        %v3207 = vpack.c.b16 %v3125, %v3124
        %v3208 = vpack.c.b16 %v3127, %v3126
        %v3209 = vpack.c.b16 %v3129, %v3128
        %3290 = vmatprep.subr.bf16.mxu0 0
        %3291 = vmatpush1.bf16.msra.mxu0 %v3130
        %3292 = vmatprep.subr.bf16.mxu0 0
        %3293 = vmatpush1.bf16.msra.mxu0 %v3131
        %3294 = vmatprep.subr.bf16.mxu0 0
        %3295 = vmatpush1.bf16.msra.mxu0 %v3132
        %3296 = vmatprep.subr.bf16.mxu0 0
        %3297 = vmatpush1.bf16.msra.mxu0 %v3133
        %3298 = vmatprep.subr.bf16.mxu0 0
        %3299 = vmatpush1.bf16.msra.mxu0 %v3134
        %3300 = vmatprep.subr.bf16.mxu0 0
        %3301 = vmatpush1.bf16.msra.mxu0 %v3135
        %3302 = vmatprep.subr.bf16.mxu0 0
        %3303 = vmatpush1.bf16.msra.mxu0 %v3136
        %3304 = vmatprep.subr.bf16.mxu0 0
        %3305 = vmatpush1.bf16.msra.mxu0 %v3137
        %3306 = vmatprep.subr.bf16.mxu0 0
        %3307 = vmatpush1.bf16.msra.mxu0 %v3138
        %3308 = vmatprep.subr.bf16.mxu0 0
        %3309 = vmatpush1.bf16.msra.mxu0 %v3139
        %3310 = vmatprep.subr.bf16.mxu0 0
        %3311 = vmatpush1.bf16.msra.mxu0 %v3140
        %3312 = vmatprep.subr.bf16.mxu0 0
        %3313 = vmatpush1.bf16.msra.mxu0 %v3141
        %3314 = vmatprep.subr.bf16.mxu0 0
        %3315 = vmatpush1.bf16.msra.mxu0 %v3142
        %3316 = vmatprep.subr.bf16.mxu0 0
        %3317 = vmatpush1.bf16.msra.mxu0 %v3143
        %3318 = vmatprep.subr.bf16.mxu0 0
        %3319 = vmatpush1.bf16.msra.mxu0 %v3144
        %3320 = vmatprep.subr.bf16.mxu0 0
        %3321 = vmatpush1.bf16.msra.mxu0 %v3145
        %3322 = vmatprep.mubr.bf16.mxu0 %v2640
        %3323 = vmatmul.mubr.bf16.gmra.mrb[0].mxu0 %v2639
        %v3324 = vpop.f32.mrb[0].mxu0
        %v3325 = vadd.f32 %v2809, %v3324
        %v3326 = vpop.f32.mrb[0].mxu0
        %v3327 = vpop.f32.mrb[0].mxu0
        %v3328 = vpop.f32.mrb[0].mxu0
        %3329 = vdwg.mxu0
        %3330 = vmatprep.subr.bf16.mxu0 0
        %3331 = vmatpush1.bf16.msra.mxu0 %v3146
        %3332 = vmatprep.subr.bf16.mxu0 0
        %3333 = vmatpush1.bf16.msra.mxu0 %v3147
        %3334 = vmatprep.subr.bf16.mxu0 0
        %3335 = vmatpush1.bf16.msra.mxu0 %v3148
        %3336 = vmatprep.subr.bf16.mxu0 0
        %3337 = vmatpush1.bf16.msra.mxu0 %v3149
        %3338 = vmatprep.subr.bf16.mxu0 0
        %3339 = vmatpush1.bf16.msra.mxu0 %v3150
        %3340 = vmatprep.subr.bf16.mxu0 0
        %3341 = vmatpush1.bf16.msra.mxu0 %v3151
        %3342 = vmatprep.subr.bf16.mxu0 0
        %3343 = vmatpush1.bf16.msra.mxu0 %v3152
        %3344 = vmatprep.subr.bf16.mxu0 0
        %3345 = vmatpush1.bf16.msra.mxu0 %v3153
        %3346 = vmatprep.subr.bf16.mxu0 0
        %3347 = vmatpush1.bf16.msra.mxu0 %v3154
        %3348 = vmatprep.subr.bf16.mxu0 0
        %3349 = vmatpush1.bf16.msra.mxu0 %v3155
        %3350 = vmatprep.subr.bf16.mxu0 0
        %3351 = vmatpush1.bf16.msra.mxu0 %v3156
        %3352 = vmatprep.subr.bf16.mxu0 0
        %3353 = vmatpush1.bf16.msra.mxu0 %v3157
        %3354 = vmatprep.subr.bf16.mxu0 0
        %3355 = vmatpush1.bf16.msra.mxu0 %v3158
        %3356 = vmatprep.subr.bf16.mxu0 0
        %3357 = vmatpush1.bf16.msra.mxu0 %v3159
        %3358 = vmatprep.subr.bf16.mxu0 0
        %3359 = vmatpush1.bf16.msra.mxu0 %v3160
        %3360 = vmatprep.subr.bf16.mxu0 0
        %3361 = vmatpush1.bf16.msra.mxu0 %v3161
        %3362 = vmatprep.mubr.bf16.mxu0 %v2642
        %3363 = vmatmul.mubr.bf16.gmra.mrb[0].mxu0 %v2641
        %v3364 = vpop.f32.mrb[0].mxu0
        %v3365 = vadd.f32 %v3325, %v3364
        %v3366 = vpop.f32.mrb[0].mxu0
        %v3367 = vpop.f32.mrb[0].mxu0
        %v3368 = vpop.f32.mrb[0].mxu0
        %3369 = vdwg.mxu0
        %3370 = vmatprep.subr.bf16.mxu0 0
        %3371 = vmatpush1.bf16.msra.mxu0 %v3162
        %3372 = vmatprep.subr.bf16.mxu0 0
        %3373 = vmatpush1.bf16.msra.mxu0 %v3163
        %3374 = vmatprep.subr.bf16.mxu0 0
        %3375 = vmatpush1.bf16.msra.mxu0 %v3164
        %3376 = vmatprep.subr.bf16.mxu0 0
        %3377 = vmatpush1.bf16.msra.mxu0 %v3165
        %3378 = vmatprep.subr.bf16.mxu0 0
        %3379 = vmatpush1.bf16.msra.mxu0 %v3166
        %3380 = vmatprep.subr.bf16.mxu0 0
        %3381 = vmatpush1.bf16.msra.mxu0 %v3167
        %3382 = vmatprep.subr.bf16.mxu0 0
        %3383 = vmatpush1.bf16.msra.mxu0 %v3168
        %3384 = vmatprep.subr.bf16.mxu0 0
        %3385 = vmatpush1.bf16.msra.mxu0 %v3169
        %3386 = vmatprep.subr.bf16.mxu0 0
        %3387 = vmatpush1.bf16.msra.mxu0 %v3170
        %3388 = vmatprep.subr.bf16.mxu0 0
        %3389 = vmatpush1.bf16.msra.mxu0 %v3171
        %3390 = vmatprep.subr.bf16.mxu0 0
        %3391 = vmatpush1.bf16.msra.mxu0 %v3172
        %3392 = vmatprep.subr.bf16.mxu0 0
        %3393 = vmatpush1.bf16.msra.mxu0 %v3173
        %3394 = vmatprep.subr.bf16.mxu0 0
        %3395 = vmatpush1.bf16.msra.mxu0 %v3174
        %3396 = vmatprep.subr.bf16.mxu0 0
        %3397 = vmatpush1.bf16.msra.mxu0 %v3175
        %3398 = vmatprep.subr.bf16.mxu0 0
        %3399 = vmatpush1.bf16.msra.mxu0 %v3176
        %3400 = vmatprep.subr.bf16.mxu0 0
        %3401 = vmatpush1.bf16.msra.mxu0 %v3177
        %3402 = vmatprep.mubr.bf16.mxu0 %v2644
        %3403 = vmatmul.mubr.bf16.gmra.mrb[0].mxu0 %v2643
        %v3404 = vpop.f32.mrb[0].mxu0
        %v3405 = vadd.f32 %v3365, %v3404
        %v3406 = vpop.f32.mrb[0].mxu0
        %v3407 = vpop.f32.mrb[0].mxu0
        %v3408 = vpop.f32.mrb[0].mxu0
        %3409 = vdwg.mxu0
        %3410 = vmatprep.subr.bf16.mxu0 0
        %3411 = vmatpush1.bf16.msra.mxu0 %v3178
        %3412 = vmatprep.subr.bf16.mxu0 0
        %3413 = vmatpush1.bf16.msra.mxu0 %v3179
        %3414 = vmatprep.subr.bf16.mxu0 0
        %3415 = vmatpush1.bf16.msra.mxu0 %v3180
        %3416 = vmatprep.subr.bf16.mxu0 0
        %3417 = vmatpush1.bf16.msra.mxu0 %v3181
        %3418 = vmatprep.subr.bf16.mxu0 0
        %3419 = vmatpush1.bf16.msra.mxu0 %v3182
        %3420 = vmatprep.subr.bf16.mxu0 0
        %3421 = vmatpush1.bf16.msra.mxu0 %v3183
        %3422 = vmatprep.subr.bf16.mxu0 0
        %3423 = vmatpush1.bf16.msra.mxu0 %v3184
        %3424 = vmatprep.subr.bf16.mxu0 0
        %3425 = vmatpush1.bf16.msra.mxu0 %v3185
        %3426 = vmatprep.subr.bf16.mxu0 0
        %3427 = vmatpush1.bf16.msra.mxu0 %v3186
        %3428 = vmatprep.subr.bf16.mxu0 0
        %3429 = vmatpush1.bf16.msra.mxu0 %v3187
        %3430 = vmatprep.subr.bf16.mxu0 0
        %3431 = vmatpush1.bf16.msra.mxu0 %v3188
        %3432 = vmatprep.subr.bf16.mxu0 0
        %3433 = vmatpush1.bf16.msra.mxu0 %v3189
        %3434 = vmatprep.subr.bf16.mxu0 0
        %3435 = vmatpush1.bf16.msra.mxu0 %v3190
        %3436 = vmatprep.subr.bf16.mxu0 0
        %3437 = vmatpush1.bf16.msra.mxu0 %v3191
        %3438 = vmatprep.subr.bf16.mxu0 0
        %3439 = vmatpush1.bf16.msra.mxu0 %v3192
        %3440 = vmatprep.subr.bf16.mxu0 0
        %3441 = vmatpush1.bf16.msra.mxu0 %v3193
        %3442 = vmatprep.mubr.bf16.mxu0 %v2646
        %3443 = vmatmul.mubr.bf16.gmra.mrb[0].mxu0 %v2645
        %v3444 = vpop.f32.mrb[0].mxu0
        %v3445 = vadd.f32 %v3405, %v3444
        %v3446 = vpop.f32.mrb[0].mxu0
        %v3447 = vpop.f32.mrb[0].mxu0
        %v3448 = vpop.f32.mrb[0].mxu0
        %3449 = vdwg.mxu0
        %3450 = vmatprep.subr.bf16.mxu0 0
        %3451 = vmatpush1.bf16.msra.mxu0 %v3194
        %3452 = vmatprep.subr.bf16.mxu0 0
        %3453 = vmatpush1.bf16.msra.mxu0 %v3195
        %3454 = vmatprep.subr.bf16.mxu0 0
        %3455 = vmatpush1.bf16.msra.mxu0 %v3196
        %3456 = vmatprep.subr.bf16.mxu0 0
        %3457 = vmatpush1.bf16.msra.mxu0 %v3197
        %3458 = vmatprep.subr.bf16.mxu0 0
        %3459 = vmatpush1.bf16.msra.mxu0 %v3198
        %3460 = vmatprep.subr.bf16.mxu0 0
        %3461 = vmatpush1.bf16.msra.mxu0 %v3199
        %3462 = vmatprep.subr.bf16.mxu0 0
        %3463 = vmatpush1.bf16.msra.mxu0 %v3200
        %3464 = vmatprep.subr.bf16.mxu0 0
        %3465 = vmatpush1.bf16.msra.mxu0 %v3201
        %3466 = vmatprep.subr.bf16.mxu0 0
        %3467 = vmatpush1.bf16.msra.mxu0 %v3202
        %3468 = vmatprep.subr.bf16.mxu0 0
        %3469 = vmatpush1.bf16.msra.mxu0 %v3203
        %3470 = vmatprep.subr.bf16.mxu0 0
        %3471 = vmatpush1.bf16.msra.mxu0 %v3204
        %3472 = vmatprep.subr.bf16.mxu0 0
        %3473 = vmatpush1.bf16.msra.mxu0 %v3205
        %3474 = vmatprep.subr.bf16.mxu0 0
        %3475 = vmatpush1.bf16.msra.mxu0 %v3206
        %3476 = vmatprep.subr.bf16.mxu0 0
        %3477 = vmatpush1.bf16.msra.mxu0 %v3207
        %3478 = vmatprep.subr.bf16.mxu0 0
        %3479 = vmatpush1.bf16.msra.mxu0 %v3208
        %3480 = vmatprep.subr.bf16.mxu0 0
        %3481 = vmatpush1.bf16.msra.mxu0 %v3209
        %3482 = vmatprep.mubr.bf16.mxu0 %v2648
        %3483 = vmatmul.mubr.bf16.gmra.mrb[0].mxu0 %v2647
        %v3484 = vpop.f32.mrb[0].mxu0
        %v3485 = vadd.f32 %v3445, %v3484
        %v3486 = vpop.f32.mrb[0].mxu0
        %v3487 = vpop.f32.mrb[0].mxu0
        %v3488 = vpop.f32.mrb[0].mxu0
        %3489 = vdwg.mxu0
        %3490 = vst [vmem:[%s302] sm:$0x1] %v3485
      $region56: #{multitask_forward.1} parent=47 // pred_fallthru
        _
      %p3491 = scmp.lt.s32.totalorder %s22, 1
      %s3492 = scalar_select %p3491, %s22, 1
      %s3493 = scalar_lea.vmem %s7, %s3492
      // Predicated region
      $region57: #{multitask_forward.1} parent=47 // pred_check
        %p3494 = pneg %p202
      $region58: #{multitask_forward.1} parent=47 // pred_check_branch
        %3496 = sbr.rel (%p3494) target = $region60
      $region59: #{multitask_forward.1} parent=47 // pred_region
        _
      $region60: #{multitask_forward.1} parent=47 // pred_fallthru
        _
    $region48: #{multitask_forward.1} parent=5 // pred_fallthru
      _
    %p3497 = scmp.le.s32.totalorder 2, %s13
    // Predicated region
    $region61: #{multitask_forward.1} parent=5 // pred_check
      %p3498 = pneg %p3497
    $region62: #{multitask_forward.1} parent=5 // pred_check_branch
      %3500 = sbr.rel (%p3498) target = $region64
    $region63: #{multitask_forward.1} parent=5 // pred_region
      %s3501 = ssub.s32 %s13, 2
      // Predicated region
      $region65: #{multitask_forward.1} parent=63 // pred_check
        %p3502 = pneg %p208
      $region66: #{multitask_forward.1} parent=63 // pred_check_branch
        %3504 = sbr.rel (%p3502) target = $region68
      $region67: #{multitask_forward.1} parent=63 // pred_region
        %p3505 = scmp.lt.s32.totalorder %s24, 1
        %s3506 = scalar_select %p3505, %s24, 1
        %s3507 = scalar_lea.vmem %s7, %s3506
      $region68: #{multitask_forward.1} parent=63 // pred_fallthru
        _
    $region64: #{multitask_forward.1} parent=5 // pred_fallthru
      _
  $region6: #{multitask_forward.1} parent=0 // loop_footer
    %s17 = sadd.s32 1, %s13
  $region7: #{multitask_forward.1} parent=0 // loop_footer_branch
    %12 = sbr.rel target = $region3
  $region8: #{multitask_forward.1} parent=0 // loop_exit
    _

</llo_original>
